<compile_context>
chip_gen: v5e
topology: v5e:2x2
jax: 0.10.0
libtpu: 0.0.40
codegen_flags: <defaults>
</compile_context>

<pallas_src>
import functools

import jax
import jax.numpy as jnp
from jax import lax
from jax.experimental import pallas as pl
from jax.experimental.pallas import tpu as pltpu


# -----------------------------------------------------------------------------
# Kernel 1: LSTM recurrence, (batch-split, time-chunk) grid.
# -----------------------------------------------------------------------------
def _lstm_recurrence_kernel(x_ref,      # (t_chunk, b_blk, H) embedded inputs
                            h0_ref,     # (b_blk, H)  initial hidden state
                            c0_ref,     # (b_blk, H)  initial cell state
                            w_ih_ref,   # (H, 4H) input->gates weight (pre-T)
                            w_hh_ref,   # (H, 4H) hidden->gates weight (pre-T)
                            b_ref,      # (1, 4H) b_ih + b_hh
                            hs_ref,     # (b_blk, t_chunk, H) hidden states out
                            hn_ref,     # (b_blk, H) running / final hidden
                            cn_ref,     # (b_blk, H) running / final cell
                            gates_ref,  # (t_chunk, b_blk, 4H) VMEM scratch
                            hstm_ref,   # (t_chunk, b_blk, H)  VMEM scratch
                            *, t_chunk, b_blk, hidden, seq_len, unroll):
    H = hidden

    # (h, c) are carried across the time axis in the resident hn/cn output
    # blocks (their block index is constant along t, so they stay in VMEM).
    @pl.when(pl.program_id(1) == 0)
    def _():
        hn_ref[...] = h0_ref[...]
        cn_ref[...] = c0_ref[...]

    # Non-recurrent input->gates matmul for the whole chunk at once
    # (M = t_chunk * b_blk instead of M = B per step); bias folded in here so
    # the serial loop body has no per-step bias broadcast.
    x2d = x_ref[...].reshape(t_chunk * b_blk, H)
    gates_ref[...] = (jnp.dot(x2d, w_ih_ref[...],
                              preferred_element_type=jnp.float32)
                      + b_ref[...]).reshape(t_chunk, b_blk, 4 * H)

    base_t = pl.program_id(1) * t_chunk
    has_tail = (seq_len % t_chunk) != 0      # static python bool

    def step(t, carry):
        h, c = carry
        # Read W_hh straight from the VMEM ref every step: Mosaic folds the
        # load into the MXU push; no 64-vreg live value across the loop.
        g = gates_ref[t] + jnp.dot(h, w_hh_ref[...],
                                   preferred_element_type=jnp.float32)
        # PyTorch gate order: input, forget, cell(g), output.
        # Slices are free only because H is a multiple of 128 (lane-aligned).
        i = jax.nn.sigmoid(g[:, 0 * H:1 * H])
        f = jax.nn.sigmoid(g[:, 1 * H:2 * H])
        gg = jnp.tanh(g[:, 2 * H:3 * H])
        o = jax.nn.sigmoid(g[:, 3 * H:4 * H])
        c_new = f * c + i * gg
        h_new = o * jnp.tanh(c_new)
        hstm_ref[t] = h_new              # full-vreg store, time-major scratch
        if has_tail:                     # mask the carry on the padded tail
            valid = (base_t + t) < seq_len
            h_new = jnp.where(valid, h_new, h)
            c_new = jnp.where(valid, c_new, c)
        return h_new, c_new

    h_fin, c_fin = lax.fori_loop(0, t_chunk, step,
                                 (hn_ref[...], cn_ref[...]), unroll=unroll)
    hn_ref[...] = h_fin
    cn_ref[...] = c_fin

    # Batch-first writeback of the chunk's hidden states: one strided copy per
    # batch row, once per chunk (off the serial critical path).  Padded tail
    # rows (t >= seq_len) are dropped by the bounded output writeback.
    for j in range(b_blk):
        hs_ref[j] = hstm_ref[:, j, :]


# -----------------------------------------------------------------------------
# Kernel 2: output projection over the flattened (B*T, H) hidden states.
# -----------------------------------------------------------------------------
def _projection_kernel(hs_ref,    # (tm, H)
                       w_fc_ref,  # (H, tv)
                       b_fc_ref,  # (1, tv)
                       out_ref):  # (tm, tv)
    out_ref[...] = (jnp.dot(hs_ref[...], w_fc_ref[...],
                            preferred_element_type=jnp.float32)
                    + b_fc_ref[...]).astype(out_ref.dtype)


# -----------------------------------------------------------------------------
# Wrapper (mirrors TokenLSTM.forward).
# -----------------------------------------------------------------------------
def token_lstm_forward(tokens, params, hidden=None):
    """tokens: (B, T) int32. Returns (logits (B, T, V), (h_n, c_n) each (1, B, H))."""
    embed_w = params["embed"]            # (V, H)
    w_ih = params["w_ih"]                # (4H, H)
    w_hh = params["w_hh"]                # (4H, H)
    b_ih = params["b_ih"]                # (4H,)
    b_hh = params["b_hh"]                # (4H,)
    w_fc = params["w_fc"]                # (V, H)
    b_fc = params["b_fc"]                # (V,)

    B, T = tokens.shape
    V, H = embed_w.shape

    # Embedding gather directly in time-major order (transpose the small int
    # token matrix instead of the H-wide embeddings).
    x_tm = jnp.take(embed_w, tokens.T, axis=0)          # (T, B, H)

    if hidden is None:
        h0 = jnp.zeros((B, H), jnp.float32)
        c0 = jnp.zeros((B, H), jnp.float32)
    else:
        h0 = hidden[0].reshape(B, H).astype(jnp.float32)
        c0 = hidden[1].reshape(B, H).astype(jnp.float32)

    w_ih_t = jnp.transpose(w_ih)                        # (H, 4H)
    w_hh_t = jnp.transpose(w_hh)                        # (H, 4H)
    bias = (b_ih + b_hh)[None, :]                       # (1, 4H)
    w_fc_t = jnp.transpose(w_fc)                        # (H, V)
    b_fc2 = b_fc[None, :]                               # (1, V)

    # ---- recurrence: (batch-split, time-chunk) grid ------------------------
    t_chunk = T if T <= 128 else 128                    # div by 8 or full T
    n_chunks = pl.cdiv(T, t_chunk)
    n_b = 2 if (B >= 16 and B % 16 == 0) else 1         # megacore batch split
    b_blk = B // n_b
    unroll = min(t_chunk, 8)

    rec_kernel = functools.partial(_lstm_recurrence_kernel,
                                   t_chunk=t_chunk, b_blk=b_blk, hidden=H,
                                   seq_len=T, unroll=unroll)

    rec_cost = pl.CostEstimate(
        flops=4 * T * B * H * 4 * H + 10 * T * B * H,
        transcendentals=5 * T * B * H,
        bytes_accessed=4 * (2 * T * B * H + 6 * B * H + 2 * H * 4 * H + 4 * H),
    )

    hs, h_n, c_n = pl.pallas_call(
        rec_kernel,
        out_shape=(
            jax.ShapeDtypeStruct((B, T, H), jnp.float32),   # batch-first hs
            jax.ShapeDtypeStruct((B, H), jnp.float32),
            jax.ShapeDtypeStruct((B, H), jnp.float32),
        ),
        grid=(n_b, n_chunks),
        in_specs=[
            pl.BlockSpec((t_chunk, b_blk, H), lambda b, t: (t, b, 0)),  # x
            pl.BlockSpec((b_blk, H), lambda b, t: (b, 0)),              # h0
            pl.BlockSpec((b_blk, H), lambda b, t: (b, 0)),              # c0
            pl.BlockSpec((H, 4 * H), lambda b, t: (0, 0)),              # w_ih
            pl.BlockSpec((H, 4 * H), lambda b, t: (0, 0)),              # w_hh
            pl.BlockSpec((1, 4 * H), lambda b, t: (0, 0)),              # bias
        ],
        out_specs=(
            pl.BlockSpec((b_blk, t_chunk, H), lambda b, t: (b, t, 0)),  # hs
            pl.BlockSpec((b_blk, H), lambda b, t: (b, 0)),              # h_n
            pl.BlockSpec((b_blk, H), lambda b, t: (b, 0)),              # c_n
        ),
        scratch_shapes=[
            pltpu.VMEM((t_chunk, b_blk, 4 * H), jnp.float32),   # gates
            pltpu.VMEM((t_chunk, b_blk, H), jnp.float32),       # hs (time-major)
        ],
        compiler_params=pltpu.CompilerParams(
            dimension_semantics=("parallel", "arbitrary"),
            vmem_limit_bytes=32 * 1024 * 1024,     # fits v7x's 64 MiB physical
        ),
        cost_estimate=rec_cost,
    )(x_tm, h0, c0, w_ih_t, w_hh_t, bias)

    # ---- output projection: one big lane-dense tiled matmul ----------------
    # hs is already batch-first, so this reshape is free (no HBM transpose).
    hs_2d = hs.reshape(B * T, H)
    M = B * T
    tm = M if M <= 512 else 512          # multiple of 8 or full M
    tv = V if V <= 1024 else 1024        # multiple of 128 or full V
    gm = pl.cdiv(M, tm)
    gv = pl.cdiv(V, tv)

    # Put the LARGER operand's axis on the outer grid position so it streams
    # from HBM exactly once; only the smaller operand is re-streamed.
    if V >= M:   # LM-typical: w_fc (H*V) bigger than hs (M*H) -> v outer
        grid = (gv, gm)
        hs_spec = pl.BlockSpec((tm, H), lambda v, m: (m, 0))
        w_spec = pl.BlockSpec((H, tv), lambda v, m: (0, v))
        b_spec = pl.BlockSpec((1, tv), lambda v, m: (0, v))
        out_spec = pl.BlockSpec((tm, tv), lambda v, m: (m, v))
    else:
        grid = (gm, gv)
        hs_spec = pl.BlockSpec((tm, H), lambda m, v: (m, 0))
        w_spec = pl.BlockSpec((H, tv), lambda m, v: (0, v))
        b_spec = pl.BlockSpec((1, tv), lambda m, v: (0, v))
        out_spec = pl.BlockSpec((tm, tv), lambda m, v: (m, v))

    proj_cost = pl.CostEstimate(
        flops=2 * M * H * V,
        transcendentals=0,
        bytes_accessed=4 * (M * H + H * V + V + M * V),
    )

    logits2d = pl.pallas_call(
        _projection_kernel,
        out_shape=jax.ShapeDtypeStruct((M, V), jnp.float32),
        grid=grid,
        in_specs=[hs_spec, w_spec, b_spec],
        out_specs=out_spec,
        compiler_params=pltpu.CompilerParams(
            dimension_semantics=("parallel", "parallel"),
            vmem_limit_bytes=32 * 1024 * 1024,
        ),
        cost_estimate=proj_cost,
    )(hs_2d, w_fc_t, b_fc2)

    logits = logits2d.reshape(B, T, V)                  # already batch-first
    return logits, (h_n[None, :, :], c_n[None, :, :])


# -----------------------------------------------------------------------------
# Pure-JAX reference (for correctness check).
# -----------------------------------------------------------------------------
def token_lstm_reference(tokens, params, hidden=None):
    embed_w = params["embed"]
    w_ih, w_hh = params["w_ih"], params["w_hh"]
    b_ih, b_hh = params["b_ih"], params["b_hh"]
    w_fc, b_fc = params["w_fc"], params["b_fc"]

    B, T = tokens.shape
    V, H = embed_w.shape

    x = jnp.take(embed_w, tokens, axis=0)               # (B, T, H)
    x_tm = jnp.transpose(x, (1, 0, 2))                  # (T, B, H)

    if hidden is None:
        h0 = jnp.zeros((B, H), jnp.float32)
        c0 = jnp.zeros((B, H), jnp.float32)
    else:
        h0 = hidden[0].reshape(B, H)
        c0 = hidden[1].reshape(B, H)

    def cell(carry, x_t):
        h, c = carry
        gates = x_t @ w_ih.T + h @ w_hh.T + b_ih + b_hh
        i = jax.nn.sigmoid(gates[:, 0 * H:1 * H])
        f = jax.nn.sigmoid(gates[:, 1 * H:2 * H])
        g = jnp.tanh(gates[:, 2 * H:3 * H])
        o = jax.nn.sigmoid(gates[:, 3 * H:4 * H])
        c = f * c + i * g
        h = o * jnp.tanh(c)
        return (h, c), h

    (h_n, c_n), hs = lax.scan(cell, (h0, c0), x_tm)     # hs: (T, B, H)
    logits = hs @ w_fc.T + b_fc                         # (T, B, V)
    return (jnp.transpose(logits, (1, 0, 2)),
            (h_n[None, :, :], c_n[None, :, :]))


# -----------------------------------------------------------------------------
# Deterministic parameter init (matches PyTorch init shapes; synthetic values).
# -----------------------------------------------------------------------------
def init_params(key, vocab_size, hidden_size):
    ks = jax.random.split(key, 7)
    bound = 1.0 / jnp.sqrt(hidden_size).astype(jnp.float32)
    return {
        "embed": jax.random.normal(ks[0], (vocab_size, hidden_size), jnp.float32),
        "w_ih": jax.random.uniform(ks[1], (4 * hidden_size, hidden_size),
                                   jnp.float32, -bound, bound),
        "w_hh": jax.random.uniform(ks[2], (4 * hidden_size, hidden_size),
                                   jnp.float32, -bound, bound),
        "b_ih": jax.random.uniform(ks[3], (4 * hidden_size,),
                                   jnp.float32, -bound, bound),
        "b_hh": jax.random.uniform(ks[4], (4 * hidden_size,),
                                   jnp.float32, -bound, bound),
        "w_fc": jax.random.uniform(ks[5], (vocab_size, hidden_size),
                                   jnp.float32, -bound, bound),
        "b_fc": jax.random.uniform(ks[6], (vocab_size,),
                                   jnp.float32, -bound, bound),
    }


if __name__ == "__main__":
    VOCAB, HIDDEN = 256, 128
    BATCH, SEQ = 8, 8

    key = jax.random.PRNGKey(0)
    k_param, k_tok = jax.random.split(key)
    params = init_params(k_param, VOCAB, HIDDEN)
    tokens = jax.random.randint(k_tok, (BATCH, SEQ), 0, VOCAB, dtype=jnp.int32)

    logits, (h_n, c_n) = token_lstm_forward(tokens, params)
    jax.block_until_ready((logits, h_n, c_n))

    ref_logits, (ref_h, ref_c) = token_lstm_reference(tokens, params)
    assert logits.shape == (BATCH, SEQ, VOCAB)
    assert h_n.shape == (1, BATCH, HIDDEN) and c_n.shape == (1, BATCH, HIDDEN)
    assert jnp.allclose(logits, ref_logits, atol=1e-4, rtol=1e-4)
    assert jnp.allclose(h_n, ref_h, atol=1e-4, rtol=1e-4)
    assert jnp.allclose(c_n, ref_c, atol=1e-4, rtol=1e-4)

    # Also exercise the explicit-hidden-state path (like torch's hidden arg).
    logits2, _ = token_lstm_forward(tokens, params, (h_n, c_n))
    ref_logits2, _ = token_lstm_reference(tokens, params, (ref_h, ref_c))
    jax.block_until_ready(logits2)
    assert jnp.allclose(logits2, ref_logits2, atol=1e-4, rtol=1e-4)

    print("KERNEL_OK")
</pallas_src>

<mosaic_0001>
module attributes {stable_mosaic.version = 11 : i64} {
  func.func @_lstm_recurrence_kernel(%arg0: i32, %arg1: i32, %arg2: memref<8x8x128xf32, #tpu.memory_space<vmem>>, %arg3: memref<8x128xf32, #tpu.memory_space<vmem>>, %arg4: memref<8x128xf32, #tpu.memory_space<vmem>>, %arg5: memref<128x512xf32, #tpu.memory_space<vmem>>, %arg6: memref<128x512xf32, #tpu.memory_space<vmem>>, %arg7: memref<1x512xf32, #tpu.memory_space<vmem>>, %arg8: memref<8x8x128xf32, #tpu.memory_space<vmem>>, %arg9: memref<8x128xf32, #tpu.memory_space<vmem>>, %arg10: memref<8x128xf32, #tpu.memory_space<vmem>>, %arg11: memref<8x8x512xf32, #tpu.memory_space<vmem>>, %arg12: memref<8x8x128xf32, #tpu.memory_space<vmem>>) attributes {dimension_semantics = [#tpu.dimension_semantics<parallel>, #tpu.dimension_semantics<arbitrary>], iteration_bounds = array<i64: 1, 1>, scalar_prefetch = 0 : i64, scratch_operands = 2 : i64, tpu.core_type = #tpu.core_type<tc>, window_params = [{transform_indices = @transform_0, window_bounds = array<i64: 8, 8, 128>}, {transform_indices = @transform_1, window_bounds = array<i64: 8, 128>}, {transform_indices = @transform_2, window_bounds = array<i64: 8, 128>}, {pipeline_mode = #tpu.pipeline_mode<synchronous>, transform_indices = @transform_3, window_bounds = array<i64: 128, 512>}, {pipeline_mode = #tpu.pipeline_mode<synchronous>, transform_indices = @transform_4, window_bounds = array<i64: 128, 512>}, {pipeline_mode = #tpu.pipeline_mode<synchronous>, transform_indices = @transform_5, window_bounds = array<i64: 1, 512>}, {transform_indices = @transform_6, window_bounds = array<i64: 8, 8, 128>}, {transform_indices = @transform_7, window_bounds = array<i64: 8, 128>}, {transform_indices = @transform_8, window_bounds = array<i64: 8, 128>}]} {
    %c0_i32 = arith.constant 0 : i32
    %0 = arith.cmpi eq, %arg1, %c0_i32 : i32
    %1 = arith.extui %0 : i1 to i32
    %c0_i32_0 = arith.constant 0 : i32
    %2 = arith.cmpi ne, %1, %c0_i32_0 : i32
    scf.if %2 {
      %c0_140 = arith.constant 0 : index
      %c0_141 = arith.constant 0 : index
      %336 = vector.load %arg3[%c0_140, %c0_141] : memref<8x128xf32, #tpu.memory_space<vmem>>, vector<8x128xf32>
      %c0_142 = arith.constant 0 : index
      %c0_143 = arith.constant 0 : index
      %337 = vector.load %arg9[%c0_142, %c0_143] : memref<8x128xf32, #tpu.memory_space<vmem>>, vector<8x128xf32>
      tpu.vector_store %arg9[%c0_142, %c0_143], %336 {strides = array<i32>} : memref<8x128xf32, #tpu.memory_space<vmem>>, vector<8x128xf32>,
      %c0_144 = arith.constant 0 : index
      %c0_145 = arith.constant 0 : index
      %338 = vector.load %arg4[%c0_144, %c0_145] : memref<8x128xf32, #tpu.memory_space<vmem>>, vector<8x128xf32>
      %c0_146 = arith.constant 0 : index
      %c0_147 = arith.constant 0 : index
      %339 = vector.load %arg10[%c0_146, %c0_147] : memref<8x128xf32, #tpu.memory_space<vmem>>, vector<8x128xf32>
      tpu.vector_store %arg10[%c0_146, %c0_147], %338 {strides = array<i32>} : memref<8x128xf32, #tpu.memory_space<vmem>>, vector<8x128xf32>,
    } else {
    }
    %c0 = arith.constant 0 : index
    %c0_1 = arith.constant 0 : index
    %c0_2 = arith.constant 0 : index
    %3 = vector.load %arg2[%c0, %c0_1, %c0_2] : memref<8x8x128xf32, #tpu.memory_space<vmem>>, vector<8x8x128xf32>
    %4 = vector.shape_cast %3 : vector<8x8x128xf32> to vector<64x128xf32>
    %c0_3 = arith.constant 0 : index
    %c0_4 = arith.constant 0 : index
    %5 = vector.load %arg5[%c0_3, %c0_4] : memref<128x512xf32, #tpu.memory_space<vmem>>, vector<128x512xf32>
    %cst = arith.constant dense<0.000000e+00> : vector<64x512xf32>
    %6 = tpu.matmul %4, %5, %cst {dimension_numbers = #tpu.dot_dimension_numbers<[1], [0], [0], [1], [0, 0, 1, 1], [], []>} : vector<64x128xf32>, vector<128x512xf32>, vector<64x512xf32> -> vector<64x512xf32>
    %c0_5 = arith.constant 0 : index
    %c0_6 = arith.constant 0 : index
    %7 = vector.load %arg7[%c0_5, %c0_6] : memref<1x512xf32, #tpu.memory_space<vmem>>, vector<1x512xf32>
    %8 = vector.broadcast %7 : vector<1x512xf32> to vector<64x512xf32>
    %9 = arith.addf %6, %8 : vector<64x512xf32>
    %10 = vector.shape_cast %9 : vector<64x512xf32> to vector<8x8x512xf32>
    %c0_7 = arith.constant 0 : index
    %c0_8 = arith.constant 0 : index
    %c0_9 = arith.constant 0 : index
    %11 = vector.load %arg11[%c0_7, %c0_8, %c0_9] : memref<8x8x512xf32, #tpu.memory_space<vmem>>, vector<8x8x512xf32>
    tpu.vector_store %arg11[%c0_7, %c0_8, %c0_9], %10 {strides = array<i32>} : memref<8x8x512xf32, #tpu.memory_space<vmem>>, vector<8x8x512xf32>,
    %c0_10 = arith.constant 0 : index
    %c0_11 = arith.constant 0 : index
    %12 = vector.load %arg9[%c0_10, %c0_11] : memref<8x128xf32, #tpu.memory_space<vmem>>, vector<8x128xf32>
    %c0_12 = arith.constant 0 : index
    %c0_13 = arith.constant 0 : index
    %13 = vector.load %arg10[%c0_12, %c0_13] : memref<8x128xf32, #tpu.memory_space<vmem>>, vector<8x128xf32>
    %c0_i32_14 = arith.constant 0 : i32
    %14 = arith.index_cast %c0_i32_14 : i32 to index
    %c0_15 = arith.constant 0 : index
    %c0_16 = arith.constant 0 : index
    %15 = vector.load %arg11[%14, %c0_15, %c0_16] : memref<8x8x512xf32, #tpu.memory_space<vmem>>, vector<1x8x512xf32>
    %16 = vector.shape_cast %15 : vector<1x8x512xf32> to vector<8x512xf32>
    %c0_17 = arith.constant 0 : index
    %c0_18 = arith.constant 0 : index
    %17 = vector.load %arg6[%c0_17, %c0_18] : memref<128x512xf32, #tpu.memory_space<vmem>>, vector<128x512xf32>
    %cst_19 = arith.constant dense<0.000000e+00> : vector<8x512xf32>
    %18 = tpu.matmul %12, %17, %cst_19 {dimension_numbers = #tpu.dot_dimension_numbers<[1], [0], [0], [1], [0, 0, 1, 1], [], []>} : vector<8x128xf32>, vector<128x512xf32>, vector<8x512xf32> -> vector<8x512xf32>
    %19 = arith.addf %16, %18 : vector<8x512xf32>
    %20 = vector.extract_strided_slice %19 {offsets = [0, 0], sizes = [8, 128], strides = [1, 1]} : vector<8x512xf32> to vector<8x128xf32>
    %21 = arith.negf %20 : vector<8x128xf32>
    %22 = math.exp %21 : vector<8x128xf32>
    %cst_20 = arith.constant 1.000000e+00 : f32
    %23 = vector.broadcast %cst_20 : f32 to vector<8x128xf32>
    %24 = arith.addf %23, %22 : vector<8x128xf32>
    %25 = arith.divf %23, %24 : vector<8x128xf32>
    %26 = vector.extract_strided_slice %19 {offsets = [0, 128], sizes = [8, 128], strides = [1, 1]} : vector<8x512xf32> to vector<8x128xf32>
    %27 = arith.negf %26 : vector<8x128xf32>
    %28 = math.exp %27 : vector<8x128xf32>
    %cst_21 = arith.constant 1.000000e+00 : f32
    %29 = vector.broadcast %cst_21 : f32 to vector<8x128xf32>
    %30 = arith.addf %29, %28 : vector<8x128xf32>
    %31 = arith.divf %29, %30 : vector<8x128xf32>
    %32 = vector.extract_strided_slice %19 {offsets = [0, 256], sizes = [8, 128], strides = [1, 1]} : vector<8x512xf32> to vector<8x128xf32>
    %33 = math.tanh %32 : vector<8x128xf32>
    %34 = vector.extract_strided_slice %19 {offsets = [0, 384], sizes = [8, 128], strides = [1, 1]} : vector<8x512xf32> to vector<8x128xf32>
    %35 = arith.negf %34 : vector<8x128xf32>
    %36 = math.exp %35 : vector<8x128xf32>
    %cst_22 = arith.constant 1.000000e+00 : f32
    %37 = vector.broadcast %cst_22 : f32 to vector<8x128xf32>
    %38 = arith.addf %37, %36 : vector<8x128xf32>
    %39 = arith.divf %37, %38 : vector<8x128xf32>
    %40 = arith.mulf %31, %13 : vector<8x128xf32>
    %41 = arith.mulf %25, %33 : vector<8x128xf32>
    %42 = arith.addf %40, %41 : vector<8x128xf32>
    %43 = math.tanh %42 : vector<8x128xf32>
    %44 = arith.mulf %39, %43 : vector<8x128xf32>
    %45 = arith.index_cast %c0_i32_14 : i32 to index
    %c0_23 = arith.constant 0 : index
    %c0_24 = arith.constant 0 : index
    %46 = vector.load %arg12[%45, %c0_23, %c0_24] : memref<8x8x128xf32, #tpu.memory_space<vmem>>, vector<1x8x128xf32>
    %47 = vector.shape_cast %46 : vector<1x8x128xf32> to vector<8x128xf32>
    %48 = vector.shape_cast %44 : vector<8x128xf32> to vector<1x8x128xf32>
    tpu.vector_store %arg12[%45, %c0_23, %c0_24], %48 {strides = array<i32>} : memref<8x8x128xf32, #tpu.memory_space<vmem>>, vector<1x8x128xf32>,
    %c1_i32 = arith.constant 1 : i32
    %49 = arith.index_cast %c1_i32 : i32 to index
    %c0_25 = arith.constant 0 : index
    %c0_26 = arith.constant 0 : index
    %50 = vector.load %arg11[%49, %c0_25, %c0_26] : memref<8x8x512xf32, #tpu.memory_space<vmem>>, vector<1x8x512xf32>
    %51 = vector.shape_cast %50 : vector<1x8x512xf32> to vector<8x512xf32>
    %c0_27 = arith.constant 0 : index
    %c0_28 = arith.constant 0 : index
    %52 = vector.load %arg6[%c0_27, %c0_28] : memref<128x512xf32, #tpu.memory_space<vmem>>, vector<128x512xf32>
    %cst_29 = arith.constant dense<0.000000e+00> : vector<8x512xf32>
    %53 = tpu.matmul %44, %52, %cst_29 {dimension_numbers = #tpu.dot_dimension_numbers<[1], [0], [0], [1], [0, 0, 1, 1], [], []>} : vector<8x128xf32>, vector<128x512xf32>, vector<8x512xf32> -> vector<8x512xf32>
    %54 = arith.addf %51, %53 : vector<8x512xf32>
    %55 = vector.extract_strided_slice %54 {offsets = [0, 0], sizes = [8, 128], strides = [1, 1]} : vector<8x512xf32> to vector<8x128xf32>
    %56 = arith.negf %55 : vector<8x128xf32>
    %57 = math.exp %56 : vector<8x128xf32>
    %cst_30 = arith.constant 1.000000e+00 : f32
    %58 = vector.broadcast %cst_30 : f32 to vector<8x128xf32>
    %59 = arith.addf %58, %57 : vector<8x128xf32>
    %60 = arith.divf %58, %59 : vector<8x128xf32>
    %61 = vector.extract_strided_slice %54 {offsets = [0, 128], sizes = [8, 128], strides = [1, 1]} : vector<8x512xf32> to vector<8x128xf32>
    %62 = arith.negf %61 : vector<8x128xf32>
    %63 = math.exp %62 : vector<8x128xf32>
    %cst_31 = arith.constant 1.000000e+00 : f32
    %64 = vector.broadcast %cst_31 : f32 to vector<8x128xf32>
    %65 = arith.addf %64, %63 : vector<8x128xf32>
    %66 = arith.divf %64, %65 : vector<8x128xf32>
    %67 = vector.extract_strided_slice %54 {offsets = [0, 256], sizes = [8, 128], strides = [1, 1]} : vector<8x512xf32> to vector<8x128xf32>
    %68 = math.tanh %67 : vector<8x128xf32>
    %69 = vector.extract_strided_slice %54 {offsets = [0, 384], sizes = [8, 128], strides = [1, 1]} : vector<8x512xf32> to vector<8x128xf32>
    %70 = arith.negf %69 : vector<8x128xf32>
    %71 = math.exp %70 : vector<8x128xf32>
    %cst_32 = arith.constant 1.000000e+00 : f32
    %72 = vector.broadcast %cst_32 : f32 to vector<8x128xf32>
    %73 = arith.addf %72, %71 : vector<8x128xf32>
    %74 = arith.divf %72, %73 : vector<8x128xf32>
    %75 = arith.mulf %66, %42 : vector<8x128xf32>
    %76 = arith.mulf %60, %68 : vector<8x128xf32>
    %77 = arith.addf %75, %76 : vector<8x128xf32>
    %78 = math.tanh %77 : vector<8x128xf32>
    %79 = arith.mulf %74, %78 : vector<8x128xf32>
    %80 = arith.index_cast %c1_i32 : i32 to index
    %c0_33 = arith.constant 0 : index
    %c0_34 = arith.constant 0 : index
    %81 = vector.load %arg12[%80, %c0_33, %c0_34] : memref<8x8x128xf32, #tpu.memory_space<vmem>>, vector<1x8x128xf32>
    %82 = vector.shape_cast %81 : vector<1x8x128xf32> to vector<8x128xf32>
    %83 = vector.shape_cast %79 : vector<8x128xf32> to vector<1x8x128xf32>
    tpu.vector_store %arg12[%80, %c0_33, %c0_34], %83 {strides = array<i32>} : memref<8x8x128xf32, #tpu.memory_space<vmem>>, vector<1x8x128xf32>,
    %c2_i32 = arith.constant 2 : i32
    %84 = arith.index_cast %c2_i32 : i32 to index
    %c0_35 = arith.constant 0 : index
    %c0_36 = arith.constant 0 : index
    %85 = vector.load %arg11[%84, %c0_35, %c0_36] : memref<8x8x512xf32, #tpu.memory_space<vmem>>, vector<1x8x512xf32>
    %86 = vector.shape_cast %85 : vector<1x8x512xf32> to vector<8x512xf32>
    %c0_37 = arith.constant 0 : index
    %c0_38 = arith.constant 0 : index
    %87 = vector.load %arg6[%c0_37, %c0_38] : memref<128x512xf32, #tpu.memory_space<vmem>>, vector<128x512xf32>
    %cst_39 = arith.constant dense<0.000000e+00> : vector<8x512xf32>
    %88 = tpu.matmul %79, %87, %cst_39 {dimension_numbers = #tpu.dot_dimension_numbers<[1], [0], [0], [1], [0, 0, 1, 1], [], []>} : vector<8x128xf32>, vector<128x512xf32>, vector<8x512xf32> -> vector<8x512xf32>
    %89 = arith.addf %86, %88 : vector<8x512xf32>
    %90 = vector.extract_strided_slice %89 {offsets = [0, 0], sizes = [8, 128], strides = [1, 1]} : vector<8x512xf32> to vector<8x128xf32>
    %91 = arith.negf %90 : vector<8x128xf32>
    %92 = math.exp %91 : vector<8x128xf32>
    %cst_40 = arith.constant 1.000000e+00 : f32
    %93 = vector.broadcast %cst_40 : f32 to vector<8x128xf32>
    %94 = arith.addf %93, %92 : vector<8x128xf32>
    %95 = arith.divf %93, %94 : vector<8x128xf32>
    %96 = vector.extract_strided_slice %89 {offsets = [0, 128], sizes = [8, 128], strides = [1, 1]} : vector<8x512xf32> to vector<8x128xf32>
    %97 = arith.negf %96 : vector<8x128xf32>
    %98 = math.exp %97 : vector<8x128xf32>
    %cst_41 = arith.constant 1.000000e+00 : f32
    %99 = vector.broadcast %cst_41 : f32 to vector<8x128xf32>
    %100 = arith.addf %99, %98 : vector<8x128xf32>
    %101 = arith.divf %99, %100 : vector<8x128xf32>
    %102 = vector.extract_strided_slice %89 {offsets = [0, 256], sizes = [8, 128], strides = [1, 1]} : vector<8x512xf32> to vector<8x128xf32>
    %103 = math.tanh %102 : vector<8x128xf32>
    %104 = vector.extract_strided_slice %89 {offsets = [0, 384], sizes = [8, 128], strides = [1, 1]} : vector<8x512xf32> to vector<8x128xf32>
    %105 = arith.negf %104 : vector<8x128xf32>
    %106 = math.exp %105 : vector<8x128xf32>
    %cst_42 = arith.constant 1.000000e+00 : f32
    %107 = vector.broadcast %cst_42 : f32 to vector<8x128xf32>
    %108 = arith.addf %107, %106 : vector<8x128xf32>
    %109 = arith.divf %107, %108 : vector<8x128xf32>
    %110 = arith.mulf %101, %77 : vector<8x128xf32>
    %111 = arith.mulf %95, %103 : vector<8x128xf32>
    %112 = arith.addf %110, %111 : vector<8x128xf32>
    %113 = math.tanh %112 : vector<8x128xf32>
    %114 = arith.mulf %109, %113 : vector<8x128xf32>
    %115 = arith.index_cast %c2_i32 : i32 to index
    %c0_43 = arith.constant 0 : index
    %c0_44 = arith.constant 0 : index
    %116 = vector.load %arg12[%115, %c0_43, %c0_44] : memref<8x8x128xf32, #tpu.memory_space<vmem>>, vector<1x8x128xf32>
    %117 = vector.shape_cast %116 : vector<1x8x128xf32> to vector<8x128xf32>
    %118 = vector.shape_cast %114 : vector<8x128xf32> to vector<1x8x128xf32>
    tpu.vector_store %arg12[%115, %c0_43, %c0_44], %118 {strides = array<i32>} : memref<8x8x128xf32, #tpu.memory_space<vmem>>, vector<1x8x128xf32>,
    %c3_i32 = arith.constant 3 : i32
    %119 = arith.index_cast %c3_i32 : i32 to index
    %c0_45 = arith.constant 0 : index
    %c0_46 = arith.constant 0 : index
    %120 = vector.load %arg11[%119, %c0_45, %c0_46] : memref<8x8x512xf32, #tpu.memory_space<vmem>>, vector<1x8x512xf32>
    %121 = vector.shape_cast %120 : vector<1x8x512xf32> to vector<8x512xf32>
    %c0_47 = arith.constant 0 : index
    %c0_48 = arith.constant 0 : index
    %122 = vector.load %arg6[%c0_47, %c0_48] : memref<128x512xf32, #tpu.memory_space<vmem>>, vector<128x512xf32>
    %cst_49 = arith.constant dense<0.000000e+00> : vector<8x512xf32>
    %123 = tpu.matmul %114, %122, %cst_49 {dimension_numbers = #tpu.dot_dimension_numbers<[1], [0], [0], [1], [0, 0, 1, 1], [], []>} : vector<8x128xf32>, vector<128x512xf32>, vector<8x512xf32> -> vector<8x512xf32>
    %124 = arith.addf %121, %123 : vector<8x512xf32>
    %125 = vector.extract_strided_slice %124 {offsets = [0, 0], sizes = [8, 128], strides = [1, 1]} : vector<8x512xf32> to vector<8x128xf32>
    %126 = arith.negf %125 : vector<8x128xf32>
    %127 = math.exp %126 : vector<8x128xf32>
    %cst_50 = arith.constant 1.000000e+00 : f32
    %128 = vector.broadcast %cst_50 : f32 to vector<8x128xf32>
    %129 = arith.addf %128, %127 : vector<8x128xf32>
    %130 = arith.divf %128, %129 : vector<8x128xf32>
    %131 = vector.extract_strided_slice %124 {offsets = [0, 128], sizes = [8, 128], strides = [1, 1]} : vector<8x512xf32> to vector<8x128xf32>
    %132 = arith.negf %131 : vector<8x128xf32>
    %133 = math.exp %132 : vector<8x128xf32>
    %cst_51 = arith.constant 1.000000e+00 : f32
    %134 = vector.broadcast %cst_51 : f32 to vector<8x128xf32>
    %135 = arith.addf %134, %133 : vector<8x128xf32>
    %136 = arith.divf %134, %135 : vector<8x128xf32>
    %137 = vector.extract_strided_slice %124 {offsets = [0, 256], sizes = [8, 128], strides = [1, 1]} : vector<8x512xf32> to vector<8x128xf32>
    %138 = math.tanh %137 : vector<8x128xf32>
    %139 = vector.extract_strided_slice %124 {offsets = [0, 384], sizes = [8, 128], strides = [1, 1]} : vector<8x512xf32> to vector<8x128xf32>
    %140 = arith.negf %139 : vector<8x128xf32>
    %141 = math.exp %140 : vector<8x128xf32>
    %cst_52 = arith.constant 1.000000e+00 : f32
    %142 = vector.broadcast %cst_52 : f32 to vector<8x128xf32>
    %143 = arith.addf %142, %141 : vector<8x128xf32>
    %144 = arith.divf %142, %143 : vector<8x128xf32>
    %145 = arith.mulf %136, %112 : vector<8x128xf32>
    %146 = arith.mulf %130, %138 : vector<8x128xf32>
    %147 = arith.addf %145, %146 : vector<8x128xf32>
    %148 = math.tanh %147 : vector<8x128xf32>
    %149 = arith.mulf %144, %148 : vector<8x128xf32>
    %150 = arith.index_cast %c3_i32 : i32 to index
    %c0_53 = arith.constant 0 : index
    %c0_54 = arith.constant 0 : index
    %151 = vector.load %arg12[%150, %c0_53, %c0_54] : memref<8x8x128xf32, #tpu.memory_space<vmem>>, vector<1x8x128xf32>
    %152 = vector.shape_cast %151 : vector<1x8x128xf32> to vector<8x128xf32>
    %153 = vector.shape_cast %149 : vector<8x128xf32> to vector<1x8x128xf32>
    tpu.vector_store %arg12[%150, %c0_53, %c0_54], %153 {strides = array<i32>} : memref<8x8x128xf32, #tpu.memory_space<vmem>>, vector<1x8x128xf32>,
    %c4_i32 = arith.constant 4 : i32
    %154 = arith.index_cast %c4_i32 : i32 to index
    %c0_55 = arith.constant 0 : index
    %c0_56 = arith.constant 0 : index
    %155 = vector.load %arg11[%154, %c0_55, %c0_56] : memref<8x8x512xf32, #tpu.memory_space<vmem>>, vector<1x8x512xf32>
    %156 = vector.shape_cast %155 : vector<1x8x512xf32> to vector<8x512xf32>
    %c0_57 = arith.constant 0 : index
    %c0_58 = arith.constant 0 : index
    %157 = vector.load %arg6[%c0_57, %c0_58] : memref<128x512xf32, #tpu.memory_space<vmem>>, vector<128x512xf32>
    %cst_59 = arith.constant dense<0.000000e+00> : vector<8x512xf32>
    %158 = tpu.matmul %149, %157, %cst_59 {dimension_numbers = #tpu.dot_dimension_numbers<[1], [0], [0], [1], [0, 0, 1, 1], [], []>} : vector<8x128xf32>, vector<128x512xf32>, vector<8x512xf32> -> vector<8x512xf32>
    %159 = arith.addf %156, %158 : vector<8x512xf32>
    %160 = vector.extract_strided_slice %159 {offsets = [0, 0], sizes = [8, 128], strides = [1, 1]} : vector<8x512xf32> to vector<8x128xf32>
    %161 = arith.negf %160 : vector<8x128xf32>
    %162 = math.exp %161 : vector<8x128xf32>
    %cst_60 = arith.constant 1.000000e+00 : f32
    %163 = vector.broadcast %cst_60 : f32 to vector<8x128xf32>
    %164 = arith.addf %163, %162 : vector<8x128xf32>
    %165 = arith.divf %163, %164 : vector<8x128xf32>
    %166 = vector.extract_strided_slice %159 {offsets = [0, 128], sizes = [8, 128], strides = [1, 1]} : vector<8x512xf32> to vector<8x128xf32>
    %167 = arith.negf %166 : vector<8x128xf32>
    %168 = math.exp %167 : vector<8x128xf32>
    %cst_61 = arith.constant 1.000000e+00 : f32
    %169 = vector.broadcast %cst_61 : f32 to vector<8x128xf32>
    %170 = arith.addf %169, %168 : vector<8x128xf32>
    %171 = arith.divf %169, %170 : vector<8x128xf32>
    %172 = vector.extract_strided_slice %159 {offsets = [0, 256], sizes = [8, 128], strides = [1, 1]} : vector<8x512xf32> to vector<8x128xf32>
    %173 = math.tanh %172 : vector<8x128xf32>
    %174 = vector.extract_strided_slice %159 {offsets = [0, 384], sizes = [8, 128], strides = [1, 1]} : vector<8x512xf32> to vector<8x128xf32>
    %175 = arith.negf %174 : vector<8x128xf32>
    %176 = math.exp %175 : vector<8x128xf32>
    %cst_62 = arith.constant 1.000000e+00 : f32
    %177 = vector.broadcast %cst_62 : f32 to vector<8x128xf32>
    %178 = arith.addf %177, %176 : vector<8x128xf32>
    %179 = arith.divf %177, %178 : vector<8x128xf32>
    %180 = arith.mulf %171, %147 : vector<8x128xf32>
    %181 = arith.mulf %165, %173 : vector<8x128xf32>
    %182 = arith.addf %180, %181 : vector<8x128xf32>
    %183 = math.tanh %182 : vector<8x128xf32>
    %184 = arith.mulf %179, %183 : vector<8x128xf32>
    %185 = arith.index_cast %c4_i32 : i32 to index
    %c0_63 = arith.constant 0 : index
    %c0_64 = arith.constant 0 : index
    %186 = vector.load %arg12[%185, %c0_63, %c0_64] : memref<8x8x128xf32, #tpu.memory_space<vmem>>, vector<1x8x128xf32>
    %187 = vector.shape_cast %186 : vector<1x8x128xf32> to vector<8x128xf32>
    %188 = vector.shape_cast %184 : vector<8x128xf32> to vector<1x8x128xf32>
    tpu.vector_store %arg12[%185, %c0_63, %c0_64], %188 {strides = array<i32>} : memref<8x8x128xf32, #tpu.memory_space<vmem>>, vector<1x8x128xf32>,
    %c5_i32 = arith.constant 5 : i32
    %189 = arith.index_cast %c5_i32 : i32 to index
    %c0_65 = arith.constant 0 : index
    %c0_66 = arith.constant 0 : index
    %190 = vector.load %arg11[%189, %c0_65, %c0_66] : memref<8x8x512xf32, #tpu.memory_space<vmem>>, vector<1x8x512xf32>
    %191 = vector.shape_cast %190 : vector<1x8x512xf32> to vector<8x512xf32>
    %c0_67 = arith.constant 0 : index
    %c0_68 = arith.constant 0 : index
    %192 = vector.load %arg6[%c0_67, %c0_68] : memref<128x512xf32, #tpu.memory_space<vmem>>, vector<128x512xf32>
    %cst_69 = arith.constant dense<0.000000e+00> : vector<8x512xf32>
    %193 = tpu.matmul %184, %192, %cst_69 {dimension_numbers = #tpu.dot_dimension_numbers<[1], [0], [0], [1], [0, 0, 1, 1], [], []>} : vector<8x128xf32>, vector<128x512xf32>, vector<8x512xf32> -> vector<8x512xf32>
    %194 = arith.addf %191, %193 : vector<8x512xf32>
    %195 = vector.extract_strided_slice %194 {offsets = [0, 0], sizes = [8, 128], strides = [1, 1]} : vector<8x512xf32> to vector<8x128xf32>
    %196 = arith.negf %195 : vector<8x128xf32>
    %197 = math.exp %196 : vector<8x128xf32>
    %cst_70 = arith.constant 1.000000e+00 : f32
    %198 = vector.broadcast %cst_70 : f32 to vector<8x128xf32>
    %199 = arith.addf %198, %197 : vector<8x128xf32>
    %200 = arith.divf %198, %199 : vector<8x128xf32>
    %201 = vector.extract_strided_slice %194 {offsets = [0, 128], sizes = [8, 128], strides = [1, 1]} : vector<8x512xf32> to vector<8x128xf32>
    %202 = arith.negf %201 : vector<8x128xf32>
    %203 = math.exp %202 : vector<8x128xf32>
    %cst_71 = arith.constant 1.000000e+00 : f32
    %204 = vector.broadcast %cst_71 : f32 to vector<8x128xf32>
    %205 = arith.addf %204, %203 : vector<8x128xf32>
    %206 = arith.divf %204, %205 : vector<8x128xf32>
    %207 = vector.extract_strided_slice %194 {offsets = [0, 256], sizes = [8, 128], strides = [1, 1]} : vector<8x512xf32> to vector<8x128xf32>
    %208 = math.tanh %207 : vector<8x128xf32>
    %209 = vector.extract_strided_slice %194 {offsets = [0, 384], sizes = [8, 128], strides = [1, 1]} : vector<8x512xf32> to vector<8x128xf32>
    %210 = arith.negf %209 : vector<8x128xf32>
    %211 = math.exp %210 : vector<8x128xf32>
    %cst_72 = arith.constant 1.000000e+00 : f32
    %212 = vector.broadcast %cst_72 : f32 to vector<8x128xf32>
    %213 = arith.addf %212, %211 : vector<8x128xf32>
    %214 = arith.divf %212, %213 : vector<8x128xf32>
    %215 = arith.mulf %206, %182 : vector<8x128xf32>
    %216 = arith.mulf %200, %208 : vector<8x128xf32>
    %217 = arith.addf %215, %216 : vector<8x128xf32>
    %218 = math.tanh %217 : vector<8x128xf32>
    %219 = arith.mulf %214, %218 : vector<8x128xf32>
    %220 = arith.index_cast %c5_i32 : i32 to index
    %c0_73 = arith.constant 0 : index
    %c0_74 = arith.constant 0 : index
    %221 = vector.load %arg12[%220, %c0_73, %c0_74] : memref<8x8x128xf32, #tpu.memory_space<vmem>>, vector<1x8x128xf32>
    %222 = vector.shape_cast %221 : vector<1x8x128xf32> to vector<8x128xf32>
    %223 = vector.shape_cast %219 : vector<8x128xf32> to vector<1x8x128xf32>
    tpu.vector_store %arg12[%220, %c0_73, %c0_74], %223 {strides = array<i32>} : memref<8x8x128xf32, #tpu.memory_space<vmem>>, vector<1x8x128xf32>,
    %c6_i32 = arith.constant 6 : i32
    %224 = arith.index_cast %c6_i32 : i32 to index
    %c0_75 = arith.constant 0 : index
    %c0_76 = arith.constant 0 : index
    %225 = vector.load %arg11[%224, %c0_75, %c0_76] : memref<8x8x512xf32, #tpu.memory_space<vmem>>, vector<1x8x512xf32>
    %226 = vector.shape_cast %225 : vector<1x8x512xf32> to vector<8x512xf32>
    %c0_77 = arith.constant 0 : index
    %c0_78 = arith.constant 0 : index
    %227 = vector.load %arg6[%c0_77, %c0_78] : memref<128x512xf32, #tpu.memory_space<vmem>>, vector<128x512xf32>
    %cst_79 = arith.constant dense<0.000000e+00> : vector<8x512xf32>
    %228 = tpu.matmul %219, %227, %cst_79 {dimension_numbers = #tpu.dot_dimension_numbers<[1], [0], [0], [1], [0, 0, 1, 1], [], []>} : vector<8x128xf32>, vector<128x512xf32>, vector<8x512xf32> -> vector<8x512xf32>
    %229 = arith.addf %226, %228 : vector<8x512xf32>
    %230 = vector.extract_strided_slice %229 {offsets = [0, 0], sizes = [8, 128], strides = [1, 1]} : vector<8x512xf32> to vector<8x128xf32>
    %231 = arith.negf %230 : vector<8x128xf32>
    %232 = math.exp %231 : vector<8x128xf32>
    %cst_80 = arith.constant 1.000000e+00 : f32
    %233 = vector.broadcast %cst_80 : f32 to vector<8x128xf32>
    %234 = arith.addf %233, %232 : vector<8x128xf32>
    %235 = arith.divf %233, %234 : vector<8x128xf32>
    %236 = vector.extract_strided_slice %229 {offsets = [0, 128], sizes = [8, 128], strides = [1, 1]} : vector<8x512xf32> to vector<8x128xf32>
    %237 = arith.negf %236 : vector<8x128xf32>
    %238 = math.exp %237 : vector<8x128xf32>
    %cst_81 = arith.constant 1.000000e+00 : f32
    %239 = vector.broadcast %cst_81 : f32 to vector<8x128xf32>
    %240 = arith.addf %239, %238 : vector<8x128xf32>
    %241 = arith.divf %239, %240 : vector<8x128xf32>
    %242 = vector.extract_strided_slice %229 {offsets = [0, 256], sizes = [8, 128], strides = [1, 1]} : vector<8x512xf32> to vector<8x128xf32>
    %243 = math.tanh %242 : vector<8x128xf32>
    %244 = vector.extract_strided_slice %229 {offsets = [0, 384], sizes = [8, 128], strides = [1, 1]} : vector<8x512xf32> to vector<8x128xf32>
    %245 = arith.negf %244 : vector<8x128xf32>
    %246 = math.exp %245 : vector<8x128xf32>
    %cst_82 = arith.constant 1.000000e+00 : f32
    %247 = vector.broadcast %cst_82 : f32 to vector<8x128xf32>
    %248 = arith.addf %247, %246 : vector<8x128xf32>
    %249 = arith.divf %247, %248 : vector<8x128xf32>
    %250 = arith.mulf %241, %217 : vector<8x128xf32>
    %251 = arith.mulf %235, %243 : vector<8x128xf32>
    %252 = arith.addf %250, %251 : vector<8x128xf32>
    %253 = math.tanh %252 : vector<8x128xf32>
    %254 = arith.mulf %249, %253 : vector<8x128xf32>
    %255 = arith.index_cast %c6_i32 : i32 to index
    %c0_83 = arith.constant 0 : index
    %c0_84 = arith.constant 0 : index
    %256 = vector.load %arg12[%255, %c0_83, %c0_84] : memref<8x8x128xf32, #tpu.memory_space<vmem>>, vector<1x8x128xf32>
    %257 = vector.shape_cast %256 : vector<1x8x128xf32> to vector<8x128xf32>
    %258 = vector.shape_cast %254 : vector<8x128xf32> to vector<1x8x128xf32>
    tpu.vector_store %arg12[%255, %c0_83, %c0_84], %258 {strides = array<i32>} : memref<8x8x128xf32, #tpu.memory_space<vmem>>, vector<1x8x128xf32>,
    %c7_i32 = arith.constant 7 : i32
    %259 = arith.index_cast %c7_i32 : i32 to index
    %c0_85 = arith.constant 0 : index
    %c0_86 = arith.constant 0 : index
    %260 = vector.load %arg11[%259, %c0_85, %c0_86] : memref<8x8x512xf32, #tpu.memory_space<vmem>>, vector<1x8x512xf32>
    %261 = vector.shape_cast %260 : vector<1x8x512xf32> to vector<8x512xf32>
    %c0_87 = arith.constant 0 : index
    %c0_88 = arith.constant 0 : index
    %262 = vector.load %arg6[%c0_87, %c0_88] : memref<128x512xf32, #tpu.memory_space<vmem>>, vector<128x512xf32>
    %cst_89 = arith.constant dense<0.000000e+00> : vector<8x512xf32>
    %263 = tpu.matmul %254, %262, %cst_89 {dimension_numbers = #tpu.dot_dimension_numbers<[1], [0], [0], [1], [0, 0, 1, 1], [], []>} : vector<8x128xf32>, vector<128x512xf32>, vector<8x512xf32> -> vector<8x512xf32>
    %264 = arith.addf %261, %263 : vector<8x512xf32>
    %265 = vector.extract_strided_slice %264 {offsets = [0, 0], sizes = [8, 128], strides = [1, 1]} : vector<8x512xf32> to vector<8x128xf32>
    %266 = arith.negf %265 : vector<8x128xf32>
    %267 = math.exp %266 : vector<8x128xf32>
    %cst_90 = arith.constant 1.000000e+00 : f32
    %268 = vector.broadcast %cst_90 : f32 to vector<8x128xf32>
    %269 = arith.addf %268, %267 : vector<8x128xf32>
    %270 = arith.divf %268, %269 : vector<8x128xf32>
    %271 = vector.extract_strided_slice %264 {offsets = [0, 128], sizes = [8, 128], strides = [1, 1]} : vector<8x512xf32> to vector<8x128xf32>
    %272 = arith.negf %271 : vector<8x128xf32>
    %273 = math.exp %272 : vector<8x128xf32>
    %cst_91 = arith.constant 1.000000e+00 : f32
    %274 = vector.broadcast %cst_91 : f32 to vector<8x128xf32>
    %275 = arith.addf %274, %273 : vector<8x128xf32>
    %276 = arith.divf %274, %275 : vector<8x128xf32>
    %277 = vector.extract_strided_slice %264 {offsets = [0, 256], sizes = [8, 128], strides = [1, 1]} : vector<8x512xf32> to vector<8x128xf32>
    %278 = math.tanh %277 : vector<8x128xf32>
    %279 = vector.extract_strided_slice %264 {offsets = [0, 384], sizes = [8, 128], strides = [1, 1]} : vector<8x512xf32> to vector<8x128xf32>
    %280 = arith.negf %279 : vector<8x128xf32>
    %281 = math.exp %280 : vector<8x128xf32>
    %cst_92 = arith.constant 1.000000e+00 : f32
    %282 = vector.broadcast %cst_92 : f32 to vector<8x128xf32>
    %283 = arith.addf %282, %281 : vector<8x128xf32>
    %284 = arith.divf %282, %283 : vector<8x128xf32>
    %285 = arith.mulf %276, %252 : vector<8x128xf32>
    %286 = arith.mulf %270, %278 : vector<8x128xf32>
    %287 = arith.addf %285, %286 : vector<8x128xf32>
    %288 = math.tanh %287 : vector<8x128xf32>
    %289 = arith.mulf %284, %288 : vector<8x128xf32>
    %290 = arith.index_cast %c7_i32 : i32 to index
    %c0_93 = arith.constant 0 : index
    %c0_94 = arith.constant 0 : index
    %291 = vector.load %arg12[%290, %c0_93, %c0_94] : memref<8x8x128xf32, #tpu.memory_space<vmem>>, vector<1x8x128xf32>
    %292 = vector.shape_cast %291 : vector<1x8x128xf32> to vector<8x128xf32>
    %293 = vector.shape_cast %289 : vector<8x128xf32> to vector<1x8x128xf32>
    tpu.vector_store %arg12[%290, %c0_93, %c0_94], %293 {strides = array<i32>} : memref<8x8x128xf32, #tpu.memory_space<vmem>>, vector<1x8x128xf32>,
    %c8_i32 = arith.constant 8 : i32
    %c0_95 = arith.constant 0 : index
    %c0_96 = arith.constant 0 : index
    %294 = vector.load %arg9[%c0_95, %c0_96] : memref<8x128xf32, #tpu.memory_space<vmem>>, vector<8x128xf32>
    tpu.vector_store %arg9[%c0_95, %c0_96], %289 {strides = array<i32>} : memref<8x128xf32, #tpu.memory_space<vmem>>, vector<8x128xf32>,
    %c0_97 = arith.constant 0 : index
    %c0_98 = arith.constant 0 : index
    %295 = vector.load %arg10[%c0_97, %c0_98] : memref<8x128xf32, #tpu.memory_space<vmem>>, vector<8x128xf32>
    tpu.vector_store %arg10[%c0_97, %c0_98], %287 {strides = array<i32>} : memref<8x128xf32, #tpu.memory_space<vmem>>, vector<8x128xf32>,
    %c0_99 = arith.constant 0 : index
    %c0_100 = arith.constant 0 : index
    %c0_101 = arith.constant 0 : index
    %296 = vector.load %arg12[%c0_99, %c0_100, %c0_101] : memref<8x8x128xf32, #tpu.memory_space<vmem>>, vector<8x1x128xf32>
    %297 = vector.shape_cast %296 : vector<8x1x128xf32> to vector<8x128xf32>
    %c0_102 = arith.constant 0 : index
    %c0_103 = arith.constant 0 : index
    %c0_104 = arith.constant 0 : index
    %298 = vector.load %arg8[%c0_102, %c0_103, %c0_104] : memref<8x8x128xf32, #tpu.memory_space<vmem>>, vector<1x8x128xf32>
    %299 = vector.shape_cast %298 : vector<1x8x128xf32> to vector<8x128xf32>
    %300 = vector.shape_cast %297 : vector<8x128xf32> to vector<1x8x128xf32>
    tpu.vector_store %arg8[%c0_102, %c0_103, %c0_104], %300 {strides = array<i32>} : memref<8x8x128xf32, #tpu.memory_space<vmem>>, vector<1x8x128xf32>,
    %c0_105 = arith.constant 0 : index
    %c1 = arith.constant 1 : index
    %c0_106 = arith.constant 0 : index
    %301 = vector.load %arg12[%c0_105, %c1, %c0_106] : memref<8x8x128xf32, #tpu.memory_space<vmem>>, vector<8x1x128xf32>
    %302 = vector.shape_cast %301 : vector<8x1x128xf32> to vector<8x128xf32>
    %c1_107 = arith.constant 1 : index
    %c0_108 = arith.constant 0 : index
    %c0_109 = arith.constant 0 : index
    %303 = vector.load %arg8[%c1_107, %c0_108, %c0_109] : memref<8x8x128xf32, #tpu.memory_space<vmem>>, vector<1x8x128xf32>
    %304 = vector.shape_cast %303 : vector<1x8x128xf32> to vector<8x128xf32>
    %305 = vector.shape_cast %302 : vector<8x128xf32> to vector<1x8x128xf32>
    tpu.vector_store %arg8[%c1_107, %c0_108, %c0_109], %305 {strides = array<i32>} : memref<8x8x128xf32, #tpu.memory_space<vmem>>, vector<1x8x128xf32>,
    %c0_110 = arith.constant 0 : index
    %c2 = arith.constant 2 : index
    %c0_111 = arith.constant 0 : index
    %306 = vector.load %arg12[%c0_110, %c2, %c0_111] : memref<8x8x128xf32, #tpu.memory_space<vmem>>, vector<8x1x128xf32>
    %307 = vector.shape_cast %306 : vector<8x1x128xf32> to vector<8x128xf32>
    %c2_112 = arith.constant 2 : index
    %c0_113 = arith.constant 0 : index
    %c0_114 = arith.constant 0 : index
    %308 = vector.load %arg8[%c2_112, %c0_113, %c0_114] : memref<8x8x128xf32, #tpu.memory_space<vmem>>, vector<1x8x128xf32>
    %309 = vector.shape_cast %308 : vector<1x8x128xf32> to vector<8x128xf32>
    %310 = vector.shape_cast %307 : vector<8x128xf32> to vector<1x8x128xf32>
    tpu.vector_store %arg8[%c2_112, %c0_113, %c0_114], %310 {strides = array<i32>} : memref<8x8x128xf32, #tpu.memory_space<vmem>>, vector<1x8x128xf32>,
    %c0_115 = arith.constant 0 : index
    %c3 = arith.constant 3 : index
    %c0_116 = arith.constant 0 : index
    %311 = vector.load %arg12[%c0_115, %c3, %c0_116] : memref<8x8x128xf32, #tpu.memory_space<vmem>>, vector<8x1x128xf32>
    %312 = vector.shape_cast %311 : vector<8x1x128xf32> to vector<8x128xf32>
    %c3_117 = arith.constant 3 : index
    %c0_118 = arith.constant 0 : index
    %c0_119 = arith.constant 0 : index
    %313 = vector.load %arg8[%c3_117, %c0_118, %c0_119] : memref<8x8x128xf32, #tpu.memory_space<vmem>>, vector<1x8x128xf32>
    %314 = vector.shape_cast %313 : vector<1x8x128xf32> to vector<8x128xf32>
    %315 = vector.shape_cast %312 : vector<8x128xf32> to vector<1x8x128xf32>
    tpu.vector_store %arg8[%c3_117, %c0_118, %c0_119], %315 {strides = array<i32>} : memref<8x8x128xf32, #tpu.memory_space<vmem>>, vector<1x8x128xf32>,
    %c0_120 = arith.constant 0 : index
    %c4 = arith.constant 4 : index
    %c0_121 = arith.constant 0 : index
    %316 = vector.load %arg12[%c0_120, %c4, %c0_121] : memref<8x8x128xf32, #tpu.memory_space<vmem>>, vector<8x1x128xf32>
    %317 = vector.shape_cast %316 : vector<8x1x128xf32> to vector<8x128xf32>
    %c4_122 = arith.constant 4 : index
    %c0_123 = arith.constant 0 : index
    %c0_124 = arith.constant 0 : index
    %318 = vector.load %arg8[%c4_122, %c0_123, %c0_124] : memref<8x8x128xf32, #tpu.memory_space<vmem>>, vector<1x8x128xf32>
    %319 = vector.shape_cast %318 : vector<1x8x128xf32> to vector<8x128xf32>
    %320 = vector.shape_cast %317 : vector<8x128xf32> to vector<1x8x128xf32>
    tpu.vector_store %arg8[%c4_122, %c0_123, %c0_124], %320 {strides = array<i32>} : memref<8x8x128xf32, #tpu.memory_space<vmem>>, vector<1x8x128xf32>,
    %c0_125 = arith.constant 0 : index
    %c5 = arith.constant 5 : index
    %c0_126 = arith.constant 0 : index
    %321 = vector.load %arg12[%c0_125, %c5, %c0_126] : memref<8x8x128xf32, #tpu.memory_space<vmem>>, vector<8x1x128xf32>
    %322 = vector.shape_cast %321 : vector<8x1x128xf32> to vector<8x128xf32>
    %c5_127 = arith.constant 5 : index
    %c0_128 = arith.constant 0 : index
    %c0_129 = arith.constant 0 : index
    %323 = vector.load %arg8[%c5_127, %c0_128, %c0_129] : memref<8x8x128xf32, #tpu.memory_space<vmem>>, vector<1x8x128xf32>
    %324 = vector.shape_cast %323 : vector<1x8x128xf32> to vector<8x128xf32>
    %325 = vector.shape_cast %322 : vector<8x128xf32> to vector<1x8x128xf32>
    tpu.vector_store %arg8[%c5_127, %c0_128, %c0_129], %325 {strides = array<i32>} : memref<8x8x128xf32, #tpu.memory_space<vmem>>, vector<1x8x128xf32>,
    %c0_130 = arith.constant 0 : index
    %c6 = arith.constant 6 : index
    %c0_131 = arith.constant 0 : index
    %326 = vector.load %arg12[%c0_130, %c6, %c0_131] : memref<8x8x128xf32, #tpu.memory_space<vmem>>, vector<8x1x128xf32>
    %327 = vector.shape_cast %326 : vector<8x1x128xf32> to vector<8x128xf32>
    %c6_132 = arith.constant 6 : index
    %c0_133 = arith.constant 0 : index
    %c0_134 = arith.constant 0 : index
    %328 = vector.load %arg8[%c6_132, %c0_133, %c0_134] : memref<8x8x128xf32, #tpu.memory_space<vmem>>, vector<1x8x128xf32>
    %329 = vector.shape_cast %328 : vector<1x8x128xf32> to vector<8x128xf32>
    %330 = vector.shape_cast %327 : vector<8x128xf32> to vector<1x8x128xf32>
    tpu.vector_store %arg8[%c6_132, %c0_133, %c0_134], %330 {strides = array<i32>} : memref<8x8x128xf32, #tpu.memory_space<vmem>>, vector<1x8x128xf32>,
    %c0_135 = arith.constant 0 : index
    %c7 = arith.constant 7 : index
    %c0_136 = arith.constant 0 : index
    %331 = vector.load %arg12[%c0_135, %c7, %c0_136] : memref<8x8x128xf32, #tpu.memory_space<vmem>>, vector<8x1x128xf32>
    %332 = vector.shape_cast %331 : vector<8x1x128xf32> to vector<8x128xf32>
    %c7_137 = arith.constant 7 : index
    %c0_138 = arith.constant 0 : index
    %c0_139 = arith.constant 0 : index
    %333 = vector.load %arg8[%c7_137, %c0_138, %c0_139] : memref<8x8x128xf32, #tpu.memory_space<vmem>>, vector<1x8x128xf32>
    %334 = vector.shape_cast %333 : vector<1x8x128xf32> to vector<8x128xf32>
    %335 = vector.shape_cast %332 : vector<8x128xf32> to vector<1x8x128xf32>
    tpu.vector_store %arg8[%c7_137, %c0_138, %c0_139], %335 {strides = array<i32>} : memref<8x8x128xf32, #tpu.memory_space<vmem>>, vector<1x8x128xf32>,
    return
  }
  func.func @transform_0(%arg0: i32, %arg1: i32) -> (i32, i32, i32) {
    %c0_i32 = arith.constant 0 : i32
    %c0_i32_0 = arith.constant 0 : i32
    return %arg1, %arg0, %c0_i32 : i32, i32, i32
  }
  func.func @transform_1(%arg0: i32, %arg1: i32) -> (i32, i32) {
    %c0_i32 = arith.constant 0 : i32
    %c0_i32_0 = arith.constant 0 : i32
    return %arg0, %c0_i32 : i32, i32
  }
  func.func @transform_2(%arg0: i32, %arg1: i32) -> (i32, i32) {
    %c0_i32 = arith.constant 0 : i32
    %c0_i32_0 = arith.constant 0 : i32
    return %arg0, %c0_i32 : i32, i32
  }
  func.func @transform_3(%arg0: i32, %arg1: i32) -> (i32, i32) {
    %c0_i32 = arith.constant 0 : i32
    %c0_i32_0 = arith.constant 0 : i32
    %c0_i32_1 = arith.constant 0 : i32
    return %c0_i32, %c0_i32_0 : i32, i32
  }
  func.func @transform_4(%arg0: i32, %arg1: i32) -> (i32, i32) {
    %c0_i32 = arith.constant 0 : i32
    %c0_i32_0 = arith.constant 0 : i32
    %c0_i32_1 = arith.constant 0 : i32
    return %c0_i32, %c0_i32_0 : i32, i32
  }
  func.func @transform_5(%arg0: i32, %arg1: i32) -> (i32, i32) {
    %c0_i32 = arith.constant 0 : i32
    %c0_i32_0 = arith.constant 0 : i32
    %c0_i32_1 = arith.constant 0 : i32
    return %c0_i32, %c0_i32_0 : i32, i32
  }
  func.func @transform_6(%arg0: i32, %arg1: i32) -> (i32, i32, i32) {
    %c0_i32 = arith.constant 0 : i32
    %c0_i32_0 = arith.constant 0 : i32
    return %arg0, %arg1, %c0_i32 : i32, i32, i32
  }
  func.func @transform_7(%arg0: i32, %arg1: i32) -> (i32, i32) {
    %c0_i32 = arith.constant 0 : i32
    %c0_i32_0 = arith.constant 0 : i32
    return %arg0, %c0_i32 : i32, i32
  }
  func.func @transform_8(%arg0: i32, %arg1: i32) -> (i32, i32) {
    %c0_i32 = arith.constant 0 : i32
    %c0_i32_0 = arith.constant 0 : i32
    return %arg0, %c0_i32 : i32, i32
  }
}

</mosaic_0001>

<llo_original>
// kernel: tpu_custom_call.1
$region0: #{tpu_custom_call.1}
  #allocation0 [shape = 'u32[]', space=smem, size = 0x4, offset = 0x4, fixed_abs, tag = 'smem constant byte address 0x4 - core index']
  #allocation1 [shape = 'u32[72,128]{1,0:T(1,128)}', space=vmem, size = 0x9000, scoped, tag = 'internal scratch']
  #allocation2 [shape = 'f32[8,8,512]{2,1,0:T(8,128)}', space=vmem, size = 0x20000, scoped, tag = 'scratch operand']
  #allocation3 [shape = 'f32[8,8,128]{2,1,0:T(8,128)}', space=vmem, size = 0x8000, scoped, tag = 'scratch operand']
  %s0 = inlined_call_operand.hbm [shape: f32[8,8,128], index: 0, kind: input, shape index: {}]
  %s1 = inlined_call_operand.hbm [shape: f32[8,128], index: 1, kind: input, shape index: {}]
  %s2 = inlined_call_operand.hbm [shape: f32[8,128], index: 2, kind: input, shape index: {}]
  %s3 = inlined_call_operand.hbm [shape: f32[128,512], index: 3, kind: input, shape index: {}]
  %s4 = inlined_call_operand.hbm [shape: f32[128,512], index: 4, kind: input, shape index: {}]
  %s5 = inlined_call_operand.vmem [shape: f32[1,512], index: 5, kind: input, shape index: {}]
  %s6 = inlined_call_operand.hbm [shape: f32[8,8,128], index: 6, kind: output, shape index: {0}]
  %s7 = inlined_call_operand.hbm [shape: f32[8,128], index: 7, kind: output, shape index: {1}]
  %s8 = inlined_call_operand.hbm [shape: f32[8,128], index: 8, kind: output, shape index: {2}]
  %9 = xla_tuple %s6, %s7, %s8
  %s10 = sld [smem:[#allocation0]]
  $region74: #{tpu_custom_call.1} parent=0
    _
  %s12 = ssub.s32 1, %s10
  %s13 = scalar_select 0, %s12, %s10
  $region1: #{tpu_custom_call.1} parent=0
    #allocation4 [shape = 'u8[32768]{0}', space=vmem, size = 0x8000, scoped, tag = 'input window, operand 0, single buffered']
    #allocation5 [shape = 's32[1]{0}', space=sflag, size = 0x4, scoped, tag = 'scoped memory for tpu_custom_call.1']
    #allocation6 [shape = 's32[1]{0}', space=sflag, size = 0x4, scoped, tag = 'scoped memory for tpu_custom_call.1']
    #allocation7 [shape = 'u8[4096]{0}', space=vmem, size = 0x1000, scoped, tag = 'input window, operand 1, single buffered']
    #allocation8 [shape = 's32[1]{0}', space=sflag, size = 0x4, scoped, tag = 'scoped memory for tpu_custom_call.1']
    #allocation9 [shape = 'u8[4096]{0}', space=vmem, size = 0x1000, scoped, tag = 'input window, operand 2, single buffered']
    #allocation10 [shape = 'u8[262144]{0}', space=vmem, size = 0x40000, scoped, tag = 'input window, operand 3, single buffered']
    #allocation11 [shape = 's32[1]{0}', space=sflag, size = 0x4, scoped, tag = 'scoped memory for tpu_custom_call.1']
    #allocation12 [shape = 'u8[262144]{0}', space=vmem, size = 0x40000, scoped, tag = 'input window, operand 4, single buffered']
    #allocation13 [shape = 'u8[32768]{0}', space=vmem, size = 0x8000, scoped, tag = 'output window, operand 0, single buffered']
    #allocation14 [shape = 'u8[4096]{0}', space=vmem, size = 0x1000, scoped, tag = 'output window, operand 1, single buffered']
    #allocation15 [shape = 's32[1]{0}', space=sflag, size = 0x4, scoped, tag = 'scoped memory for tpu_custom_call.1']
    #allocation16 [shape = 'u8[4096]{0}', space=vmem, size = 0x1000, scoped, tag = 'output window, operand 2, single buffered']
    %14 = vsyncpa [#allocation5], 0
    %15 = vsyncpa [#allocation8], 0
    %16 = vsyncpa [#allocation11], 0
    %17 = vsyncpa [#allocation6], 0
    %18 = vsyncpa [#allocation15], 0
    // Predicated region
    $region2: #{tpu_custom_call.1} parent=1 // pred_check
      _
    $region3: #{tpu_custom_call.1} parent=1 // pred_check_branch
      %20 = sbr.rel (0) target = $region5
    $region4: #{tpu_custom_call.1} parent=1 // pred_region
      %22 = vsyncadd [#allocation5], 0
      %s23 = sshll.u32 %s0, 4
      %s24 = int_to_ptr.hbm [resolvable:$true] %s23
      %s25 = sshll.u32 [#allocation4], 4
      %s26 = int_to_ptr.vmem [resolvable:$true] %s25
      %31 = dma.hbm_to_vmem [thread:$0]  %s24, 1024, %s26, [#allocation5], 128, 128, 8
    $region5: #{tpu_custom_call.1} parent=1 // pred_fallthru
      _
    // Predicated region
    $region6: #{tpu_custom_call.1} parent=1 // pred_check
      _
    $region7: #{tpu_custom_call.1} parent=1 // pred_check_branch
      %33 = sbr.rel (0) target = $region9
    $region8: #{tpu_custom_call.1} parent=1 // pred_region
      %35 = vsyncadd [#allocation8], 0
      %s37 = sshll.u32 %s1, 4
      %s38 = int_to_ptr.hbm [resolvable:$true] %s37
      %s39 = sshll.u32 [#allocation7], 4
      %s40 = int_to_ptr.vmem [resolvable:$true] %s39
      %42 = dma.hbm_to_vmem [thread:$0]  %s38, 128, %s40, [#allocation8]
    $region9: #{tpu_custom_call.1} parent=1 // pred_fallthru
      _
    // Predicated region
    $region10: #{tpu_custom_call.1} parent=1 // pred_check
      _
    $region11: #{tpu_custom_call.1} parent=1 // pred_check_branch
      %44 = sbr.rel (0) target = $region13
    $region12: #{tpu_custom_call.1} parent=1 // pred_region
      %46 = vsyncadd [#allocation8], 0
      %s48 = sshll.u32 %s2, 4
      %s49 = int_to_ptr.hbm [resolvable:$true] %s48
      %s50 = sshll.u32 [#allocation9], 4
      %s51 = int_to_ptr.vmem [resolvable:$true] %s50
      %53 = dma.hbm_to_vmem [thread:$0]  %s49, 128, %s51, [#allocation8]
    $region13: #{tpu_custom_call.1} parent=1 // pred_fallthru
      _
    // Predicated region
    $region14: #{tpu_custom_call.1} parent=1 // pred_check
      _
    $region15: #{tpu_custom_call.1} parent=1 // pred_check_branch
      %55 = sbr.rel (0) target = $region17
    $region16: #{tpu_custom_call.1} parent=1 // pred_region
      %57 = vsyncadd [#allocation11], 0
      %s58 = sshll.u32 %s3, 4
      %s59 = int_to_ptr.hbm [resolvable:$true] %s58
      %s60 = sshll.u32 [#allocation10], 4
      %s61 = int_to_ptr.vmem [resolvable:$true] %s60
      %66 = dma.hbm_to_vmem [thread:$0]  %s59, 8192, %s61, [#allocation11], 512, 512, 32
    $region17: #{tpu_custom_call.1} parent=1 // pred_fallthru
      _
    // Predicated region
    $region18: #{tpu_custom_call.1} parent=1 // pred_check
      _
    $region19: #{tpu_custom_call.1} parent=1 // pred_check_branch
      %68 = sbr.rel (0) target = $region21
    $region20: #{tpu_custom_call.1} parent=1 // pred_region
      %70 = vsyncadd [#allocation11], 0
      %s71 = sshll.u32 %s4, 4
      %s72 = int_to_ptr.hbm [resolvable:$true] %s71
      %s73 = sshll.u32 [#allocation12], 4
      %s74 = int_to_ptr.vmem [resolvable:$true] %s73
      %79 = dma.hbm_to_vmem [thread:$0]  %s72, 8192, %s74, [#allocation11], 512, 512, 32
    $region21: #{tpu_custom_call.1} parent=1 // pred_fallthru
      _
    // Predicated region
    $region22: #{tpu_custom_call.1} parent=1 // pred_check
      _
    $region23: #{tpu_custom_call.1} parent=1 // pred_check_branch
      %81 = sbr.rel (0) target = $region25
    $region24: #{tpu_custom_call.1} parent=1 // pred_region
      _
    $region25: #{tpu_custom_call.1} parent=1 // pred_fallthru
      _
    // Predicated region
    $region26: #{tpu_custom_call.1} parent=1 // pred_check
      _
    $region27: #{tpu_custom_call.1} parent=1 // pred_check_branch
      %83 = sbr.rel (0) target = $region29
    $region28: #{tpu_custom_call.1} parent=1 // pred_region
      %85 = dma.done [#allocation5], 1024
    $region29: #{tpu_custom_call.1} parent=1 // pred_fallthru
      _
    // Predicated region
    $region30: #{tpu_custom_call.1} parent=1 // pred_check
      _
    $region31: #{tpu_custom_call.1} parent=1 // pred_check_branch
      %87 = sbr.rel (0) target = $region33
    $region32: #{tpu_custom_call.1} parent=1 // pred_region
      %89 = dma.done [#allocation8], 128
    $region33: #{tpu_custom_call.1} parent=1 // pred_fallthru
      _
    // Predicated region
    $region34: #{tpu_custom_call.1} parent=1 // pred_check
      _
    $region35: #{tpu_custom_call.1} parent=1 // pred_check_branch
      %91 = sbr.rel (0) target = $region37
    $region36: #{tpu_custom_call.1} parent=1 // pred_region
      %93 = dma.done [#allocation8], 128
    $region37: #{tpu_custom_call.1} parent=1 // pred_fallthru
      _
    // Predicated region
    $region38: #{tpu_custom_call.1} parent=1 // pred_check
      _
    $region39: #{tpu_custom_call.1} parent=1 // pred_check_branch
      %95 = sbr.rel (0) target = $region41
    $region40: #{tpu_custom_call.1} parent=1 // pred_region
      %97 = dma.done [#allocation11], 8192
    $region41: #{tpu_custom_call.1} parent=1 // pred_fallthru
      _
    // Predicated region
    $region42: #{tpu_custom_call.1} parent=1 // pred_check
      _
    $region43: #{tpu_custom_call.1} parent=1 // pred_check_branch
      %99 = sbr.rel (0) target = $region45
    $region44: #{tpu_custom_call.1} parent=1 // pred_region
      %101 = dma.done [#allocation11], 8192
    $region45: #{tpu_custom_call.1} parent=1 // pred_fallthru
      _
    %p102 = scmp.eq.s32.totalorder 0, 0
    // Predicated region
    $region46: #{tpu_custom_call.1} parent=1 // pred_check
      %p103 = pneg %p102
    $region47: #{tpu_custom_call.1} parent=1 // pred_check_branch
      %105 = sbr.rel (%p103) target = $region49
    $region48: #{tpu_custom_call.1} parent=1 // pred_region
      %v106 = vld [vmem:[#allocation7] sm:$0xff]
      %107 = vst [vmem:[#allocation14] sm:$0xff] %v106
      %v108 = vld [vmem:[#allocation9] sm:$0xff]
      %109 = vst [vmem:[#allocation16] sm:$0xff] %v108
    $region49: #{tpu_custom_call.1} parent=1 // pred_fallthru
      _
    %v110 = vld [vmem:[#allocation4] sm:$0xff]
    %v111 = vld [vmem:[#allocation4 + $0x8] sm:$0xff]
    %v112 = vld [vmem:[#allocation4 + $0x10] sm:$0xff]
    %v113 = vld [vmem:[#allocation4 + $0x18] sm:$0xff]
    %v114 = vld [vmem:[#allocation4 + $0x20] sm:$0xff]
    %v115 = vld [vmem:[#allocation4 + $0x28] sm:$0xff]
    %v116 = vld [vmem:[#allocation4 + $0x30] sm:$0xff]
    %v117 = vld [vmem:[#allocation4 + $0x38] sm:$0xff]
    %v118 = vld [vmem:[#allocation10] sm:$0xff]
    %v119 = vld [vmem:[#allocation10 + $0x8] sm:$0xff]
    %v120 = vld [vmem:[#allocation10 + $0x10] sm:$0xff]
    %v121 = vld [vmem:[#allocation10 + $0x18] sm:$0xff]
    %v122 = vld [vmem:[#allocation10 + $0x20] sm:$0xff]
    %v123 = vld [vmem:[#allocation10 + $0x28] sm:$0xff]
    %v124 = vld [vmem:[#allocation10 + $0x30] sm:$0xff]
    %v125 = vld [vmem:[#allocation10 + $0x38] sm:$0xff]
    %v126 = vld [vmem:[#allocation10 + $0x40] sm:$0xff]
    %v127 = vld [vmem:[#allocation10 + $0x48] sm:$0xff]
    %v128 = vld [vmem:[#allocation10 + $0x50] sm:$0xff]
    %v129 = vld [vmem:[#allocation10 + $0x58] sm:$0xff]
    %v130 = vld [vmem:[#allocation10 + $0x60] sm:$0xff]
    %v131 = vld [vmem:[#allocation10 + $0x68] sm:$0xff]
    %v132 = vld [vmem:[#allocation10 + $0x70] sm:$0xff]
    %v133 = vld [vmem:[#allocation10 + $0x78] sm:$0xff]
    %v134 = vld [vmem:[#allocation10 + $0x80] sm:$0xff]
    %v135 = vld [vmem:[#allocation10 + $0x88] sm:$0xff]
    %v136 = vld [vmem:[#allocation10 + $0x90] sm:$0xff]
    %v137 = vld [vmem:[#allocation10 + $0x98] sm:$0xff]
    %v138 = vld [vmem:[#allocation10 + $0xa0] sm:$0xff]
    %v139 = vld [vmem:[#allocation10 + $0xa8] sm:$0xff]
    %v140 = vld [vmem:[#allocation10 + $0xb0] sm:$0xff]
    %v141 = vld [vmem:[#allocation10 + $0xb8] sm:$0xff]
    %v142 = vld [vmem:[#allocation10 + $0xc0] sm:$0xff]
    %v143 = vld [vmem:[#allocation10 + $0xc8] sm:$0xff]
    %v144 = vld [vmem:[#allocation10 + $0xd0] sm:$0xff]
    %v145 = vld [vmem:[#allocation10 + $0xd8] sm:$0xff]
    %v146 = vld [vmem:[#allocation10 + $0xe0] sm:$0xff]
    %v147 = vld [vmem:[#allocation10 + $0xe8] sm:$0xff]
    %v148 = vld [vmem:[#allocation10 + $0xf0] sm:$0xff]
    %v149 = vld [vmem:[#allocation10 + $0xf8] sm:$0xff]
    %v150 = vld [vmem:[#allocation10 + $0x100] sm:$0xff]
    %v151 = vld [vmem:[#allocation10 + $0x108] sm:$0xff]
    %v152 = vld [vmem:[#allocation10 + $0x110] sm:$0xff]
    %v153 = vld [vmem:[#allocation10 + $0x118] sm:$0xff]
    %v154 = vld [vmem:[#allocation10 + $0x120] sm:$0xff]
    %v155 = vld [vmem:[#allocation10 + $0x128] sm:$0xff]
    %v156 = vld [vmem:[#allocation10 + $0x130] sm:$0xff]
    %v157 = vld [vmem:[#allocation10 + $0x138] sm:$0xff]
    %v158 = vld [vmem:[#allocation10 + $0x140] sm:$0xff]
    %v159 = vld [vmem:[#allocation10 + $0x148] sm:$0xff]
    %v160 = vld [vmem:[#allocation10 + $0x150] sm:$0xff]
    %v161 = vld [vmem:[#allocation10 + $0x158] sm:$0xff]
    %v162 = vld [vmem:[#allocation10 + $0x160] sm:$0xff]
    %v163 = vld [vmem:[#allocation10 + $0x168] sm:$0xff]
    %v164 = vld [vmem:[#allocation10 + $0x170] sm:$0xff]
    %v165 = vld [vmem:[#allocation10 + $0x178] sm:$0xff]
    %v166 = vld [vmem:[#allocation10 + $0x180] sm:$0xff]
    %v167 = vld [vmem:[#allocation10 + $0x188] sm:$0xff]
    %v168 = vld [vmem:[#allocation10 + $0x190] sm:$0xff]
    %v169 = vld [vmem:[#allocation10 + $0x198] sm:$0xff]
    %v170 = vld [vmem:[#allocation10 + $0x1a0] sm:$0xff]
    %v171 = vld [vmem:[#allocation10 + $0x1a8] sm:$0xff]
    %v172 = vld [vmem:[#allocation10 + $0x1b0] sm:$0xff]
    %v173 = vld [vmem:[#allocation10 + $0x1b8] sm:$0xff]
    %v174 = vld [vmem:[#allocation10 + $0x1c0] sm:$0xff]
    %v175 = vld [vmem:[#allocation10 + $0x1c8] sm:$0xff]
    %v176 = vld [vmem:[#allocation10 + $0x1d0] sm:$0xff]
    %v177 = vld [vmem:[#allocation10 + $0x1d8] sm:$0xff]
    %v178 = vld [vmem:[#allocation10 + $0x1e0] sm:$0xff]
    %v179 = vld [vmem:[#allocation10 + $0x1e8] sm:$0xff]
    %v180 = vld [vmem:[#allocation10 + $0x1f0] sm:$0xff]
    %v181 = vld [vmem:[#allocation10 + $0x1f8] sm:$0xff]
    %v182 = vld [vmem:[%s5] sm:$0xf]
    %v184 = vperm.slane %v182, 0
    %v185 = vperm.slane %v182, 1
    %v186 = vperm.slane %v182, 2
    %v187 = vperm.slane %v182, 3
    %192 = vmatpush.msra.mxu0 %v178
    %193 = vmatpush.msra.mxu0 %v174
    %194 = vmatpush.msra.mxu0 %v170
    %195 = vmatpush.msra.mxu0 %v166
    %196 = vmatpush.msra.mxu0 %v162
    %197 = vmatpush.msra.mxu0 %v158
    %198 = vmatpush.msra.mxu0 %v154
    %199 = vmatpush.msra.mxu0 %v150
    %200 = vmatpush.msra.mxu0 %v146
    %201 = vmatpush.msra.mxu0 %v142
    %202 = vmatpush.msra.mxu0 %v138
    %203 = vmatpush.msra.mxu0 %v134
    %204 = vmatpush.msra.mxu0 %v130
    %205 = vmatpush.msra.mxu0 %v126
    %206 = vmatpush.msra.mxu0 %v122
    %207 = vmatpush.msra.mxu0 %v118
    %208 = vmatmul.f32.gmra.mxu0 %v110
    %v209 = vpop.f32.mrf.mxu0
    %v210 = vadd.f32 %v184, %v209
    %211 = vmatmul.f32.gmra.mxu0 %v111
    %v212 = vpop.f32.mrf.mxu0
    %v213 = vadd.f32 %v184, %v212
    %214 = vmatmul.f32.gmra.mxu0 %v112
    %v215 = vpop.f32.mrf.mxu0
    %v216 = vadd.f32 %v184, %v215
    %217 = vmatmul.f32.gmra.mxu0 %v113
    %v218 = vpop.f32.mrf.mxu0
    %v219 = vadd.f32 %v184, %v218
    %220 = vmatmul.f32.gmra.mxu0 %v114
    %v221 = vpop.f32.mrf.mxu0
    %v222 = vadd.f32 %v184, %v221
    %223 = vmatmul.f32.gmra.mxu0 %v115
    %v224 = vpop.f32.mrf.mxu0
    %v225 = vadd.f32 %v184, %v224
    %226 = vmatmul.f32.gmra.mxu0 %v116
    %v227 = vpop.f32.mrf.mxu0
    %v228 = vadd.f32 %v184, %v227
    %229 = vmatmul.f32.gmra.mxu0 %v117
    %v230 = vpop.f32.mrf.mxu0
    %v231 = vadd.f32 %v184, %v230
    %232 = vdwg.mxu0
    %233 = vmatpush.msra.mxu0 %v179
    %234 = vmatpush.msra.mxu0 %v175
    %235 = vmatpush.msra.mxu0 %v171
    %236 = vmatpush.msra.mxu0 %v167
    %237 = vmatpush.msra.mxu0 %v163
    %238 = vmatpush.msra.mxu0 %v159
    %239 = vmatpush.msra.mxu0 %v155
    %240 = vmatpush.msra.mxu0 %v151
    %241 = vmatpush.msra.mxu0 %v147
    %242 = vmatpush.msra.mxu0 %v143
    %243 = vmatpush.msra.mxu0 %v139
    %244 = vmatpush.msra.mxu0 %v135
    %245 = vmatpush.msra.mxu0 %v131
    %246 = vmatpush.msra.mxu0 %v127
    %247 = vmatpush.msra.mxu0 %v123
    %248 = vmatpush.msra.mxu0 %v119
    %249 = vmatmul.f32.gmra.mxu0 %v110
    %v250 = vpop.f32.mrf.mxu0
    %v251 = vadd.f32 %v185, %v250
    %252 = vmatmul.f32.gmra.mxu0 %v111
    %v253 = vpop.f32.mrf.mxu0
    %v254 = vadd.f32 %v185, %v253
    %255 = vmatmul.f32.gmra.mxu0 %v112
    %v256 = vpop.f32.mrf.mxu0
    %v257 = vadd.f32 %v185, %v256
    %258 = vmatmul.f32.gmra.mxu0 %v113
    %v259 = vpop.f32.mrf.mxu0
    %v260 = vadd.f32 %v185, %v259
    %261 = vmatmul.f32.gmra.mxu0 %v114
    %v262 = vpop.f32.mrf.mxu0
    %v263 = vadd.f32 %v185, %v262
    %264 = vmatmul.f32.gmra.mxu0 %v115
    %v265 = vpop.f32.mrf.mxu0
    %v266 = vadd.f32 %v185, %v265
    %267 = vmatmul.f32.gmra.mxu0 %v116
    %v268 = vpop.f32.mrf.mxu0
    %v269 = vadd.f32 %v185, %v268
    %270 = vmatmul.f32.gmra.mxu0 %v117
    %v271 = vpop.f32.mrf.mxu0
    %v272 = vadd.f32 %v185, %v271
    %273 = vdwg.mxu0
    %274 = vmatpush.msra.mxu0 %v180
    %275 = vmatpush.msra.mxu0 %v176
    %276 = vmatpush.msra.mxu0 %v172
    %277 = vmatpush.msra.mxu0 %v168
    %278 = vmatpush.msra.mxu0 %v164
    %279 = vmatpush.msra.mxu0 %v160
    %280 = vmatpush.msra.mxu0 %v156
    %281 = vmatpush.msra.mxu0 %v152
    %282 = vmatpush.msra.mxu0 %v148
    %283 = vmatpush.msra.mxu0 %v144
    %284 = vmatpush.msra.mxu0 %v140
    %285 = vmatpush.msra.mxu0 %v136
    %286 = vmatpush.msra.mxu0 %v132
    %287 = vmatpush.msra.mxu0 %v128
    %288 = vmatpush.msra.mxu0 %v124
    %289 = vmatpush.msra.mxu0 %v120
    %290 = vmatmul.f32.gmra.mxu0 %v110
    %v291 = vpop.f32.mrf.mxu0
    %v292 = vadd.f32 %v186, %v291
    %293 = vmatmul.f32.gmra.mxu0 %v111
    %v294 = vpop.f32.mrf.mxu0
    %v295 = vadd.f32 %v186, %v294
    %296 = vmatmul.f32.gmra.mxu0 %v112
    %v297 = vpop.f32.mrf.mxu0
    %v298 = vadd.f32 %v186, %v297
    %299 = vmatmul.f32.gmra.mxu0 %v113
    %v300 = vpop.f32.mrf.mxu0
    %v301 = vadd.f32 %v186, %v300
    %302 = vmatmul.f32.gmra.mxu0 %v114
    %v303 = vpop.f32.mrf.mxu0
    %v304 = vadd.f32 %v186, %v303
    %305 = vmatmul.f32.gmra.mxu0 %v115
    %v306 = vpop.f32.mrf.mxu0
    %v307 = vadd.f32 %v186, %v306
    %308 = vmatmul.f32.gmra.mxu0 %v116
    %v309 = vpop.f32.mrf.mxu0
    %v310 = vadd.f32 %v186, %v309
    %311 = vmatmul.f32.gmra.mxu0 %v117
    %v312 = vpop.f32.mrf.mxu0
    %v313 = vadd.f32 %v186, %v312
    %314 = vdwg.mxu0
    %315 = vmatpush.msra.mxu0 %v181
    %316 = vmatpush.msra.mxu0 %v177
    %317 = vmatpush.msra.mxu0 %v173
    %318 = vmatpush.msra.mxu0 %v169
    %319 = vmatpush.msra.mxu0 %v165
    %320 = vmatpush.msra.mxu0 %v161
    %321 = vmatpush.msra.mxu0 %v157
    %322 = vmatpush.msra.mxu0 %v153
    %323 = vmatpush.msra.mxu0 %v149
    %324 = vmatpush.msra.mxu0 %v145
    %325 = vmatpush.msra.mxu0 %v141
    %326 = vmatpush.msra.mxu0 %v137
    %327 = vmatpush.msra.mxu0 %v133
    %328 = vmatpush.msra.mxu0 %v129
    %329 = vmatpush.msra.mxu0 %v125
    %330 = vmatpush.msra.mxu0 %v121
    %331 = vmatmul.f32.gmra.mxu0 %v110
    %v332 = vpop.f32.mrf.mxu0
    %v333 = vadd.f32 %v187, %v332
    %334 = vmatmul.f32.gmra.mxu0 %v111
    %v335 = vpop.f32.mrf.mxu0
    %v336 = vadd.f32 %v187, %v335
    %337 = vmatmul.f32.gmra.mxu0 %v112
    %v338 = vpop.f32.mrf.mxu0
    %v339 = vadd.f32 %v187, %v338
    %340 = vmatmul.f32.gmra.mxu0 %v113
    %v341 = vpop.f32.mrf.mxu0
    %v342 = vadd.f32 %v187, %v341
    %343 = vmatmul.f32.gmra.mxu0 %v114
    %v344 = vpop.f32.mrf.mxu0
    %v345 = vadd.f32 %v187, %v344
    %346 = vmatmul.f32.gmra.mxu0 %v115
    %v347 = vpop.f32.mrf.mxu0
    %v348 = vadd.f32 %v187, %v347
    %349 = vmatmul.f32.gmra.mxu0 %v116
    %v350 = vpop.f32.mrf.mxu0
    %v351 = vadd.f32 %v187, %v350
    %352 = vmatmul.f32.gmra.mxu0 %v117
    %v353 = vpop.f32.mrf.mxu0
    %v354 = vadd.f32 %v187, %v353
    %355 = vdwg.mxu0
    %356 = vst [vmem:[#allocation2] sm:$0xff] %v210
    %357 = vst [vmem:[#allocation2 + $0x8] sm:$0xff] %v251
    %358 = vst [vmem:[#allocation2 + $0x10] sm:$0xff] %v292
    %359 = vst [vmem:[#allocation2 + $0x18] sm:$0xff] %v333
    %360 = vst [vmem:[#allocation2 + $0x20] sm:$0xff] %v213
    %361 = vst [vmem:[#allocation2 + $0x28] sm:$0xff] %v254
    %362 = vst [vmem:[#allocation2 + $0x30] sm:$0xff] %v295
    %363 = vst [vmem:[#allocation2 + $0x38] sm:$0xff] %v336
    %364 = vst [vmem:[#allocation2 + $0x40] sm:$0xff] %v216
    %365 = vst [vmem:[#allocation2 + $0x48] sm:$0xff] %v257
    %366 = vst [vmem:[#allocation2 + $0x50] sm:$0xff] %v298
    %367 = vst [vmem:[#allocation2 + $0x58] sm:$0xff] %v339
    %368 = vst [vmem:[#allocation2 + $0x60] sm:$0xff] %v219
    %369 = vst [vmem:[#allocation2 + $0x68] sm:$0xff] %v260
    %370 = vst [vmem:[#allocation2 + $0x70] sm:$0xff] %v301
    %371 = vst [vmem:[#allocation2 + $0x78] sm:$0xff] %v342
    %372 = vst [vmem:[#allocation2 + $0x80] sm:$0xff] %v222
    %373 = vst [vmem:[#allocation2 + $0x88] sm:$0xff] %v263
    %374 = vst [vmem:[#allocation2 + $0x90] sm:$0xff] %v304
    %375 = vst [vmem:[#allocation2 + $0x98] sm:$0xff] %v345
    %376 = vst [vmem:[#allocation2 + $0xa0] sm:$0xff] %v225
    %377 = vst [vmem:[#allocation2 + $0xa8] sm:$0xff] %v266
    %378 = vst [vmem:[#allocation2 + $0xb0] sm:$0xff] %v307
    %379 = vst [vmem:[#allocation2 + $0xb8] sm:$0xff] %v348
    %380 = vst [vmem:[#allocation2 + $0xc0] sm:$0xff] %v228
    %381 = vst [vmem:[#allocation2 + $0xc8] sm:$0xff] %v269
    %382 = vst [vmem:[#allocation2 + $0xd0] sm:$0xff] %v310
    %383 = vst [vmem:[#allocation2 + $0xd8] sm:$0xff] %v351
    %384 = vst [vmem:[#allocation2 + $0xe0] sm:$0xff] %v231
    %385 = vst [vmem:[#allocation2 + $0xe8] sm:$0xff] %v272
    %386 = vst [vmem:[#allocation2 + $0xf0] sm:$0xff] %v313
    %387 = vst [vmem:[#allocation2 + $0xf8] sm:$0xff] %v354
    %v388 = vld [vmem:[#allocation14] sm:$0xff]
    %v389 = vld [vmem:[#allocation16] sm:$0xff]
    %v390 = vld [vmem:[#allocation2] sm:$0xff]
    %v391 = vld [vmem:[#allocation2 + $0x8] sm:$0xff]
    %v392 = vld [vmem:[#allocation2 + $0x10] sm:$0xff]
    %v393 = vld [vmem:[#allocation2 + $0x18] sm:$0xff]
    %v394 = vld [vmem:[#allocation12] sm:$0xff]
    %v395 = vld [vmem:[#allocation12 + $0x8] sm:$0xff]
    %v396 = vld [vmem:[#allocation12 + $0x10] sm:$0xff]
    %v397 = vld [vmem:[#allocation12 + $0x18] sm:$0xff]
    %v398 = vld [vmem:[#allocation12 + $0x20] sm:$0xff]
    %v399 = vld [vmem:[#allocation12 + $0x28] sm:$0xff]
    %v400 = vld [vmem:[#allocation12 + $0x30] sm:$0xff]
    %v401 = vld [vmem:[#allocation12 + $0x38] sm:$0xff]
    %v402 = vld [vmem:[#allocation12 + $0x40] sm:$0xff]
    %v403 = vld [vmem:[#allocation12 + $0x48] sm:$0xff]
    %v404 = vld [vmem:[#allocation12 + $0x50] sm:$0xff]
    %v405 = vld [vmem:[#allocation12 + $0x58] sm:$0xff]
    %v406 = vld [vmem:[#allocation12 + $0x60] sm:$0xff]
    %v407 = vld [vmem:[#allocation12 + $0x68] sm:$0xff]
    %v408 = vld [vmem:[#allocation12 + $0x70] sm:$0xff]
    %v409 = vld [vmem:[#allocation12 + $0x78] sm:$0xff]
    %v410 = vld [vmem:[#allocation12 + $0x80] sm:$0xff]
    %v411 = vld [vmem:[#allocation12 + $0x88] sm:$0xff]
    %v412 = vld [vmem:[#allocation12 + $0x90] sm:$0xff]
    %v413 = vld [vmem:[#allocation12 + $0x98] sm:$0xff]
    %v414 = vld [vmem:[#allocation12 + $0xa0] sm:$0xff]
    %v415 = vld [vmem:[#allocation12 + $0xa8] sm:$0xff]
    %v416 = vld [vmem:[#allocation12 + $0xb0] sm:$0xff]
    %v417 = vld [vmem:[#allocation12 + $0xb8] sm:$0xff]
    %v418 = vld [vmem:[#allocation12 + $0xc0] sm:$0xff]
    %v419 = vld [vmem:[#allocation12 + $0xc8] sm:$0xff]
    %v420 = vld [vmem:[#allocation12 + $0xd0] sm:$0xff]
    %v421 = vld [vmem:[#allocation12 + $0xd8] sm:$0xff]
    %v422 = vld [vmem:[#allocation12 + $0xe0] sm:$0xff]
    %v423 = vld [vmem:[#allocation12 + $0xe8] sm:$0xff]
    %v424 = vld [vmem:[#allocation12 + $0xf0] sm:$0xff]
    %v425 = vld [vmem:[#allocation12 + $0xf8] sm:$0xff]
    %v426 = vld [vmem:[#allocation12 + $0x100] sm:$0xff]
    %v427 = vld [vmem:[#allocation12 + $0x108] sm:$0xff]
    %v428 = vld [vmem:[#allocation12 + $0x110] sm:$0xff]
    %v429 = vld [vmem:[#allocation12 + $0x118] sm:$0xff]
    %v430 = vld [vmem:[#allocation12 + $0x120] sm:$0xff]
    %v431 = vld [vmem:[#allocation12 + $0x128] sm:$0xff]
    %v432 = vld [vmem:[#allocation12 + $0x130] sm:$0xff]
    %v433 = vld [vmem:[#allocation12 + $0x138] sm:$0xff]
    %v434 = vld [vmem:[#allocation12 + $0x140] sm:$0xff]
    %v435 = vld [vmem:[#allocation12 + $0x148] sm:$0xff]
    %v436 = vld [vmem:[#allocation12 + $0x150] sm:$0xff]
    %v437 = vld [vmem:[#allocation12 + $0x158] sm:$0xff]
    %v438 = vld [vmem:[#allocation12 + $0x160] sm:$0xff]
    %v439 = vld [vmem:[#allocation12 + $0x168] sm:$0xff]
    %v440 = vld [vmem:[#allocation12 + $0x170] sm:$0xff]
    %v441 = vld [vmem:[#allocation12 + $0x178] sm:$0xff]
    %v442 = vld [vmem:[#allocation12 + $0x180] sm:$0xff]
    %v443 = vld [vmem:[#allocation12 + $0x188] sm:$0xff]
    %v444 = vld [vmem:[#allocation12 + $0x190] sm:$0xff]
    %v445 = vld [vmem:[#allocation12 + $0x198] sm:$0xff]
    %v446 = vld [vmem:[#allocation12 + $0x1a0] sm:$0xff]
    %v447 = vld [vmem:[#allocation12 + $0x1a8] sm:$0xff]
    %v448 = vld [vmem:[#allocation12 + $0x1b0] sm:$0xff]
    %v449 = vld [vmem:[#allocation12 + $0x1b8] sm:$0xff]
    %v450 = vld [vmem:[#allocation12 + $0x1c0] sm:$0xff]
    %v451 = vld [vmem:[#allocation12 + $0x1c8] sm:$0xff]
    %v452 = vld [vmem:[#allocation12 + $0x1d0] sm:$0xff]
    %v453 = vld [vmem:[#allocation12 + $0x1d8] sm:$0xff]
    %v454 = vld [vmem:[#allocation12 + $0x1e0] sm:$0xff]
    %v455 = vld [vmem:[#allocation12 + $0x1e8] sm:$0xff]
    %v456 = vld [vmem:[#allocation12 + $0x1f0] sm:$0xff]
    %v457 = vld [vmem:[#allocation12 + $0x1f8] sm:$0xff]
    %458 = vmatpush.msra.mxu0 %v454
    %459 = vmatpush.msra.mxu0 %v450
    %460 = vmatpush.msra.mxu0 %v446
    %461 = vmatpush.msra.mxu0 %v442
    %462 = vmatpush.msra.mxu0 %v438
    %463 = vmatpush.msra.mxu0 %v434
    %464 = vmatpush.msra.mxu0 %v430
    %465 = vmatpush.msra.mxu0 %v426
    %466 = vmatpush.msra.mxu0 %v422
    %467 = vmatpush.msra.mxu0 %v418
    %468 = vmatpush.msra.mxu0 %v414
    %469 = vmatpush.msra.mxu0 %v410
    %470 = vmatpush.msra.mxu0 %v406
    %471 = vmatpush.msra.mxu0 %v402
    %472 = vmatpush.msra.mxu0 %v398
    %473 = vmatpush.msra.mxu0 %v394
    %474 = vmatmul.f32.gmra.mxu0 %v388
    %v475 = vpop.f32.mrf.mxu0
    %v476 = vadd.f32 0.0, %v475
    %477 = vdwg.mxu0
    %478 = vmatpush.msra.mxu0 %v455
    %479 = vmatpush.msra.mxu0 %v451
    %480 = vmatpush.msra.mxu0 %v447
    %481 = vmatpush.msra.mxu0 %v443
    %482 = vmatpush.msra.mxu0 %v439
    %483 = vmatpush.msra.mxu0 %v435
    %484 = vmatpush.msra.mxu0 %v431
    %485 = vmatpush.msra.mxu0 %v427
    %486 = vmatpush.msra.mxu0 %v423
    %487 = vmatpush.msra.mxu0 %v419
    %488 = vmatpush.msra.mxu0 %v415
    %489 = vmatpush.msra.mxu0 %v411
    %490 = vmatpush.msra.mxu0 %v407
    %491 = vmatpush.msra.mxu0 %v403
    %492 = vmatpush.msra.mxu0 %v399
    %493 = vmatpush.msra.mxu0 %v395
    %494 = vmatmul.f32.gmra.mxu0 %v388
    %v495 = vpop.f32.mrf.mxu0
    %v496 = vadd.f32 0.0, %v495
    %497 = vdwg.mxu0
    %498 = vmatpush.msra.mxu0 %v456
    %499 = vmatpush.msra.mxu0 %v452
    %500 = vmatpush.msra.mxu0 %v448
    %501 = vmatpush.msra.mxu0 %v444
    %502 = vmatpush.msra.mxu0 %v440
    %503 = vmatpush.msra.mxu0 %v436
    %504 = vmatpush.msra.mxu0 %v432
    %505 = vmatpush.msra.mxu0 %v428
    %506 = vmatpush.msra.mxu0 %v424
    %507 = vmatpush.msra.mxu0 %v420
    %508 = vmatpush.msra.mxu0 %v416
    %509 = vmatpush.msra.mxu0 %v412
    %510 = vmatpush.msra.mxu0 %v408
    %511 = vmatpush.msra.mxu0 %v404
    %512 = vmatpush.msra.mxu0 %v400
    %513 = vmatpush.msra.mxu0 %v396
    %514 = vmatmul.f32.gmra.mxu0 %v388
    %v515 = vpop.f32.mrf.mxu0
    %v516 = vadd.f32 0.0, %v515
    %517 = vdwg.mxu0
    %518 = vmatpush.msra.mxu0 %v457
    %519 = vmatpush.msra.mxu0 %v453
    %520 = vmatpush.msra.mxu0 %v449
    %521 = vmatpush.msra.mxu0 %v445
    %522 = vmatpush.msra.mxu0 %v441
    %523 = vmatpush.msra.mxu0 %v437
    %524 = vmatpush.msra.mxu0 %v433
    %525 = vmatpush.msra.mxu0 %v429
    %526 = vmatpush.msra.mxu0 %v425
    %527 = vmatpush.msra.mxu0 %v421
    %528 = vmatpush.msra.mxu0 %v417
    %529 = vmatpush.msra.mxu0 %v413
    %530 = vmatpush.msra.mxu0 %v409
    %531 = vmatpush.msra.mxu0 %v405
    %532 = vmatpush.msra.mxu0 %v401
    %533 = vmatpush.msra.mxu0 %v397
    %534 = vmatmul.f32.gmra.mxu0 %v388
    %v535 = vpop.f32.mrf.mxu0
    %v536 = vadd.f32 0.0, %v535
    %537 = vdwg.mxu0
    %v538 = vadd.f32 %v390, %v476
    %v539 = vadd.f32 %v391, %v496
    %v540 = vadd.f32 %v392, %v516
    %v541 = vadd.f32 %v393, %v536
    %v542 = vxor.u32 %v538, 2147483648
    %v543 = vmul.f32 %v542, 1.442695
    %v544 = vpow.pop %v543
    %v545 = vadd.f32 %v544, 1.0
    %v546 = vrcp.pop %v545
    %v547 = vmul.f32 %v545, %v546
    %v548 = vsub.f32 1.0, %v547
    %v549 = vmul.f32 %v546, %v548
    %v550 = vadd.f32 %v546, %v549
    %vm551 = vweird.f32 %v545
    %vm552 = vweird.f32 %v546
    %vm553 = vmor %vm551, %vm552
    %v554 = vsel %vm553, %v546, %v550
    %v555 = vand.u32 2147483647, %v545
    %vm556 = vcmp.eq.f32.partialorder %v555, 8.507059e+37
    %v557 = vand.u32 %v545, 2147483648
    %v558 = vor.u32 1.1754944e-38, %v557
    %v559 = vsel %vm556, %v558, %v554
    %v560 = vmul.f32 1.0, %v559
    %v561 = vxor.u32 %v539, 2147483648
    %v562 = vmul.f32 %v561, 1.442695
    %v563 = vpow.pop %v562
    %v564 = vadd.f32 %v563, 1.0
    %v565 = vrcp.pop %v564
    %v566 = vmul.f32 %v564, %v565
    %v567 = vsub.f32 1.0, %v566
    %v568 = vmul.f32 %v565, %v567
    %v569 = vadd.f32 %v565, %v568
    %vm570 = vweird.f32 %v564
    %vm571 = vweird.f32 %v565
    %vm572 = vmor %vm570, %vm571
    %v573 = vsel %vm572, %v565, %v569
    %v574 = vand.u32 2147483647, %v564
    %vm575 = vcmp.eq.f32.partialorder %v574, 8.507059e+37
    %v576 = vand.u32 %v564, 2147483648
    %v577 = vor.u32 1.1754944e-38, %v576
    %v578 = vsel %vm575, %v577, %v573
    %v579 = vmul.f32 1.0, %v578
    %v580 = vtanh.pop %v540
    %v581 = vxor.u32 %v541, 2147483648
    %v582 = vmul.f32 %v581, 1.442695
    %v583 = vpow.pop %v582
    %v584 = vadd.f32 %v583, 1.0
    %v585 = vrcp.pop %v584
    %v586 = vmul.f32 %v584, %v585
    %v587 = vsub.f32 1.0, %v586
    %v588 = vmul.f32 %v585, %v587
    %v589 = vadd.f32 %v585, %v588
    %vm590 = vweird.f32 %v584
    %vm591 = vweird.f32 %v585
    %vm592 = vmor %vm590, %vm591
    %v593 = vsel %vm592, %v585, %v589
    %v594 = vand.u32 2147483647, %v584
    %vm595 = vcmp.eq.f32.partialorder %v594, 8.507059e+37
    %v596 = vand.u32 %v584, 2147483648
    %v597 = vor.u32 1.1754944e-38, %v596
    %v598 = vsel %vm595, %v597, %v593
    %v599 = vmul.f32 1.0, %v598
    %v600 = vmul.f32 %v579, %v389
    %v601 = vmul.f32 %v560, %v580
    %v602 = vadd.f32 %v600, %v601
    %v603 = vtanh.pop %v602
    %v604 = vmul.f32 %v599, %v603
    %605 = vst [vmem:[#allocation3] sm:$0xff] %v604
    %s606 = scalar_lea.vmem [#allocation2], 32
    %v607 = vld [vmem:[%s606] sm:$0xff]
    %v608 = vld [vmem:[%s606 + $0x8] sm:$0xff]
    %v609 = vld [vmem:[%s606 + $0x10] sm:$0xff]
    %v610 = vld [vmem:[%s606 + $0x18] sm:$0xff]
    %v611 = vld [vmem:[#allocation12] sm:$0xff]
    %v612 = vld [vmem:[#allocation12 + $0x8] sm:$0xff]
    %v613 = vld [vmem:[#allocation12 + $0x10] sm:$0xff]
    %v614 = vld [vmem:[#allocation12 + $0x18] sm:$0xff]
    %v615 = vld [vmem:[#allocation12 + $0x20] sm:$0xff]
    %v616 = vld [vmem:[#allocation12 + $0x28] sm:$0xff]
    %v617 = vld [vmem:[#allocation12 + $0x30] sm:$0xff]
    %v618 = vld [vmem:[#allocation12 + $0x38] sm:$0xff]
    %v619 = vld [vmem:[#allocation12 + $0x40] sm:$0xff]
    %v620 = vld [vmem:[#allocation12 + $0x48] sm:$0xff]
    %v621 = vld [vmem:[#allocation12 + $0x50] sm:$0xff]
    %v622 = vld [vmem:[#allocation12 + $0x58] sm:$0xff]
    %v623 = vld [vmem:[#allocation12 + $0x60] sm:$0xff]
    %v624 = vld [vmem:[#allocation12 + $0x68] sm:$0xff]
    %v625 = vld [vmem:[#allocation12 + $0x70] sm:$0xff]
    %v626 = vld [vmem:[#allocation12 + $0x78] sm:$0xff]
    %v627 = vld [vmem:[#allocation12 + $0x80] sm:$0xff]
    %v628 = vld [vmem:[#allocation12 + $0x88] sm:$0xff]
    %v629 = vld [vmem:[#allocation12 + $0x90] sm:$0xff]
    %v630 = vld [vmem:[#allocation12 + $0x98] sm:$0xff]
    %v631 = vld [vmem:[#allocation12 + $0xa0] sm:$0xff]
    %v632 = vld [vmem:[#allocation12 + $0xa8] sm:$0xff]
    %v633 = vld [vmem:[#allocation12 + $0xb0] sm:$0xff]
    %v634 = vld [vmem:[#allocation12 + $0xb8] sm:$0xff]
    %v635 = vld [vmem:[#allocation12 + $0xc0] sm:$0xff]
    %v636 = vld [vmem:[#allocation12 + $0xc8] sm:$0xff]
    %v637 = vld [vmem:[#allocation12 + $0xd0] sm:$0xff]
    %v638 = vld [vmem:[#allocation12 + $0xd8] sm:$0xff]
    %v639 = vld [vmem:[#allocation12 + $0xe0] sm:$0xff]
    %v640 = vld [vmem:[#allocation12 + $0xe8] sm:$0xff]
    %v641 = vld [vmem:[#allocation12 + $0xf0] sm:$0xff]
    %v642 = vld [vmem:[#allocation12 + $0xf8] sm:$0xff]
    %v643 = vld [vmem:[#allocation12 + $0x100] sm:$0xff]
    %v644 = vld [vmem:[#allocation12 + $0x108] sm:$0xff]
    %v645 = vld [vmem:[#allocation12 + $0x110] sm:$0xff]
    %v646 = vld [vmem:[#allocation12 + $0x118] sm:$0xff]
    %v647 = vld [vmem:[#allocation12 + $0x120] sm:$0xff]
    %v648 = vld [vmem:[#allocation12 + $0x128] sm:$0xff]
    %v649 = vld [vmem:[#allocation12 + $0x130] sm:$0xff]
    %v650 = vld [vmem:[#allocation12 + $0x138] sm:$0xff]
    %v651 = vld [vmem:[#allocation12 + $0x140] sm:$0xff]
    %v652 = vld [vmem:[#allocation12 + $0x148] sm:$0xff]
    %v653 = vld [vmem:[#allocation12 + $0x150] sm:$0xff]
    %v654 = vld [vmem:[#allocation12 + $0x158] sm:$0xff]
    %v655 = vld [vmem:[#allocation12 + $0x160] sm:$0xff]
    %v656 = vld [vmem:[#allocation12 + $0x168] sm:$0xff]
    %v657 = vld [vmem:[#allocation12 + $0x170] sm:$0xff]
    %v658 = vld [vmem:[#allocation12 + $0x178] sm:$0xff]
    %v659 = vld [vmem:[#allocation12 + $0x180] sm:$0xff]
    %v660 = vld [vmem:[#allocation12 + $0x188] sm:$0xff]
    %v661 = vld [vmem:[#allocation12 + $0x190] sm:$0xff]
    %v662 = vld [vmem:[#allocation12 + $0x198] sm:$0xff]
    %v663 = vld [vmem:[#allocation12 + $0x1a0] sm:$0xff]
    %v664 = vld [vmem:[#allocation12 + $0x1a8] sm:$0xff]
    %v665 = vld [vmem:[#allocation12 + $0x1b0] sm:$0xff]
    %v666 = vld [vmem:[#allocation12 + $0x1b8] sm:$0xff]
    %v667 = vld [vmem:[#allocation12 + $0x1c0] sm:$0xff]
    %v668 = vld [vmem:[#allocation12 + $0x1c8] sm:$0xff]
    %v669 = vld [vmem:[#allocation12 + $0x1d0] sm:$0xff]
    %v670 = vld [vmem:[#allocation12 + $0x1d8] sm:$0xff]
    %v671 = vld [vmem:[#allocation12 + $0x1e0] sm:$0xff]
    %v672 = vld [vmem:[#allocation12 + $0x1e8] sm:$0xff]
    %v673 = vld [vmem:[#allocation12 + $0x1f0] sm:$0xff]
    %v674 = vld [vmem:[#allocation12 + $0x1f8] sm:$0xff]
    %675 = vmatpush.msra.mxu0 %v671
    %676 = vmatpush.msra.mxu0 %v667
    %677 = vmatpush.msra.mxu0 %v663
    %678 = vmatpush.msra.mxu0 %v659
    %679 = vmatpush.msra.mxu0 %v655
    %680 = vmatpush.msra.mxu0 %v651
    %681 = vmatpush.msra.mxu0 %v647
    %682 = vmatpush.msra.mxu0 %v643
    %683 = vmatpush.msra.mxu0 %v639
    %684 = vmatpush.msra.mxu0 %v635
    %685 = vmatpush.msra.mxu0 %v631
    %686 = vmatpush.msra.mxu0 %v627
    %687 = vmatpush.msra.mxu0 %v623
    %688 = vmatpush.msra.mxu0 %v619
    %689 = vmatpush.msra.mxu0 %v615
    %690 = vmatpush.msra.mxu0 %v611
    %691 = vmatmul.f32.gmra.mxu0 %v604
    %v692 = vpop.f32.mrf.mxu0
    %v693 = vadd.f32 0.0, %v692
    %694 = vdwg.mxu0
    %695 = vmatpush.msra.mxu0 %v672
    %696 = vmatpush.msra.mxu0 %v668
    %697 = vmatpush.msra.mxu0 %v664
    %698 = vmatpush.msra.mxu0 %v660
    %699 = vmatpush.msra.mxu0 %v656
    %700 = vmatpush.msra.mxu0 %v652
    %701 = vmatpush.msra.mxu0 %v648
    %702 = vmatpush.msra.mxu0 %v644
    %703 = vmatpush.msra.mxu0 %v640
    %704 = vmatpush.msra.mxu0 %v636
    %705 = vmatpush.msra.mxu0 %v632
    %706 = vmatpush.msra.mxu0 %v628
    %707 = vmatpush.msra.mxu0 %v624
    %708 = vmatpush.msra.mxu0 %v620
    %709 = vmatpush.msra.mxu0 %v616
    %710 = vmatpush.msra.mxu0 %v612
    %711 = vmatmul.f32.gmra.mxu0 %v604
    %v712 = vpop.f32.mrf.mxu0
    %v713 = vadd.f32 0.0, %v712
    %714 = vdwg.mxu0
    %715 = vmatpush.msra.mxu0 %v673
    %716 = vmatpush.msra.mxu0 %v669
    %717 = vmatpush.msra.mxu0 %v665
    %718 = vmatpush.msra.mxu0 %v661
    %719 = vmatpush.msra.mxu0 %v657
    %720 = vmatpush.msra.mxu0 %v653
    %721 = vmatpush.msra.mxu0 %v649
    %722 = vmatpush.msra.mxu0 %v645
    %723 = vmatpush.msra.mxu0 %v641
    %724 = vmatpush.msra.mxu0 %v637
    %725 = vmatpush.msra.mxu0 %v633
    %726 = vmatpush.msra.mxu0 %v629
    %727 = vmatpush.msra.mxu0 %v625
    %728 = vmatpush.msra.mxu0 %v621
    %729 = vmatpush.msra.mxu0 %v617
    %730 = vmatpush.msra.mxu0 %v613
    %731 = vmatmul.f32.gmra.mxu0 %v604
    %v732 = vpop.f32.mrf.mxu0
    %v733 = vadd.f32 0.0, %v732
    %734 = vdwg.mxu0
    %735 = vmatpush.msra.mxu0 %v674
    %736 = vmatpush.msra.mxu0 %v670
    %737 = vmatpush.msra.mxu0 %v666
    %738 = vmatpush.msra.mxu0 %v662
    %739 = vmatpush.msra.mxu0 %v658
    %740 = vmatpush.msra.mxu0 %v654
    %741 = vmatpush.msra.mxu0 %v650
    %742 = vmatpush.msra.mxu0 %v646
    %743 = vmatpush.msra.mxu0 %v642
    %744 = vmatpush.msra.mxu0 %v638
    %745 = vmatpush.msra.mxu0 %v634
    %746 = vmatpush.msra.mxu0 %v630
    %747 = vmatpush.msra.mxu0 %v626
    %748 = vmatpush.msra.mxu0 %v622
    %749 = vmatpush.msra.mxu0 %v618
    %750 = vmatpush.msra.mxu0 %v614
    %751 = vmatmul.f32.gmra.mxu0 %v604
    %v752 = vpop.f32.mrf.mxu0
    %v753 = vadd.f32 0.0, %v752
    %754 = vdwg.mxu0
    %v755 = vadd.f32 %v607, %v693
    %v756 = vadd.f32 %v608, %v713
    %v757 = vadd.f32 %v609, %v733
    %v758 = vadd.f32 %v610, %v753
    %v759 = vxor.u32 %v755, 2147483648
    %v760 = vmul.f32 %v759, 1.442695
    %v761 = vpow.pop %v760
    %v762 = vadd.f32 %v761, 1.0
    %v763 = vrcp.pop %v762
    %v764 = vmul.f32 %v762, %v763
    %v765 = vsub.f32 1.0, %v764
    %v766 = vmul.f32 %v763, %v765
    %v767 = vadd.f32 %v763, %v766
    %vm768 = vweird.f32 %v762
    %vm769 = vweird.f32 %v763
    %vm770 = vmor %vm768, %vm769
    %v771 = vsel %vm770, %v763, %v767
    %v772 = vand.u32 2147483647, %v762
    %vm773 = vcmp.eq.f32.partialorder %v772, 8.507059e+37
    %v774 = vand.u32 %v762, 2147483648
    %v775 = vor.u32 1.1754944e-38, %v774
    %v776 = vsel %vm773, %v775, %v771
    %v777 = vmul.f32 1.0, %v776
    %v778 = vxor.u32 %v756, 2147483648
    %v779 = vmul.f32 %v778, 1.442695
    %v780 = vpow.pop %v779
    %v781 = vadd.f32 %v780, 1.0
    %v782 = vrcp.pop %v781
    %v783 = vmul.f32 %v781, %v782
    %v784 = vsub.f32 1.0, %v783
    %v785 = vmul.f32 %v782, %v784
    %v786 = vadd.f32 %v782, %v785
    %vm787 = vweird.f32 %v781
    %vm788 = vweird.f32 %v782
    %vm789 = vmor %vm787, %vm788
    %v790 = vsel %vm789, %v782, %v786
    %v791 = vand.u32 2147483647, %v781
    %vm792 = vcmp.eq.f32.partialorder %v791, 8.507059e+37
    %v793 = vand.u32 %v781, 2147483648
    %v794 = vor.u32 1.1754944e-38, %v793
    %v795 = vsel %vm792, %v794, %v790
    %v796 = vmul.f32 1.0, %v795
    %v797 = vtanh.pop %v757
    %v798 = vxor.u32 %v758, 2147483648
    %v799 = vmul.f32 %v798, 1.442695
    %v800 = vpow.pop %v799
    %v801 = vadd.f32 %v800, 1.0
    %v802 = vrcp.pop %v801
    %v803 = vmul.f32 %v801, %v802
    %v804 = vsub.f32 1.0, %v803
    %v805 = vmul.f32 %v802, %v804
    %v806 = vadd.f32 %v802, %v805
    %vm807 = vweird.f32 %v801
    %vm808 = vweird.f32 %v802
    %vm809 = vmor %vm807, %vm808
    %v810 = vsel %vm809, %v802, %v806
    %v811 = vand.u32 2147483647, %v801
    %vm812 = vcmp.eq.f32.partialorder %v811, 8.507059e+37
    %v813 = vand.u32 %v801, 2147483648
    %v814 = vor.u32 1.1754944e-38, %v813
    %v815 = vsel %vm812, %v814, %v810
    %v816 = vmul.f32 1.0, %v815
    %v817 = vmul.f32 %v796, %v602
    %v818 = vmul.f32 %v777, %v797
    %v819 = vadd.f32 %v817, %v818
    %v820 = vtanh.pop %v819
    %v821 = vmul.f32 %v816, %v820
    %s822 = scalar_lea.vmem [#allocation3], 8
    %823 = vst [vmem:[%s822] sm:$0xff] %v821
    %s824 = scalar_lea.vmem [#allocation2], 64
    %v825 = vld [vmem:[%s824] sm:$0xff]
    %v826 = vld [vmem:[%s824 + $0x8] sm:$0xff]
    %v827 = vld [vmem:[%s824 + $0x10] sm:$0xff]
    %v828 = vld [vmem:[%s824 + $0x18] sm:$0xff]
    %v829 = vld [vmem:[#allocation12] sm:$0xff]
    %v830 = vld [vmem:[#allocation12 + $0x8] sm:$0xff]
    %v831 = vld [vmem:[#allocation12 + $0x10] sm:$0xff]
    %v832 = vld [vmem:[#allocation12 + $0x18] sm:$0xff]
    %v833 = vld [vmem:[#allocation12 + $0x20] sm:$0xff]
    %v834 = vld [vmem:[#allocation12 + $0x28] sm:$0xff]
    %v835 = vld [vmem:[#allocation12 + $0x30] sm:$0xff]
    %v836 = vld [vmem:[#allocation12 + $0x38] sm:$0xff]
    %v837 = vld [vmem:[#allocation12 + $0x40] sm:$0xff]
    %v838 = vld [vmem:[#allocation12 + $0x48] sm:$0xff]
    %v839 = vld [vmem:[#allocation12 + $0x50] sm:$0xff]
    %v840 = vld [vmem:[#allocation12 + $0x58] sm:$0xff]
    %v841 = vld [vmem:[#allocation12 + $0x60] sm:$0xff]
    %v842 = vld [vmem:[#allocation12 + $0x68] sm:$0xff]
    %v843 = vld [vmem:[#allocation12 + $0x70] sm:$0xff]
    %v844 = vld [vmem:[#allocation12 + $0x78] sm:$0xff]
    %v845 = vld [vmem:[#allocation12 + $0x80] sm:$0xff]
    %v846 = vld [vmem:[#allocation12 + $0x88] sm:$0xff]
    %v847 = vld [vmem:[#allocation12 + $0x90] sm:$0xff]
    %v848 = vld [vmem:[#allocation12 + $0x98] sm:$0xff]
    %v849 = vld [vmem:[#allocation12 + $0xa0] sm:$0xff]
    %v850 = vld [vmem:[#allocation12 + $0xa8] sm:$0xff]
    %v851 = vld [vmem:[#allocation12 + $0xb0] sm:$0xff]
    %v852 = vld [vmem:[#allocation12 + $0xb8] sm:$0xff]
    %v853 = vld [vmem:[#allocation12 + $0xc0] sm:$0xff]
    %v854 = vld [vmem:[#allocation12 + $0xc8] sm:$0xff]
    %v855 = vld [vmem:[#allocation12 + $0xd0] sm:$0xff]
    %v856 = vld [vmem:[#allocation12 + $0xd8] sm:$0xff]
    %v857 = vld [vmem:[#allocation12 + $0xe0] sm:$0xff]
    %v858 = vld [vmem:[#allocation12 + $0xe8] sm:$0xff]
    %v859 = vld [vmem:[#allocation12 + $0xf0] sm:$0xff]
    %v860 = vld [vmem:[#allocation12 + $0xf8] sm:$0xff]
    %v861 = vld [vmem:[#allocation12 + $0x100] sm:$0xff]
    %v862 = vld [vmem:[#allocation12 + $0x108] sm:$0xff]
    %v863 = vld [vmem:[#allocation12 + $0x110] sm:$0xff]
    %v864 = vld [vmem:[#allocation12 + $0x118] sm:$0xff]
    %v865 = vld [vmem:[#allocation12 + $0x120] sm:$0xff]
    %v866 = vld [vmem:[#allocation12 + $0x128] sm:$0xff]
    %v867 = vld [vmem:[#allocation12 + $0x130] sm:$0xff]
    %v868 = vld [vmem:[#allocation12 + $0x138] sm:$0xff]
    %v869 = vld [vmem:[#allocation12 + $0x140] sm:$0xff]
    %v870 = vld [vmem:[#allocation12 + $0x148] sm:$0xff]
    %v871 = vld [vmem:[#allocation12 + $0x150] sm:$0xff]
    %v872 = vld [vmem:[#allocation12 + $0x158] sm:$0xff]
    %v873 = vld [vmem:[#allocation12 + $0x160] sm:$0xff]
    %v874 = vld [vmem:[#allocation12 + $0x168] sm:$0xff]
    %v875 = vld [vmem:[#allocation12 + $0x170] sm:$0xff]
    %v876 = vld [vmem:[#allocation12 + $0x178] sm:$0xff]
    %v877 = vld [vmem:[#allocation12 + $0x180] sm:$0xff]
    %v878 = vld [vmem:[#allocation12 + $0x188] sm:$0xff]
    %v879 = vld [vmem:[#allocation12 + $0x190] sm:$0xff]
    %v880 = vld [vmem:[#allocation12 + $0x198] sm:$0xff]
    %v881 = vld [vmem:[#allocation12 + $0x1a0] sm:$0xff]
    %v882 = vld [vmem:[#allocation12 + $0x1a8] sm:$0xff]
    %v883 = vld [vmem:[#allocation12 + $0x1b0] sm:$0xff]
    %v884 = vld [vmem:[#allocation12 + $0x1b8] sm:$0xff]
    %v885 = vld [vmem:[#allocation12 + $0x1c0] sm:$0xff]
    %v886 = vld [vmem:[#allocation12 + $0x1c8] sm:$0xff]
    %v887 = vld [vmem:[#allocation12 + $0x1d0] sm:$0xff]
    %v888 = vld [vmem:[#allocation12 + $0x1d8] sm:$0xff]
    %v889 = vld [vmem:[#allocation12 + $0x1e0] sm:$0xff]
    %v890 = vld [vmem:[#allocation12 + $0x1e8] sm:$0xff]
    %v891 = vld [vmem:[#allocation12 + $0x1f0] sm:$0xff]
    %v892 = vld [vmem:[#allocation12 + $0x1f8] sm:$0xff]
    %893 = vmatpush.msra.mxu0 %v889
    %894 = vmatpush.msra.mxu0 %v885
    %895 = vmatpush.msra.mxu0 %v881
    %896 = vmatpush.msra.mxu0 %v877
    %897 = vmatpush.msra.mxu0 %v873
    %898 = vmatpush.msra.mxu0 %v869
    %899 = vmatpush.msra.mxu0 %v865
    %900 = vmatpush.msra.mxu0 %v861
    %901 = vmatpush.msra.mxu0 %v857
    %902 = vmatpush.msra.mxu0 %v853
    %903 = vmatpush.msra.mxu0 %v849
    %904 = vmatpush.msra.mxu0 %v845
    %905 = vmatpush.msra.mxu0 %v841
    %906 = vmatpush.msra.mxu0 %v837
    %907 = vmatpush.msra.mxu0 %v833
    %908 = vmatpush.msra.mxu0 %v829
    %909 = vmatmul.f32.gmra.mxu0 %v821
    %v910 = vpop.f32.mrf.mxu0
    %v911 = vadd.f32 0.0, %v910
    %912 = vdwg.mxu0
    %913 = vmatpush.msra.mxu0 %v890
    %914 = vmatpush.msra.mxu0 %v886
    %915 = vmatpush.msra.mxu0 %v882
    %916 = vmatpush.msra.mxu0 %v878
    %917 = vmatpush.msra.mxu0 %v874
    %918 = vmatpush.msra.mxu0 %v870
    %919 = vmatpush.msra.mxu0 %v866
    %920 = vmatpush.msra.mxu0 %v862
    %921 = vmatpush.msra.mxu0 %v858
    %922 = vmatpush.msra.mxu0 %v854
    %923 = vmatpush.msra.mxu0 %v850
    %924 = vmatpush.msra.mxu0 %v846
    %925 = vmatpush.msra.mxu0 %v842
    %926 = vmatpush.msra.mxu0 %v838
    %927 = vmatpush.msra.mxu0 %v834
    %928 = vmatpush.msra.mxu0 %v830
    %929 = vmatmul.f32.gmra.mxu0 %v821
    %v930 = vpop.f32.mrf.mxu0
    %v931 = vadd.f32 0.0, %v930
    %932 = vdwg.mxu0
    %933 = vmatpush.msra.mxu0 %v891
    %934 = vmatpush.msra.mxu0 %v887
    %935 = vmatpush.msra.mxu0 %v883
    %936 = vmatpush.msra.mxu0 %v879
    %937 = vmatpush.msra.mxu0 %v875
    %938 = vmatpush.msra.mxu0 %v871
    %939 = vmatpush.msra.mxu0 %v867
    %940 = vmatpush.msra.mxu0 %v863
    %941 = vmatpush.msra.mxu0 %v859
    %942 = vmatpush.msra.mxu0 %v855
    %943 = vmatpush.msra.mxu0 %v851
    %944 = vmatpush.msra.mxu0 %v847
    %945 = vmatpush.msra.mxu0 %v843
    %946 = vmatpush.msra.mxu0 %v839
    %947 = vmatpush.msra.mxu0 %v835
    %948 = vmatpush.msra.mxu0 %v831
    %949 = vmatmul.f32.gmra.mxu0 %v821
    %v950 = vpop.f32.mrf.mxu0
    %v951 = vadd.f32 0.0, %v950
    %952 = vdwg.mxu0
    %953 = vmatpush.msra.mxu0 %v892
    %954 = vmatpush.msra.mxu0 %v888
    %955 = vmatpush.msra.mxu0 %v884
    %956 = vmatpush.msra.mxu0 %v880
    %957 = vmatpush.msra.mxu0 %v876
    %958 = vmatpush.msra.mxu0 %v872
    %959 = vmatpush.msra.mxu0 %v868
    %960 = vmatpush.msra.mxu0 %v864
    %961 = vmatpush.msra.mxu0 %v860
    %962 = vmatpush.msra.mxu0 %v856
    %963 = vmatpush.msra.mxu0 %v852
    %964 = vmatpush.msra.mxu0 %v848
    %965 = vmatpush.msra.mxu0 %v844
    %966 = vmatpush.msra.mxu0 %v840
    %967 = vmatpush.msra.mxu0 %v836
    %968 = vmatpush.msra.mxu0 %v832
    %969 = vmatmul.f32.gmra.mxu0 %v821
    %v970 = vpop.f32.mrf.mxu0
    %v971 = vadd.f32 0.0, %v970
    %972 = vdwg.mxu0
    %v973 = vadd.f32 %v825, %v911
    %v974 = vadd.f32 %v826, %v931
    %v975 = vadd.f32 %v827, %v951
    %v976 = vadd.f32 %v828, %v971
    %v977 = vxor.u32 %v973, 2147483648
    %v978 = vmul.f32 %v977, 1.442695
    %v979 = vpow.pop %v978
    %v980 = vadd.f32 %v979, 1.0
    %v981 = vrcp.pop %v980
    %v982 = vmul.f32 %v980, %v981
    %v983 = vsub.f32 1.0, %v982
    %v984 = vmul.f32 %v981, %v983
    %v985 = vadd.f32 %v981, %v984
    %vm986 = vweird.f32 %v980
    %vm987 = vweird.f32 %v981
    %vm988 = vmor %vm986, %vm987
    %v989 = vsel %vm988, %v981, %v985
    %v990 = vand.u32 2147483647, %v980
    %vm991 = vcmp.eq.f32.partialorder %v990, 8.507059e+37
    %v992 = vand.u32 %v980, 2147483648
    %v993 = vor.u32 1.1754944e-38, %v992
    %v994 = vsel %vm991, %v993, %v989
    %v995 = vmul.f32 1.0, %v994
    %v996 = vxor.u32 %v974, 2147483648
    %v997 = vmul.f32 %v996, 1.442695
    %v998 = vpow.pop %v997
    %v999 = vadd.f32 %v998, 1.0
    %v1000 = vrcp.pop %v999
    %v1001 = vmul.f32 %v999, %v1000
    %v1002 = vsub.f32 1.0, %v1001
    %v1003 = vmul.f32 %v1000, %v1002
    %v1004 = vadd.f32 %v1000, %v1003
    %vm1005 = vweird.f32 %v999
    %vm1006 = vweird.f32 %v1000
    %vm1007 = vmor %vm1005, %vm1006
    %v1008 = vsel %vm1007, %v1000, %v1004
    %v1009 = vand.u32 2147483647, %v999
    %vm1010 = vcmp.eq.f32.partialorder %v1009, 8.507059e+37
    %v1011 = vand.u32 %v999, 2147483648
    %v1012 = vor.u32 1.1754944e-38, %v1011
    %v1013 = vsel %vm1010, %v1012, %v1008
    %v1014 = vmul.f32 1.0, %v1013
    %v1015 = vtanh.pop %v975
    %v1016 = vxor.u32 %v976, 2147483648
    %v1017 = vmul.f32 %v1016, 1.442695
    %v1018 = vpow.pop %v1017
    %v1019 = vadd.f32 %v1018, 1.0
    %v1020 = vrcp.pop %v1019
    %v1021 = vmul.f32 %v1019, %v1020
    %v1022 = vsub.f32 1.0, %v1021
    %v1023 = vmul.f32 %v1020, %v1022
    %v1024 = vadd.f32 %v1020, %v1023
    %vm1025 = vweird.f32 %v1019
    %vm1026 = vweird.f32 %v1020
    %vm1027 = vmor %vm1025, %vm1026
    %v1028 = vsel %vm1027, %v1020, %v1024
    %v1029 = vand.u32 2147483647, %v1019
    %vm1030 = vcmp.eq.f32.partialorder %v1029, 8.507059e+37
    %v1031 = vand.u32 %v1019, 2147483648
    %v1032 = vor.u32 1.1754944e-38, %v1031
    %v1033 = vsel %vm1030, %v1032, %v1028
    %v1034 = vmul.f32 1.0, %v1033
    %v1035 = vmul.f32 %v1014, %v819
    %v1036 = vmul.f32 %v995, %v1015
    %v1037 = vadd.f32 %v1035, %v1036
    %v1038 = vtanh.pop %v1037
    %v1039 = vmul.f32 %v1034, %v1038
    %s1040 = scalar_lea.vmem [#allocation3], 16
    %1041 = vst [vmem:[%s1040] sm:$0xff] %v1039
    %s1042 = scalar_lea.vmem [#allocation2], 96
    %v1043 = vld [vmem:[%s1042] sm:$0xff]
    %v1044 = vld [vmem:[%s1042 + $0x8] sm:$0xff]
    %v1045 = vld [vmem:[%s1042 + $0x10] sm:$0xff]
    %v1046 = vld [vmem:[%s1042 + $0x18] sm:$0xff]
    %v1047 = vld [vmem:[#allocation12] sm:$0xff]
    %v1048 = vld [vmem:[#allocation12 + $0x8] sm:$0xff]
    %v1049 = vld [vmem:[#allocation12 + $0x10] sm:$0xff]
    %v1050 = vld [vmem:[#allocation12 + $0x18] sm:$0xff]
    %v1051 = vld [vmem:[#allocation12 + $0x20] sm:$0xff]
    %v1052 = vld [vmem:[#allocation12 + $0x28] sm:$0xff]
    %v1053 = vld [vmem:[#allocation12 + $0x30] sm:$0xff]
    %v1054 = vld [vmem:[#allocation12 + $0x38] sm:$0xff]
    %v1055 = vld [vmem:[#allocation12 + $0x40] sm:$0xff]
    %v1056 = vld [vmem:[#allocation12 + $0x48] sm:$0xff]
    %v1057 = vld [vmem:[#allocation12 + $0x50] sm:$0xff]
    %v1058 = vld [vmem:[#allocation12 + $0x58] sm:$0xff]
    %v1059 = vld [vmem:[#allocation12 + $0x60] sm:$0xff]
    %v1060 = vld [vmem:[#allocation12 + $0x68] sm:$0xff]
    %v1061 = vld [vmem:[#allocation12 + $0x70] sm:$0xff]
    %v1062 = vld [vmem:[#allocation12 + $0x78] sm:$0xff]
    %v1063 = vld [vmem:[#allocation12 + $0x80] sm:$0xff]
    %v1064 = vld [vmem:[#allocation12 + $0x88] sm:$0xff]
    %v1065 = vld [vmem:[#allocation12 + $0x90] sm:$0xff]
    %v1066 = vld [vmem:[#allocation12 + $0x98] sm:$0xff]
    %v1067 = vld [vmem:[#allocation12 + $0xa0] sm:$0xff]
    %v1068 = vld [vmem:[#allocation12 + $0xa8] sm:$0xff]
    %v1069 = vld [vmem:[#allocation12 + $0xb0] sm:$0xff]
    %v1070 = vld [vmem:[#allocation12 + $0xb8] sm:$0xff]
    %v1071 = vld [vmem:[#allocation12 + $0xc0] sm:$0xff]
    %v1072 = vld [vmem:[#allocation12 + $0xc8] sm:$0xff]
    %v1073 = vld [vmem:[#allocation12 + $0xd0] sm:$0xff]
    %v1074 = vld [vmem:[#allocation12 + $0xd8] sm:$0xff]
    %v1075 = vld [vmem:[#allocation12 + $0xe0] sm:$0xff]
    %v1076 = vld [vmem:[#allocation12 + $0xe8] sm:$0xff]
    %v1077 = vld [vmem:[#allocation12 + $0xf0] sm:$0xff]
    %v1078 = vld [vmem:[#allocation12 + $0xf8] sm:$0xff]
    %v1079 = vld [vmem:[#allocation12 + $0x100] sm:$0xff]
    %v1080 = vld [vmem:[#allocation12 + $0x108] sm:$0xff]
    %v1081 = vld [vmem:[#allocation12 + $0x110] sm:$0xff]
    %v1082 = vld [vmem:[#allocation12 + $0x118] sm:$0xff]
    %v1083 = vld [vmem:[#allocation12 + $0x120] sm:$0xff]
    %v1084 = vld [vmem:[#allocation12 + $0x128] sm:$0xff]
    %v1085 = vld [vmem:[#allocation12 + $0x130] sm:$0xff]
    %v1086 = vld [vmem:[#allocation12 + $0x138] sm:$0xff]
    %v1087 = vld [vmem:[#allocation12 + $0x140] sm:$0xff]
    %v1088 = vld [vmem:[#allocation12 + $0x148] sm:$0xff]
    %v1089 = vld [vmem:[#allocation12 + $0x150] sm:$0xff]
    %v1090 = vld [vmem:[#allocation12 + $0x158] sm:$0xff]
    %v1091 = vld [vmem:[#allocation12 + $0x160] sm:$0xff]
    %v1092 = vld [vmem:[#allocation12 + $0x168] sm:$0xff]
    %v1093 = vld [vmem:[#allocation12 + $0x170] sm:$0xff]
    %v1094 = vld [vmem:[#allocation12 + $0x178] sm:$0xff]
    %v1095 = vld [vmem:[#allocation12 + $0x180] sm:$0xff]
    %v1096 = vld [vmem:[#allocation12 + $0x188] sm:$0xff]
    %v1097 = vld [vmem:[#allocation12 + $0x190] sm:$0xff]
    %v1098 = vld [vmem:[#allocation12 + $0x198] sm:$0xff]
    %v1099 = vld [vmem:[#allocation12 + $0x1a0] sm:$0xff]
    %v1100 = vld [vmem:[#allocation12 + $0x1a8] sm:$0xff]
    %v1101 = vld [vmem:[#allocation12 + $0x1b0] sm:$0xff]
    %v1102 = vld [vmem:[#allocation12 + $0x1b8] sm:$0xff]
    %v1103 = vld [vmem:[#allocation12 + $0x1c0] sm:$0xff]
    %v1104 = vld [vmem:[#allocation12 + $0x1c8] sm:$0xff]
    %v1105 = vld [vmem:[#allocation12 + $0x1d0] sm:$0xff]
    %v1106 = vld [vmem:[#allocation12 + $0x1d8] sm:$0xff]
    %v1107 = vld [vmem:[#allocation12 + $0x1e0] sm:$0xff]
    %v1108 = vld [vmem:[#allocation12 + $0x1e8] sm:$0xff]
    %v1109 = vld [vmem:[#allocation12 + $0x1f0] sm:$0xff]
    %v1110 = vld [vmem:[#allocation12 + $0x1f8] sm:$0xff]
    %1111 = vmatpush.msra.mxu0 %v1107
    %1112 = vmatpush.msra.mxu0 %v1103
    %1113 = vmatpush.msra.mxu0 %v1099
    %1114 = vmatpush.msra.mxu0 %v1095
    %1115 = vmatpush.msra.mxu0 %v1091
    %1116 = vmatpush.msra.mxu0 %v1087
    %1117 = vmatpush.msra.mxu0 %v1083
    %1118 = vmatpush.msra.mxu0 %v1079
    %1119 = vmatpush.msra.mxu0 %v1075
    %1120 = vmatpush.msra.mxu0 %v1071
    %1121 = vmatpush.msra.mxu0 %v1067
    %1122 = vmatpush.msra.mxu0 %v1063
    %1123 = vmatpush.msra.mxu0 %v1059
    %1124 = vmatpush.msra.mxu0 %v1055
    %1125 = vmatpush.msra.mxu0 %v1051
    %1126 = vmatpush.msra.mxu0 %v1047
    %1127 = vmatmul.f32.gmra.mxu0 %v1039
    %v1128 = vpop.f32.mrf.mxu0
    %v1129 = vadd.f32 0.0, %v1128
    %1130 = vdwg.mxu0
    %1131 = vmatpush.msra.mxu0 %v1108
    %1132 = vmatpush.msra.mxu0 %v1104
    %1133 = vmatpush.msra.mxu0 %v1100
    %1134 = vmatpush.msra.mxu0 %v1096
    %1135 = vmatpush.msra.mxu0 %v1092
    %1136 = vmatpush.msra.mxu0 %v1088
    %1137 = vmatpush.msra.mxu0 %v1084
    %1138 = vmatpush.msra.mxu0 %v1080
    %1139 = vmatpush.msra.mxu0 %v1076
    %1140 = vmatpush.msra.mxu0 %v1072
    %1141 = vmatpush.msra.mxu0 %v1068
    %1142 = vmatpush.msra.mxu0 %v1064
    %1143 = vmatpush.msra.mxu0 %v1060
    %1144 = vmatpush.msra.mxu0 %v1056
    %1145 = vmatpush.msra.mxu0 %v1052
    %1146 = vmatpush.msra.mxu0 %v1048
    %1147 = vmatmul.f32.gmra.mxu0 %v1039
    %v1148 = vpop.f32.mrf.mxu0
    %v1149 = vadd.f32 0.0, %v1148
    %1150 = vdwg.mxu0
    %1151 = vmatpush.msra.mxu0 %v1109
    %1152 = vmatpush.msra.mxu0 %v1105
    %1153 = vmatpush.msra.mxu0 %v1101
    %1154 = vmatpush.msra.mxu0 %v1097
    %1155 = vmatpush.msra.mxu0 %v1093
    %1156 = vmatpush.msra.mxu0 %v1089
    %1157 = vmatpush.msra.mxu0 %v1085
    %1158 = vmatpush.msra.mxu0 %v1081
    %1159 = vmatpush.msra.mxu0 %v1077
    %1160 = vmatpush.msra.mxu0 %v1073
    %1161 = vmatpush.msra.mxu0 %v1069
    %1162 = vmatpush.msra.mxu0 %v1065
    %1163 = vmatpush.msra.mxu0 %v1061
    %1164 = vmatpush.msra.mxu0 %v1057
    %1165 = vmatpush.msra.mxu0 %v1053
    %1166 = vmatpush.msra.mxu0 %v1049
    %1167 = vmatmul.f32.gmra.mxu0 %v1039
    %v1168 = vpop.f32.mrf.mxu0
    %v1169 = vadd.f32 0.0, %v1168
    %1170 = vdwg.mxu0
    %1171 = vmatpush.msra.mxu0 %v1110
    %1172 = vmatpush.msra.mxu0 %v1106
    %1173 = vmatpush.msra.mxu0 %v1102
    %1174 = vmatpush.msra.mxu0 %v1098
    %1175 = vmatpush.msra.mxu0 %v1094
    %1176 = vmatpush.msra.mxu0 %v1090
    %1177 = vmatpush.msra.mxu0 %v1086
    %1178 = vmatpush.msra.mxu0 %v1082
    %1179 = vmatpush.msra.mxu0 %v1078
    %1180 = vmatpush.msra.mxu0 %v1074
    %1181 = vmatpush.msra.mxu0 %v1070
    %1182 = vmatpush.msra.mxu0 %v1066
    %1183 = vmatpush.msra.mxu0 %v1062
    %1184 = vmatpush.msra.mxu0 %v1058
    %1185 = vmatpush.msra.mxu0 %v1054
    %1186 = vmatpush.msra.mxu0 %v1050
    %1187 = vmatmul.f32.gmra.mxu0 %v1039
    %v1188 = vpop.f32.mrf.mxu0
    %v1189 = vadd.f32 0.0, %v1188
    %1190 = vdwg.mxu0
    %v1191 = vadd.f32 %v1043, %v1129
    %v1192 = vadd.f32 %v1044, %v1149
    %v1193 = vadd.f32 %v1045, %v1169
    %v1194 = vadd.f32 %v1046, %v1189
    %v1195 = vxor.u32 %v1191, 2147483648
    %v1196 = vmul.f32 %v1195, 1.442695
    %v1197 = vpow.pop %v1196
    %v1198 = vadd.f32 %v1197, 1.0
    %v1199 = vrcp.pop %v1198
    %v1200 = vmul.f32 %v1198, %v1199
    %v1201 = vsub.f32 1.0, %v1200
    %v1202 = vmul.f32 %v1199, %v1201
    %v1203 = vadd.f32 %v1199, %v1202
    %vm1204 = vweird.f32 %v1198
    %vm1205 = vweird.f32 %v1199
    %vm1206 = vmor %vm1204, %vm1205
    %v1207 = vsel %vm1206, %v1199, %v1203
    %v1208 = vand.u32 2147483647, %v1198
    %vm1209 = vcmp.eq.f32.partialorder %v1208, 8.507059e+37
    %v1210 = vand.u32 %v1198, 2147483648
    %v1211 = vor.u32 1.1754944e-38, %v1210
    %v1212 = vsel %vm1209, %v1211, %v1207
    %v1213 = vmul.f32 1.0, %v1212
    %v1214 = vxor.u32 %v1192, 2147483648
    %v1215 = vmul.f32 %v1214, 1.442695
    %v1216 = vpow.pop %v1215
    %v1217 = vadd.f32 %v1216, 1.0
    %v1218 = vrcp.pop %v1217
    %v1219 = vmul.f32 %v1217, %v1218
    %v1220 = vsub.f32 1.0, %v1219
    %v1221 = vmul.f32 %v1218, %v1220
    %v1222 = vadd.f32 %v1218, %v1221
    %vm1223 = vweird.f32 %v1217
    %vm1224 = vweird.f32 %v1218
    %vm1225 = vmor %vm1223, %vm1224
    %v1226 = vsel %vm1225, %v1218, %v1222
    %v1227 = vand.u32 2147483647, %v1217
    %vm1228 = vcmp.eq.f32.partialorder %v1227, 8.507059e+37
    %v1229 = vand.u32 %v1217, 2147483648
    %v1230 = vor.u32 1.1754944e-38, %v1229
    %v1231 = vsel %vm1228, %v1230, %v1226
    %v1232 = vmul.f32 1.0, %v1231
    %v1233 = vtanh.pop %v1193
    %v1234 = vxor.u32 %v1194, 2147483648
    %v1235 = vmul.f32 %v1234, 1.442695
    %v1236 = vpow.pop %v1235
    %v1237 = vadd.f32 %v1236, 1.0
    %v1238 = vrcp.pop %v1237
    %v1239 = vmul.f32 %v1237, %v1238
    %v1240 = vsub.f32 1.0, %v1239
    %v1241 = vmul.f32 %v1238, %v1240
    %v1242 = vadd.f32 %v1238, %v1241
    %vm1243 = vweird.f32 %v1237
    %vm1244 = vweird.f32 %v1238
    %vm1245 = vmor %vm1243, %vm1244
    %v1246 = vsel %vm1245, %v1238, %v1242
    %v1247 = vand.u32 2147483647, %v1237
    %vm1248 = vcmp.eq.f32.partialorder %v1247, 8.507059e+37
    %v1249 = vand.u32 %v1237, 2147483648
    %v1250 = vor.u32 1.1754944e-38, %v1249
    %v1251 = vsel %vm1248, %v1250, %v1246
    %v1252 = vmul.f32 1.0, %v1251
    %v1253 = vmul.f32 %v1232, %v1037
    %v1254 = vmul.f32 %v1213, %v1233
    %v1255 = vadd.f32 %v1253, %v1254
    %v1256 = vtanh.pop %v1255
    %v1257 = vmul.f32 %v1252, %v1256
    %s1258 = scalar_lea.vmem [#allocation3], 24
    %1259 = vst [vmem:[%s1258] sm:$0xff] %v1257
    %s1260 = scalar_lea.vmem [#allocation2], 128
    %v1261 = vld [vmem:[%s1260] sm:$0xff]
    %v1262 = vld [vmem:[%s1260 + $0x8] sm:$0xff]
    %v1263 = vld [vmem:[%s1260 + $0x10] sm:$0xff]
    %v1264 = vld [vmem:[%s1260 + $0x18] sm:$0xff]
    %v1265 = vld [vmem:[#allocation12] sm:$0xff]
    %v1266 = vld [vmem:[#allocation12 + $0x8] sm:$0xff]
    %v1267 = vld [vmem:[#allocation12 + $0x10] sm:$0xff]
    %v1268 = vld [vmem:[#allocation12 + $0x18] sm:$0xff]
    %v1269 = vld [vmem:[#allocation12 + $0x20] sm:$0xff]
    %v1270 = vld [vmem:[#allocation12 + $0x28] sm:$0xff]
    %v1271 = vld [vmem:[#allocation12 + $0x30] sm:$0xff]
    %v1272 = vld [vmem:[#allocation12 + $0x38] sm:$0xff]
    %v1273 = vld [vmem:[#allocation12 + $0x40] sm:$0xff]
    %v1274 = vld [vmem:[#allocation12 + $0x48] sm:$0xff]
    %v1275 = vld [vmem:[#allocation12 + $0x50] sm:$0xff]
    %v1276 = vld [vmem:[#allocation12 + $0x58] sm:$0xff]
    %v1277 = vld [vmem:[#allocation12 + $0x60] sm:$0xff]
    %v1278 = vld [vmem:[#allocation12 + $0x68] sm:$0xff]
    %v1279 = vld [vmem:[#allocation12 + $0x70] sm:$0xff]
    %v1280 = vld [vmem:[#allocation12 + $0x78] sm:$0xff]
    %v1281 = vld [vmem:[#allocation12 + $0x80] sm:$0xff]
    %v1282 = vld [vmem:[#allocation12 + $0x88] sm:$0xff]
    %v1283 = vld [vmem:[#allocation12 + $0x90] sm:$0xff]
    %v1284 = vld [vmem:[#allocation12 + $0x98] sm:$0xff]
    %v1285 = vld [vmem:[#allocation12 + $0xa0] sm:$0xff]
    %v1286 = vld [vmem:[#allocation12 + $0xa8] sm:$0xff]
    %v1287 = vld [vmem:[#allocation12 + $0xb0] sm:$0xff]
    %v1288 = vld [vmem:[#allocation12 + $0xb8] sm:$0xff]
    %v1289 = vld [vmem:[#allocation12 + $0xc0] sm:$0xff]
    %v1290 = vld [vmem:[#allocation12 + $0xc8] sm:$0xff]
    %v1291 = vld [vmem:[#allocation12 + $0xd0] sm:$0xff]
    %v1292 = vld [vmem:[#allocation12 + $0xd8] sm:$0xff]
    %v1293 = vld [vmem:[#allocation12 + $0xe0] sm:$0xff]
    %v1294 = vld [vmem:[#allocation12 + $0xe8] sm:$0xff]
    %v1295 = vld [vmem:[#allocation12 + $0xf0] sm:$0xff]
    %v1296 = vld [vmem:[#allocation12 + $0xf8] sm:$0xff]
    %v1297 = vld [vmem:[#allocation12 + $0x100] sm:$0xff]
    %v1298 = vld [vmem:[#allocation12 + $0x108] sm:$0xff]
    %v1299 = vld [vmem:[#allocation12 + $0x110] sm:$0xff]
    %v1300 = vld [vmem:[#allocation12 + $0x118] sm:$0xff]
    %v1301 = vld [vmem:[#allocation12 + $0x120] sm:$0xff]
    %v1302 = vld [vmem:[#allocation12 + $0x128] sm:$0xff]
    %v1303 = vld [vmem:[#allocation12 + $0x130] sm:$0xff]
    %v1304 = vld [vmem:[#allocation12 + $0x138] sm:$0xff]
    %v1305 = vld [vmem:[#allocation12 + $0x140] sm:$0xff]
    %v1306 = vld [vmem:[#allocation12 + $0x148] sm:$0xff]
    %v1307 = vld [vmem:[#allocation12 + $0x150] sm:$0xff]
    %v1308 = vld [vmem:[#allocation12 + $0x158] sm:$0xff]
    %v1309 = vld [vmem:[#allocation12 + $0x160] sm:$0xff]
    %v1310 = vld [vmem:[#allocation12 + $0x168] sm:$0xff]
    %v1311 = vld [vmem:[#allocation12 + $0x170] sm:$0xff]
    %v1312 = vld [vmem:[#allocation12 + $0x178] sm:$0xff]
    %v1313 = vld [vmem:[#allocation12 + $0x180] sm:$0xff]
    %v1314 = vld [vmem:[#allocation12 + $0x188] sm:$0xff]
    %v1315 = vld [vmem:[#allocation12 + $0x190] sm:$0xff]
    %v1316 = vld [vmem:[#allocation12 + $0x198] sm:$0xff]
    %v1317 = vld [vmem:[#allocation12 + $0x1a0] sm:$0xff]
    %v1318 = vld [vmem:[#allocation12 + $0x1a8] sm:$0xff]
    %v1319 = vld [vmem:[#allocation12 + $0x1b0] sm:$0xff]
    %v1320 = vld [vmem:[#allocation12 + $0x1b8] sm:$0xff]
    %v1321 = vld [vmem:[#allocation12 + $0x1c0] sm:$0xff]
    %v1322 = vld [vmem:[#allocation12 + $0x1c8] sm:$0xff]
    %v1323 = vld [vmem:[#allocation12 + $0x1d0] sm:$0xff]
    %v1324 = vld [vmem:[#allocation12 + $0x1d8] sm:$0xff]
    %v1325 = vld [vmem:[#allocation12 + $0x1e0] sm:$0xff]
    %v1326 = vld [vmem:[#allocation12 + $0x1e8] sm:$0xff]
    %v1327 = vld [vmem:[#allocation12 + $0x1f0] sm:$0xff]
    %v1328 = vld [vmem:[#allocation12 + $0x1f8] sm:$0xff]
    %1329 = vmatpush.msra.mxu0 %v1325
    %1330 = vmatpush.msra.mxu0 %v1321
    %1331 = vmatpush.msra.mxu0 %v1317
    %1332 = vmatpush.msra.mxu0 %v1313
    %1333 = vmatpush.msra.mxu0 %v1309
    %1334 = vmatpush.msra.mxu0 %v1305
    %1335 = vmatpush.msra.mxu0 %v1301
    %1336 = vmatpush.msra.mxu0 %v1297
    %1337 = vmatpush.msra.mxu0 %v1293
    %1338 = vmatpush.msra.mxu0 %v1289
    %1339 = vmatpush.msra.mxu0 %v1285
    %1340 = vmatpush.msra.mxu0 %v1281
    %1341 = vmatpush.msra.mxu0 %v1277
    %1342 = vmatpush.msra.mxu0 %v1273
    %1343 = vmatpush.msra.mxu0 %v1269
    %1344 = vmatpush.msra.mxu0 %v1265
    %1345 = vmatmul.f32.gmra.mxu0 %v1257
    %v1346 = vpop.f32.mrf.mxu0
    %v1347 = vadd.f32 0.0, %v1346
    %1348 = vdwg.mxu0
    %1349 = vmatpush.msra.mxu0 %v1326
    %1350 = vmatpush.msra.mxu0 %v1322
    %1351 = vmatpush.msra.mxu0 %v1318
    %1352 = vmatpush.msra.mxu0 %v1314
    %1353 = vmatpush.msra.mxu0 %v1310
    %1354 = vmatpush.msra.mxu0 %v1306
    %1355 = vmatpush.msra.mxu0 %v1302
    %1356 = vmatpush.msra.mxu0 %v1298
    %1357 = vmatpush.msra.mxu0 %v1294
    %1358 = vmatpush.msra.mxu0 %v1290
    %1359 = vmatpush.msra.mxu0 %v1286
    %1360 = vmatpush.msra.mxu0 %v1282
    %1361 = vmatpush.msra.mxu0 %v1278
    %1362 = vmatpush.msra.mxu0 %v1274
    %1363 = vmatpush.msra.mxu0 %v1270
    %1364 = vmatpush.msra.mxu0 %v1266
    %1365 = vmatmul.f32.gmra.mxu0 %v1257
    %v1366 = vpop.f32.mrf.mxu0
    %v1367 = vadd.f32 0.0, %v1366
    %1368 = vdwg.mxu0
    %1369 = vmatpush.msra.mxu0 %v1327
    %1370 = vmatpush.msra.mxu0 %v1323
    %1371 = vmatpush.msra.mxu0 %v1319
    %1372 = vmatpush.msra.mxu0 %v1315
    %1373 = vmatpush.msra.mxu0 %v1311
    %1374 = vmatpush.msra.mxu0 %v1307
    %1375 = vmatpush.msra.mxu0 %v1303
    %1376 = vmatpush.msra.mxu0 %v1299
    %1377 = vmatpush.msra.mxu0 %v1295
    %1378 = vmatpush.msra.mxu0 %v1291
    %1379 = vmatpush.msra.mxu0 %v1287
    %1380 = vmatpush.msra.mxu0 %v1283
    %1381 = vmatpush.msra.mxu0 %v1279
    %1382 = vmatpush.msra.mxu0 %v1275
    %1383 = vmatpush.msra.mxu0 %v1271
    %1384 = vmatpush.msra.mxu0 %v1267
    %1385 = vmatmul.f32.gmra.mxu0 %v1257
    %v1386 = vpop.f32.mrf.mxu0
    %v1387 = vadd.f32 0.0, %v1386
    %1388 = vdwg.mxu0
    %1389 = vmatpush.msra.mxu0 %v1328
    %1390 = vmatpush.msra.mxu0 %v1324
    %1391 = vmatpush.msra.mxu0 %v1320
    %1392 = vmatpush.msra.mxu0 %v1316
    %1393 = vmatpush.msra.mxu0 %v1312
    %1394 = vmatpush.msra.mxu0 %v1308
    %1395 = vmatpush.msra.mxu0 %v1304
    %1396 = vmatpush.msra.mxu0 %v1300
    %1397 = vmatpush.msra.mxu0 %v1296
    %1398 = vmatpush.msra.mxu0 %v1292
    %1399 = vmatpush.msra.mxu0 %v1288
    %1400 = vmatpush.msra.mxu0 %v1284
    %1401 = vmatpush.msra.mxu0 %v1280
    %1402 = vmatpush.msra.mxu0 %v1276
    %1403 = vmatpush.msra.mxu0 %v1272
    %1404 = vmatpush.msra.mxu0 %v1268
    %1405 = vmatmul.f32.gmra.mxu0 %v1257
    %v1406 = vpop.f32.mrf.mxu0
    %v1407 = vadd.f32 0.0, %v1406
    %1408 = vdwg.mxu0
    %v1409 = vadd.f32 %v1261, %v1347
    %v1410 = vadd.f32 %v1262, %v1367
    %v1411 = vadd.f32 %v1263, %v1387
    %v1412 = vadd.f32 %v1264, %v1407
    %v1413 = vxor.u32 %v1409, 2147483648
    %v1414 = vmul.f32 %v1413, 1.442695
    %v1415 = vpow.pop %v1414
    %v1416 = vadd.f32 %v1415, 1.0
    %v1417 = vrcp.pop %v1416
    %v1418 = vmul.f32 %v1416, %v1417
    %v1419 = vsub.f32 1.0, %v1418
    %v1420 = vmul.f32 %v1417, %v1419
    %v1421 = vadd.f32 %v1417, %v1420
    %vm1422 = vweird.f32 %v1416
    %vm1423 = vweird.f32 %v1417
    %vm1424 = vmor %vm1422, %vm1423
    %v1425 = vsel %vm1424, %v1417, %v1421
    %v1426 = vand.u32 2147483647, %v1416
    %vm1427 = vcmp.eq.f32.partialorder %v1426, 8.507059e+37
    %v1428 = vand.u32 %v1416, 2147483648
    %v1429 = vor.u32 1.1754944e-38, %v1428
    %v1430 = vsel %vm1427, %v1429, %v1425
    %v1431 = vmul.f32 1.0, %v1430
    %v1432 = vxor.u32 %v1410, 2147483648
    %v1433 = vmul.f32 %v1432, 1.442695
    %v1434 = vpow.pop %v1433
    %v1435 = vadd.f32 %v1434, 1.0
    %v1436 = vrcp.pop %v1435
    %v1437 = vmul.f32 %v1435, %v1436
    %v1438 = vsub.f32 1.0, %v1437
    %v1439 = vmul.f32 %v1436, %v1438
    %v1440 = vadd.f32 %v1436, %v1439
    %vm1441 = vweird.f32 %v1435
    %vm1442 = vweird.f32 %v1436
    %vm1443 = vmor %vm1441, %vm1442
    %v1444 = vsel %vm1443, %v1436, %v1440
    %v1445 = vand.u32 2147483647, %v1435
    %vm1446 = vcmp.eq.f32.partialorder %v1445, 8.507059e+37
    %v1447 = vand.u32 %v1435, 2147483648
    %v1448 = vor.u32 1.1754944e-38, %v1447
    %v1449 = vsel %vm1446, %v1448, %v1444
    %v1450 = vmul.f32 1.0, %v1449
    %v1451 = vtanh.pop %v1411
    %v1452 = vxor.u32 %v1412, 2147483648
    %v1453 = vmul.f32 %v1452, 1.442695
    %v1454 = vpow.pop %v1453
    %v1455 = vadd.f32 %v1454, 1.0
    %v1456 = vrcp.pop %v1455
    %v1457 = vmul.f32 %v1455, %v1456
    %v1458 = vsub.f32 1.0, %v1457
    %v1459 = vmul.f32 %v1456, %v1458
    %v1460 = vadd.f32 %v1456, %v1459
    %vm1461 = vweird.f32 %v1455
    %vm1462 = vweird.f32 %v1456
    %vm1463 = vmor %vm1461, %vm1462
    %v1464 = vsel %vm1463, %v1456, %v1460
    %v1465 = vand.u32 2147483647, %v1455
    %vm1466 = vcmp.eq.f32.partialorder %v1465, 8.507059e+37
    %v1467 = vand.u32 %v1455, 2147483648
    %v1468 = vor.u32 1.1754944e-38, %v1467
    %v1469 = vsel %vm1466, %v1468, %v1464
    %v1470 = vmul.f32 1.0, %v1469
    %v1471 = vmul.f32 %v1450, %v1255
    %v1472 = vmul.f32 %v1431, %v1451
    %v1473 = vadd.f32 %v1471, %v1472
    %v1474 = vtanh.pop %v1473
    %v1475 = vmul.f32 %v1470, %v1474
    %s1476 = scalar_lea.vmem [#allocation3], 32
    %1477 = vst [vmem:[%s1476] sm:$0xff] %v1475
    %s1478 = scalar_lea.vmem [#allocation2], 160
    %v1479 = vld [vmem:[%s1478] sm:$0xff]
    %v1480 = vld [vmem:[%s1478 + $0x8] sm:$0xff]
    %v1481 = vld [vmem:[%s1478 + $0x10] sm:$0xff]
    %v1482 = vld [vmem:[%s1478 + $0x18] sm:$0xff]
    %v1483 = vld [vmem:[#allocation12] sm:$0xff]
    %v1484 = vld [vmem:[#allocation12 + $0x8] sm:$0xff]
    %v1485 = vld [vmem:[#allocation12 + $0x10] sm:$0xff]
    %v1486 = vld [vmem:[#allocation12 + $0x18] sm:$0xff]
    %v1487 = vld [vmem:[#allocation12 + $0x20] sm:$0xff]
    %v1488 = vld [vmem:[#allocation12 + $0x28] sm:$0xff]
    %v1489 = vld [vmem:[#allocation12 + $0x30] sm:$0xff]
    %v1490 = vld [vmem:[#allocation12 + $0x38] sm:$0xff]
    %v1491 = vld [vmem:[#allocation12 + $0x40] sm:$0xff]
    %v1492 = vld [vmem:[#allocation12 + $0x48] sm:$0xff]
    %v1493 = vld [vmem:[#allocation12 + $0x50] sm:$0xff]
    %v1494 = vld [vmem:[#allocation12 + $0x58] sm:$0xff]
    %v1495 = vld [vmem:[#allocation12 + $0x60] sm:$0xff]
    %v1496 = vld [vmem:[#allocation12 + $0x68] sm:$0xff]
    %v1497 = vld [vmem:[#allocation12 + $0x70] sm:$0xff]
    %v1498 = vld [vmem:[#allocation12 + $0x78] sm:$0xff]
    %v1499 = vld [vmem:[#allocation12 + $0x80] sm:$0xff]
    %v1500 = vld [vmem:[#allocation12 + $0x88] sm:$0xff]
    %v1501 = vld [vmem:[#allocation12 + $0x90] sm:$0xff]
    %v1502 = vld [vmem:[#allocation12 + $0x98] sm:$0xff]
    %v1503 = vld [vmem:[#allocation12 + $0xa0] sm:$0xff]
    %v1504 = vld [vmem:[#allocation12 + $0xa8] sm:$0xff]
    %v1505 = vld [vmem:[#allocation12 + $0xb0] sm:$0xff]
    %v1506 = vld [vmem:[#allocation12 + $0xb8] sm:$0xff]
    %v1507 = vld [vmem:[#allocation12 + $0xc0] sm:$0xff]
    %v1508 = vld [vmem:[#allocation12 + $0xc8] sm:$0xff]
    %v1509 = vld [vmem:[#allocation12 + $0xd0] sm:$0xff]
    %v1510 = vld [vmem:[#allocation12 + $0xd8] sm:$0xff]
    %v1511 = vld [vmem:[#allocation12 + $0xe0] sm:$0xff]
    %v1512 = vld [vmem:[#allocation12 + $0xe8] sm:$0xff]
    %v1513 = vld [vmem:[#allocation12 + $0xf0] sm:$0xff]
    %v1514 = vld [vmem:[#allocation12 + $0xf8] sm:$0xff]
    %v1515 = vld [vmem:[#allocation12 + $0x100] sm:$0xff]
    %v1516 = vld [vmem:[#allocation12 + $0x108] sm:$0xff]
    %v1517 = vld [vmem:[#allocation12 + $0x110] sm:$0xff]
    %v1518 = vld [vmem:[#allocation12 + $0x118] sm:$0xff]
    %v1519 = vld [vmem:[#allocation12 + $0x120] sm:$0xff]
    %v1520 = vld [vmem:[#allocation12 + $0x128] sm:$0xff]
    %v1521 = vld [vmem:[#allocation12 + $0x130] sm:$0xff]
    %v1522 = vld [vmem:[#allocation12 + $0x138] sm:$0xff]
    %v1523 = vld [vmem:[#allocation12 + $0x140] sm:$0xff]
    %v1524 = vld [vmem:[#allocation12 + $0x148] sm:$0xff]
    %v1525 = vld [vmem:[#allocation12 + $0x150] sm:$0xff]
    %v1526 = vld [vmem:[#allocation12 + $0x158] sm:$0xff]
    %v1527 = vld [vmem:[#allocation12 + $0x160] sm:$0xff]
    %v1528 = vld [vmem:[#allocation12 + $0x168] sm:$0xff]
    %v1529 = vld [vmem:[#allocation12 + $0x170] sm:$0xff]
    %v1530 = vld [vmem:[#allocation12 + $0x178] sm:$0xff]
    %v1531 = vld [vmem:[#allocation12 + $0x180] sm:$0xff]
    %v1532 = vld [vmem:[#allocation12 + $0x188] sm:$0xff]
    %v1533 = vld [vmem:[#allocation12 + $0x190] sm:$0xff]
    %v1534 = vld [vmem:[#allocation12 + $0x198] sm:$0xff]
    %v1535 = vld [vmem:[#allocation12 + $0x1a0] sm:$0xff]
    %v1536 = vld [vmem:[#allocation12 + $0x1a8] sm:$0xff]
    %v1537 = vld [vmem:[#allocation12 + $0x1b0] sm:$0xff]
    %v1538 = vld [vmem:[#allocation12 + $0x1b8] sm:$0xff]
    %v1539 = vld [vmem:[#allocation12 + $0x1c0] sm:$0xff]
    %v1540 = vld [vmem:[#allocation12 + $0x1c8] sm:$0xff]
    %v1541 = vld [vmem:[#allocation12 + $0x1d0] sm:$0xff]
    %v1542 = vld [vmem:[#allocation12 + $0x1d8] sm:$0xff]
    %v1543 = vld [vmem:[#allocation12 + $0x1e0] sm:$0xff]
    %v1544 = vld [vmem:[#allocation12 + $0x1e8] sm:$0xff]
    %v1545 = vld [vmem:[#allocation12 + $0x1f0] sm:$0xff]
    %v1546 = vld [vmem:[#allocation12 + $0x1f8] sm:$0xff]
    %1547 = vmatpush.msra.mxu0 %v1543
    %1548 = vmatpush.msra.mxu0 %v1539
    %1549 = vmatpush.msra.mxu0 %v1535
    %1550 = vmatpush.msra.mxu0 %v1531
    %1551 = vmatpush.msra.mxu0 %v1527
    %1552 = vmatpush.msra.mxu0 %v1523
    %1553 = vmatpush.msra.mxu0 %v1519
    %1554 = vmatpush.msra.mxu0 %v1515
    %1555 = vmatpush.msra.mxu0 %v1511
    %1556 = vmatpush.msra.mxu0 %v1507
    %1557 = vmatpush.msra.mxu0 %v1503
    %1558 = vmatpush.msra.mxu0 %v1499
    %1559 = vmatpush.msra.mxu0 %v1495
    %1560 = vmatpush.msra.mxu0 %v1491
    %1561 = vmatpush.msra.mxu0 %v1487
    %1562 = vmatpush.msra.mxu0 %v1483
    %1563 = vmatmul.f32.gmra.mxu0 %v1475
    %v1564 = vpop.f32.mrf.mxu0
    %v1565 = vadd.f32 0.0, %v1564
    %1566 = vdwg.mxu0
    %1567 = vmatpush.msra.mxu0 %v1544
    %1568 = vmatpush.msra.mxu0 %v1540
    %1569 = vmatpush.msra.mxu0 %v1536
    %1570 = vmatpush.msra.mxu0 %v1532
    %1571 = vmatpush.msra.mxu0 %v1528
    %1572 = vmatpush.msra.mxu0 %v1524
    %1573 = vmatpush.msra.mxu0 %v1520
    %1574 = vmatpush.msra.mxu0 %v1516
    %1575 = vmatpush.msra.mxu0 %v1512
    %1576 = vmatpush.msra.mxu0 %v1508
    %1577 = vmatpush.msra.mxu0 %v1504
    %1578 = vmatpush.msra.mxu0 %v1500
    %1579 = vmatpush.msra.mxu0 %v1496
    %1580 = vmatpush.msra.mxu0 %v1492
    %1581 = vmatpush.msra.mxu0 %v1488
    %1582 = vmatpush.msra.mxu0 %v1484
    %1583 = vmatmul.f32.gmra.mxu0 %v1475
    %v1584 = vpop.f32.mrf.mxu0
    %v1585 = vadd.f32 0.0, %v1584
    %1586 = vdwg.mxu0
    %1587 = vmatpush.msra.mxu0 %v1545
    %1588 = vmatpush.msra.mxu0 %v1541
    %1589 = vmatpush.msra.mxu0 %v1537
    %1590 = vmatpush.msra.mxu0 %v1533
    %1591 = vmatpush.msra.mxu0 %v1529
    %1592 = vmatpush.msra.mxu0 %v1525
    %1593 = vmatpush.msra.mxu0 %v1521
    %1594 = vmatpush.msra.mxu0 %v1517
    %1595 = vmatpush.msra.mxu0 %v1513
    %1596 = vmatpush.msra.mxu0 %v1509
    %1597 = vmatpush.msra.mxu0 %v1505
    %1598 = vmatpush.msra.mxu0 %v1501
    %1599 = vmatpush.msra.mxu0 %v1497
    %1600 = vmatpush.msra.mxu0 %v1493
    %1601 = vmatpush.msra.mxu0 %v1489
    %1602 = vmatpush.msra.mxu0 %v1485
    %1603 = vmatmul.f32.gmra.mxu0 %v1475
    %v1604 = vpop.f32.mrf.mxu0
    %v1605 = vadd.f32 0.0, %v1604
    %1606 = vdwg.mxu0
    %1607 = vmatpush.msra.mxu0 %v1546
    %1608 = vmatpush.msra.mxu0 %v1542
    %1609 = vmatpush.msra.mxu0 %v1538
    %1610 = vmatpush.msra.mxu0 %v1534
    %1611 = vmatpush.msra.mxu0 %v1530
    %1612 = vmatpush.msra.mxu0 %v1526
    %1613 = vmatpush.msra.mxu0 %v1522
    %1614 = vmatpush.msra.mxu0 %v1518
    %1615 = vmatpush.msra.mxu0 %v1514
    %1616 = vmatpush.msra.mxu0 %v1510
    %1617 = vmatpush.msra.mxu0 %v1506
    %1618 = vmatpush.msra.mxu0 %v1502
    %1619 = vmatpush.msra.mxu0 %v1498
    %1620 = vmatpush.msra.mxu0 %v1494
    %1621 = vmatpush.msra.mxu0 %v1490
    %1622 = vmatpush.msra.mxu0 %v1486
    %1623 = vmatmul.f32.gmra.mxu0 %v1475
    %v1624 = vpop.f32.mrf.mxu0
    %v1625 = vadd.f32 0.0, %v1624
    %1626 = vdwg.mxu0
    %v1627 = vadd.f32 %v1479, %v1565
    %v1628 = vadd.f32 %v1480, %v1585
    %v1629 = vadd.f32 %v1481, %v1605
    %v1630 = vadd.f32 %v1482, %v1625
    %v1631 = vxor.u32 %v1627, 2147483648
    %v1632 = vmul.f32 %v1631, 1.442695
    %v1633 = vpow.pop %v1632
    %v1634 = vadd.f32 %v1633, 1.0
    %v1635 = vrcp.pop %v1634
    %v1636 = vmul.f32 %v1634, %v1635
    %v1637 = vsub.f32 1.0, %v1636
    %v1638 = vmul.f32 %v1635, %v1637
    %v1639 = vadd.f32 %v1635, %v1638
    %vm1640 = vweird.f32 %v1634
    %vm1641 = vweird.f32 %v1635
    %vm1642 = vmor %vm1640, %vm1641
    %v1643 = vsel %vm1642, %v1635, %v1639
    %v1644 = vand.u32 2147483647, %v1634
    %vm1645 = vcmp.eq.f32.partialorder %v1644, 8.507059e+37
    %v1646 = vand.u32 %v1634, 2147483648
    %v1647 = vor.u32 1.1754944e-38, %v1646
    %v1648 = vsel %vm1645, %v1647, %v1643
    %v1649 = vmul.f32 1.0, %v1648
    %v1650 = vxor.u32 %v1628, 2147483648
    %v1651 = vmul.f32 %v1650, 1.442695
    %v1652 = vpow.pop %v1651
    %v1653 = vadd.f32 %v1652, 1.0
    %v1654 = vrcp.pop %v1653
    %v1655 = vmul.f32 %v1653, %v1654
    %v1656 = vsub.f32 1.0, %v1655
    %v1657 = vmul.f32 %v1654, %v1656
    %v1658 = vadd.f32 %v1654, %v1657
    %vm1659 = vweird.f32 %v1653
    %vm1660 = vweird.f32 %v1654
    %vm1661 = vmor %vm1659, %vm1660
    %v1662 = vsel %vm1661, %v1654, %v1658
    %v1663 = vand.u32 2147483647, %v1653
    %vm1664 = vcmp.eq.f32.partialorder %v1663, 8.507059e+37
    %v1665 = vand.u32 %v1653, 2147483648
    %v1666 = vor.u32 1.1754944e-38, %v1665
    %v1667 = vsel %vm1664, %v1666, %v1662
    %v1668 = vmul.f32 1.0, %v1667
    %v1669 = vtanh.pop %v1629
    %v1670 = vxor.u32 %v1630, 2147483648
    %v1671 = vmul.f32 %v1670, 1.442695
    %v1672 = vpow.pop %v1671
    %v1673 = vadd.f32 %v1672, 1.0
    %v1674 = vrcp.pop %v1673
    %v1675 = vmul.f32 %v1673, %v1674
    %v1676 = vsub.f32 1.0, %v1675
    %v1677 = vmul.f32 %v1674, %v1676
    %v1678 = vadd.f32 %v1674, %v1677
    %vm1679 = vweird.f32 %v1673
    %vm1680 = vweird.f32 %v1674
    %vm1681 = vmor %vm1679, %vm1680
    %v1682 = vsel %vm1681, %v1674, %v1678
    %v1683 = vand.u32 2147483647, %v1673
    %vm1684 = vcmp.eq.f32.partialorder %v1683, 8.507059e+37
    %v1685 = vand.u32 %v1673, 2147483648
    %v1686 = vor.u32 1.1754944e-38, %v1685
    %v1687 = vsel %vm1684, %v1686, %v1682
    %v1688 = vmul.f32 1.0, %v1687
    %v1689 = vmul.f32 %v1668, %v1473
    %v1690 = vmul.f32 %v1649, %v1669
    %v1691 = vadd.f32 %v1689, %v1690
    %v1692 = vtanh.pop %v1691
    %v1693 = vmul.f32 %v1688, %v1692
    %s1694 = scalar_lea.vmem [#allocation3], 40
    %1695 = vst [vmem:[%s1694] sm:$0xff] %v1693
    %s1696 = scalar_lea.vmem [#allocation2], 192
    %v1697 = vld [vmem:[%s1696] sm:$0xff]
    %v1698 = vld [vmem:[%s1696 + $0x8] sm:$0xff]
    %v1699 = vld [vmem:[%s1696 + $0x10] sm:$0xff]
    %v1700 = vld [vmem:[%s1696 + $0x18] sm:$0xff]
    %v1701 = vld [vmem:[#allocation12] sm:$0xff]
    %v1702 = vld [vmem:[#allocation12 + $0x8] sm:$0xff]
    %v1703 = vld [vmem:[#allocation12 + $0x10] sm:$0xff]
    %v1704 = vld [vmem:[#allocation12 + $0x18] sm:$0xff]
    %v1705 = vld [vmem:[#allocation12 + $0x20] sm:$0xff]
    %v1706 = vld [vmem:[#allocation12 + $0x28] sm:$0xff]
    %v1707 = vld [vmem:[#allocation12 + $0x30] sm:$0xff]
    %v1708 = vld [vmem:[#allocation12 + $0x38] sm:$0xff]
    %v1709 = vld [vmem:[#allocation12 + $0x40] sm:$0xff]
    %v1710 = vld [vmem:[#allocation12 + $0x48] sm:$0xff]
    %v1711 = vld [vmem:[#allocation12 + $0x50] sm:$0xff]
    %v1712 = vld [vmem:[#allocation12 + $0x58] sm:$0xff]
    %v1713 = vld [vmem:[#allocation12 + $0x60] sm:$0xff]
    %v1714 = vld [vmem:[#allocation12 + $0x68] sm:$0xff]
    %v1715 = vld [vmem:[#allocation12 + $0x70] sm:$0xff]
    %v1716 = vld [vmem:[#allocation12 + $0x78] sm:$0xff]
    %v1717 = vld [vmem:[#allocation12 + $0x80] sm:$0xff]
    %v1718 = vld [vmem:[#allocation12 + $0x88] sm:$0xff]
    %v1719 = vld [vmem:[#allocation12 + $0x90] sm:$0xff]
    %v1720 = vld [vmem:[#allocation12 + $0x98] sm:$0xff]
    %v1721 = vld [vmem:[#allocation12 + $0xa0] sm:$0xff]
    %v1722 = vld [vmem:[#allocation12 + $0xa8] sm:$0xff]
    %v1723 = vld [vmem:[#allocation12 + $0xb0] sm:$0xff]
    %v1724 = vld [vmem:[#allocation12 + $0xb8] sm:$0xff]
    %v1725 = vld [vmem:[#allocation12 + $0xc0] sm:$0xff]
    %v1726 = vld [vmem:[#allocation12 + $0xc8] sm:$0xff]
    %v1727 = vld [vmem:[#allocation12 + $0xd0] sm:$0xff]
    %v1728 = vld [vmem:[#allocation12 + $0xd8] sm:$0xff]
    %v1729 = vld [vmem:[#allocation12 + $0xe0] sm:$0xff]
    %v1730 = vld [vmem:[#allocation12 + $0xe8] sm:$0xff]
    %v1731 = vld [vmem:[#allocation12 + $0xf0] sm:$0xff]
    %v1732 = vld [vmem:[#allocation12 + $0xf8] sm:$0xff]
    %v1733 = vld [vmem:[#allocation12 + $0x100] sm:$0xff]
    %v1734 = vld [vmem:[#allocation12 + $0x108] sm:$0xff]
    %v1735 = vld [vmem:[#allocation12 + $0x110] sm:$0xff]
    %v1736 = vld [vmem:[#allocation12 + $0x118] sm:$0xff]
    %v1737 = vld [vmem:[#allocation12 + $0x120] sm:$0xff]
    %v1738 = vld [vmem:[#allocation12 + $0x128] sm:$0xff]
    %v1739 = vld [vmem:[#allocation12 + $0x130] sm:$0xff]
    %v1740 = vld [vmem:[#allocation12 + $0x138] sm:$0xff]
    %v1741 = vld [vmem:[#allocation12 + $0x140] sm:$0xff]
    %v1742 = vld [vmem:[#allocation12 + $0x148] sm:$0xff]
    %v1743 = vld [vmem:[#allocation12 + $0x150] sm:$0xff]
    %v1744 = vld [vmem:[#allocation12 + $0x158] sm:$0xff]
    %v1745 = vld [vmem:[#allocation12 + $0x160] sm:$0xff]
    %v1746 = vld [vmem:[#allocation12 + $0x168] sm:$0xff]
    %v1747 = vld [vmem:[#allocation12 + $0x170] sm:$0xff]
    %v1748 = vld [vmem:[#allocation12 + $0x178] sm:$0xff]
    %v1749 = vld [vmem:[#allocation12 + $0x180] sm:$0xff]
    %v1750 = vld [vmem:[#allocation12 + $0x188] sm:$0xff]
    %v1751 = vld [vmem:[#allocation12 + $0x190] sm:$0xff]
    %v1752 = vld [vmem:[#allocation12 + $0x198] sm:$0xff]
    %v1753 = vld [vmem:[#allocation12 + $0x1a0] sm:$0xff]
    %v1754 = vld [vmem:[#allocation12 + $0x1a8] sm:$0xff]
    %v1755 = vld [vmem:[#allocation12 + $0x1b0] sm:$0xff]
    %v1756 = vld [vmem:[#allocation12 + $0x1b8] sm:$0xff]
    %v1757 = vld [vmem:[#allocation12 + $0x1c0] sm:$0xff]
    %v1758 = vld [vmem:[#allocation12 + $0x1c8] sm:$0xff]
    %v1759 = vld [vmem:[#allocation12 + $0x1d0] sm:$0xff]
    %v1760 = vld [vmem:[#allocation12 + $0x1d8] sm:$0xff]
    %v1761 = vld [vmem:[#allocation12 + $0x1e0] sm:$0xff]
    %v1762 = vld [vmem:[#allocation12 + $0x1e8] sm:$0xff]
    %v1763 = vld [vmem:[#allocation12 + $0x1f0] sm:$0xff]
    %v1764 = vld [vmem:[#allocation12 + $0x1f8] sm:$0xff]
    %1765 = vmatpush.msra.mxu0 %v1761
    %1766 = vmatpush.msra.mxu0 %v1757
    %1767 = vmatpush.msra.mxu0 %v1753
    %1768 = vmatpush.msra.mxu0 %v1749
    %1769 = vmatpush.msra.mxu0 %v1745
    %1770 = vmatpush.msra.mxu0 %v1741
    %1771 = vmatpush.msra.mxu0 %v1737
    %1772 = vmatpush.msra.mxu0 %v1733
    %1773 = vmatpush.msra.mxu0 %v1729
    %1774 = vmatpush.msra.mxu0 %v1725
    %1775 = vmatpush.msra.mxu0 %v1721
    %1776 = vmatpush.msra.mxu0 %v1717
    %1777 = vmatpush.msra.mxu0 %v1713
    %1778 = vmatpush.msra.mxu0 %v1709
    %1779 = vmatpush.msra.mxu0 %v1705
    %1780 = vmatpush.msra.mxu0 %v1701
    %1781 = vmatmul.f32.gmra.mxu0 %v1693
    %v1782 = vpop.f32.mrf.mxu0
    %v1783 = vadd.f32 0.0, %v1782
    %1784 = vdwg.mxu0
    %1785 = vmatpush.msra.mxu0 %v1762
    %1786 = vmatpush.msra.mxu0 %v1758
    %1787 = vmatpush.msra.mxu0 %v1754
    %1788 = vmatpush.msra.mxu0 %v1750
    %1789 = vmatpush.msra.mxu0 %v1746
    %1790 = vmatpush.msra.mxu0 %v1742
    %1791 = vmatpush.msra.mxu0 %v1738
    %1792 = vmatpush.msra.mxu0 %v1734
    %1793 = vmatpush.msra.mxu0 %v1730
    %1794 = vmatpush.msra.mxu0 %v1726
    %1795 = vmatpush.msra.mxu0 %v1722
    %1796 = vmatpush.msra.mxu0 %v1718
    %1797 = vmatpush.msra.mxu0 %v1714
    %1798 = vmatpush.msra.mxu0 %v1710
    %1799 = vmatpush.msra.mxu0 %v1706
    %1800 = vmatpush.msra.mxu0 %v1702
    %1801 = vmatmul.f32.gmra.mxu0 %v1693
    %v1802 = vpop.f32.mrf.mxu0
    %v1803 = vadd.f32 0.0, %v1802
    %1804 = vdwg.mxu0
    %1805 = vmatpush.msra.mxu0 %v1763
    %1806 = vmatpush.msra.mxu0 %v1759
    %1807 = vmatpush.msra.mxu0 %v1755
    %1808 = vmatpush.msra.mxu0 %v1751
    %1809 = vmatpush.msra.mxu0 %v1747
    %1810 = vmatpush.msra.mxu0 %v1743
    %1811 = vmatpush.msra.mxu0 %v1739
    %1812 = vmatpush.msra.mxu0 %v1735
    %1813 = vmatpush.msra.mxu0 %v1731
    %1814 = vmatpush.msra.mxu0 %v1727
    %1815 = vmatpush.msra.mxu0 %v1723
    %1816 = vmatpush.msra.mxu0 %v1719
    %1817 = vmatpush.msra.mxu0 %v1715
    %1818 = vmatpush.msra.mxu0 %v1711
    %1819 = vmatpush.msra.mxu0 %v1707
    %1820 = vmatpush.msra.mxu0 %v1703
    %1821 = vmatmul.f32.gmra.mxu0 %v1693
    %v1822 = vpop.f32.mrf.mxu0
    %v1823 = vadd.f32 0.0, %v1822
    %1824 = vdwg.mxu0
    %1825 = vmatpush.msra.mxu0 %v1764
    %1826 = vmatpush.msra.mxu0 %v1760
    %1827 = vmatpush.msra.mxu0 %v1756
    %1828 = vmatpush.msra.mxu0 %v1752
    %1829 = vmatpush.msra.mxu0 %v1748
    %1830 = vmatpush.msra.mxu0 %v1744
    %1831 = vmatpush.msra.mxu0 %v1740
    %1832 = vmatpush.msra.mxu0 %v1736
    %1833 = vmatpush.msra.mxu0 %v1732
    %1834 = vmatpush.msra.mxu0 %v1728
    %1835 = vmatpush.msra.mxu0 %v1724
    %1836 = vmatpush.msra.mxu0 %v1720
    %1837 = vmatpush.msra.mxu0 %v1716
    %1838 = vmatpush.msra.mxu0 %v1712
    %1839 = vmatpush.msra.mxu0 %v1708
    %1840 = vmatpush.msra.mxu0 %v1704
    %1841 = vmatmul.f32.gmra.mxu0 %v1693
    %v1842 = vpop.f32.mrf.mxu0
    %v1843 = vadd.f32 0.0, %v1842
    %1844 = vdwg.mxu0
    %v1845 = vadd.f32 %v1697, %v1783
    %v1846 = vadd.f32 %v1698, %v1803
    %v1847 = vadd.f32 %v1699, %v1823
    %v1848 = vadd.f32 %v1700, %v1843
    %v1849 = vxor.u32 %v1845, 2147483648
    %v1850 = vmul.f32 %v1849, 1.442695
    %v1851 = vpow.pop %v1850
    %v1852 = vadd.f32 %v1851, 1.0
    %v1853 = vrcp.pop %v1852
    %v1854 = vmul.f32 %v1852, %v1853
    %v1855 = vsub.f32 1.0, %v1854
    %v1856 = vmul.f32 %v1853, %v1855
    %v1857 = vadd.f32 %v1853, %v1856
    %vm1858 = vweird.f32 %v1852
    %vm1859 = vweird.f32 %v1853
    %vm1860 = vmor %vm1858, %vm1859
    %v1861 = vsel %vm1860, %v1853, %v1857
    %v1862 = vand.u32 2147483647, %v1852
    %vm1863 = vcmp.eq.f32.partialorder %v1862, 8.507059e+37
    %v1864 = vand.u32 %v1852, 2147483648
    %v1865 = vor.u32 1.1754944e-38, %v1864
    %v1866 = vsel %vm1863, %v1865, %v1861
    %v1867 = vmul.f32 1.0, %v1866
    %v1868 = vxor.u32 %v1846, 2147483648
    %v1869 = vmul.f32 %v1868, 1.442695
    %v1870 = vpow.pop %v1869
    %v1871 = vadd.f32 %v1870, 1.0
    %v1872 = vrcp.pop %v1871
    %v1873 = vmul.f32 %v1871, %v1872
    %v1874 = vsub.f32 1.0, %v1873
    %v1875 = vmul.f32 %v1872, %v1874
    %v1876 = vadd.f32 %v1872, %v1875
    %vm1877 = vweird.f32 %v1871
    %vm1878 = vweird.f32 %v1872
    %vm1879 = vmor %vm1877, %vm1878
    %v1880 = vsel %vm1879, %v1872, %v1876
    %v1881 = vand.u32 2147483647, %v1871
    %vm1882 = vcmp.eq.f32.partialorder %v1881, 8.507059e+37
    %v1883 = vand.u32 %v1871, 2147483648
    %v1884 = vor.u32 1.1754944e-38, %v1883
    %v1885 = vsel %vm1882, %v1884, %v1880
    %v1886 = vmul.f32 1.0, %v1885
    %v1887 = vtanh.pop %v1847
    %v1888 = vxor.u32 %v1848, 2147483648
    %v1889 = vmul.f32 %v1888, 1.442695
    %v1890 = vpow.pop %v1889
    %v1891 = vadd.f32 %v1890, 1.0
    %v1892 = vrcp.pop %v1891
    %v1893 = vmul.f32 %v1891, %v1892
    %v1894 = vsub.f32 1.0, %v1893
    %v1895 = vmul.f32 %v1892, %v1894
    %v1896 = vadd.f32 %v1892, %v1895
    %vm1897 = vweird.f32 %v1891
    %vm1898 = vweird.f32 %v1892
    %vm1899 = vmor %vm1897, %vm1898
    %v1900 = vsel %vm1899, %v1892, %v1896
    %v1901 = vand.u32 2147483647, %v1891
    %vm1902 = vcmp.eq.f32.partialorder %v1901, 8.507059e+37
    %v1903 = vand.u32 %v1891, 2147483648
    %v1904 = vor.u32 1.1754944e-38, %v1903
    %v1905 = vsel %vm1902, %v1904, %v1900
    %v1906 = vmul.f32 1.0, %v1905
    %v1907 = vmul.f32 %v1886, %v1691
    %v1908 = vmul.f32 %v1867, %v1887
    %v1909 = vadd.f32 %v1907, %v1908
    %v1910 = vtanh.pop %v1909
    %v1911 = vmul.f32 %v1906, %v1910
    %s1912 = scalar_lea.vmem [#allocation3], 48
    %1913 = vst [vmem:[%s1912] sm:$0xff] %v1911
    %s1914 = scalar_lea.vmem [#allocation2], 224
    %v1915 = vld [vmem:[%s1914] sm:$0xff]
    %v1916 = vld [vmem:[%s1914 + $0x8] sm:$0xff]
    %v1917 = vld [vmem:[%s1914 + $0x10] sm:$0xff]
    %v1918 = vld [vmem:[%s1914 + $0x18] sm:$0xff]
    %v1919 = vld [vmem:[#allocation12] sm:$0xff]
    %v1920 = vld [vmem:[#allocation12 + $0x8] sm:$0xff]
    %v1921 = vld [vmem:[#allocation12 + $0x10] sm:$0xff]
    %v1922 = vld [vmem:[#allocation12 + $0x18] sm:$0xff]
    %v1923 = vld [vmem:[#allocation12 + $0x20] sm:$0xff]
    %v1924 = vld [vmem:[#allocation12 + $0x28] sm:$0xff]
    %v1925 = vld [vmem:[#allocation12 + $0x30] sm:$0xff]
    %v1926 = vld [vmem:[#allocation12 + $0x38] sm:$0xff]
    %v1927 = vld [vmem:[#allocation12 + $0x40] sm:$0xff]
    %v1928 = vld [vmem:[#allocation12 + $0x48] sm:$0xff]
    %v1929 = vld [vmem:[#allocation12 + $0x50] sm:$0xff]
    %v1930 = vld [vmem:[#allocation12 + $0x58] sm:$0xff]
    %v1931 = vld [vmem:[#allocation12 + $0x60] sm:$0xff]
    %v1932 = vld [vmem:[#allocation12 + $0x68] sm:$0xff]
    %v1933 = vld [vmem:[#allocation12 + $0x70] sm:$0xff]
    %v1934 = vld [vmem:[#allocation12 + $0x78] sm:$0xff]
    %v1935 = vld [vmem:[#allocation12 + $0x80] sm:$0xff]
    %v1936 = vld [vmem:[#allocation12 + $0x88] sm:$0xff]
    %v1937 = vld [vmem:[#allocation12 + $0x90] sm:$0xff]
    %v1938 = vld [vmem:[#allocation12 + $0x98] sm:$0xff]
    %v1939 = vld [vmem:[#allocation12 + $0xa0] sm:$0xff]
    %v1940 = vld [vmem:[#allocation12 + $0xa8] sm:$0xff]
    %v1941 = vld [vmem:[#allocation12 + $0xb0] sm:$0xff]
    %v1942 = vld [vmem:[#allocation12 + $0xb8] sm:$0xff]
    %v1943 = vld [vmem:[#allocation12 + $0xc0] sm:$0xff]
    %v1944 = vld [vmem:[#allocation12 + $0xc8] sm:$0xff]
    %v1945 = vld [vmem:[#allocation12 + $0xd0] sm:$0xff]
    %v1946 = vld [vmem:[#allocation12 + $0xd8] sm:$0xff]
    %v1947 = vld [vmem:[#allocation12 + $0xe0] sm:$0xff]
    %v1948 = vld [vmem:[#allocation12 + $0xe8] sm:$0xff]
    %v1949 = vld [vmem:[#allocation12 + $0xf0] sm:$0xff]
    %v1950 = vld [vmem:[#allocation12 + $0xf8] sm:$0xff]
    %v1951 = vld [vmem:[#allocation12 + $0x100] sm:$0xff]
    %v1952 = vld [vmem:[#allocation12 + $0x108] sm:$0xff]
    %v1953 = vld [vmem:[#allocation12 + $0x110] sm:$0xff]
    %v1954 = vld [vmem:[#allocation12 + $0x118] sm:$0xff]
    %v1955 = vld [vmem:[#allocation12 + $0x120] sm:$0xff]
    %v1956 = vld [vmem:[#allocation12 + $0x128] sm:$0xff]
    %v1957 = vld [vmem:[#allocation12 + $0x130] sm:$0xff]
    %v1958 = vld [vmem:[#allocation12 + $0x138] sm:$0xff]
    %v1959 = vld [vmem:[#allocation12 + $0x140] sm:$0xff]
    %v1960 = vld [vmem:[#allocation12 + $0x148] sm:$0xff]
    %v1961 = vld [vmem:[#allocation12 + $0x150] sm:$0xff]
    %v1962 = vld [vmem:[#allocation12 + $0x158] sm:$0xff]
    %v1963 = vld [vmem:[#allocation12 + $0x160] sm:$0xff]
    %v1964 = vld [vmem:[#allocation12 + $0x168] sm:$0xff]
    %v1965 = vld [vmem:[#allocation12 + $0x170] sm:$0xff]
    %v1966 = vld [vmem:[#allocation12 + $0x178] sm:$0xff]
    %v1967 = vld [vmem:[#allocation12 + $0x180] sm:$0xff]
    %v1968 = vld [vmem:[#allocation12 + $0x188] sm:$0xff]
    %v1969 = vld [vmem:[#allocation12 + $0x190] sm:$0xff]
    %v1970 = vld [vmem:[#allocation12 + $0x198] sm:$0xff]
    %v1971 = vld [vmem:[#allocation12 + $0x1a0] sm:$0xff]
    %v1972 = vld [vmem:[#allocation12 + $0x1a8] sm:$0xff]
    %v1973 = vld [vmem:[#allocation12 + $0x1b0] sm:$0xff]
    %v1974 = vld [vmem:[#allocation12 + $0x1b8] sm:$0xff]
    %v1975 = vld [vmem:[#allocation12 + $0x1c0] sm:$0xff]
    %v1976 = vld [vmem:[#allocation12 + $0x1c8] sm:$0xff]
    %v1977 = vld [vmem:[#allocation12 + $0x1d0] sm:$0xff]
    %v1978 = vld [vmem:[#allocation12 + $0x1d8] sm:$0xff]
    %v1979 = vld [vmem:[#allocation12 + $0x1e0] sm:$0xff]
    %v1980 = vld [vmem:[#allocation12 + $0x1e8] sm:$0xff]
    %v1981 = vld [vmem:[#allocation12 + $0x1f0] sm:$0xff]
    %v1982 = vld [vmem:[#allocation12 + $0x1f8] sm:$0xff]
    %1983 = vmatpush.msra.mxu0 %v1979
    %1984 = vmatpush.msra.mxu0 %v1975
    %1985 = vmatpush.msra.mxu0 %v1971
    %1986 = vmatpush.msra.mxu0 %v1967
    %1987 = vmatpush.msra.mxu0 %v1963
    %1988 = vmatpush.msra.mxu0 %v1959
    %1989 = vmatpush.msra.mxu0 %v1955
    %1990 = vmatpush.msra.mxu0 %v1951
    %1991 = vmatpush.msra.mxu0 %v1947
    %1992 = vmatpush.msra.mxu0 %v1943
    %1993 = vmatpush.msra.mxu0 %v1939
    %1994 = vmatpush.msra.mxu0 %v1935
    %1995 = vmatpush.msra.mxu0 %v1931
    %1996 = vmatpush.msra.mxu0 %v1927
    %1997 = vmatpush.msra.mxu0 %v1923
    %1998 = vmatpush.msra.mxu0 %v1919
    %1999 = vmatmul.f32.gmra.mxu0 %v1911
    %v2000 = vpop.f32.mrf.mxu0
    %v2001 = vadd.f32 0.0, %v2000
    %2002 = vdwg.mxu0
    %2003 = vmatpush.msra.mxu0 %v1980
    %2004 = vmatpush.msra.mxu0 %v1976
    %2005 = vmatpush.msra.mxu0 %v1972
    %2006 = vmatpush.msra.mxu0 %v1968
    %2007 = vmatpush.msra.mxu0 %v1964
    %2008 = vmatpush.msra.mxu0 %v1960
    %2009 = vmatpush.msra.mxu0 %v1956
    %2010 = vmatpush.msra.mxu0 %v1952
    %2011 = vmatpush.msra.mxu0 %v1948
    %2012 = vmatpush.msra.mxu0 %v1944
    %2013 = vmatpush.msra.mxu0 %v1940
    %2014 = vmatpush.msra.mxu0 %v1936
    %2015 = vmatpush.msra.mxu0 %v1932
    %2016 = vmatpush.msra.mxu0 %v1928
    %2017 = vmatpush.msra.mxu0 %v1924
    %2018 = vmatpush.msra.mxu0 %v1920
    %2019 = vmatmul.f32.gmra.mxu0 %v1911
    %v2020 = vpop.f32.mrf.mxu0
    %v2021 = vadd.f32 0.0, %v2020
    %2022 = vdwg.mxu0
    %2023 = vmatpush.msra.mxu0 %v1981
    %2024 = vmatpush.msra.mxu0 %v1977
    %2025 = vmatpush.msra.mxu0 %v1973
    %2026 = vmatpush.msra.mxu0 %v1969
    %2027 = vmatpush.msra.mxu0 %v1965
    %2028 = vmatpush.msra.mxu0 %v1961
    %2029 = vmatpush.msra.mxu0 %v1957
    %2030 = vmatpush.msra.mxu0 %v1953
    %2031 = vmatpush.msra.mxu0 %v1949
    %2032 = vmatpush.msra.mxu0 %v1945
    %2033 = vmatpush.msra.mxu0 %v1941
    %2034 = vmatpush.msra.mxu0 %v1937
    %2035 = vmatpush.msra.mxu0 %v1933
    %2036 = vmatpush.msra.mxu0 %v1929
    %2037 = vmatpush.msra.mxu0 %v1925
    %2038 = vmatpush.msra.mxu0 %v1921
    %2039 = vmatmul.f32.gmra.mxu0 %v1911
    %v2040 = vpop.f32.mrf.mxu0
    %v2041 = vadd.f32 0.0, %v2040
    %2042 = vdwg.mxu0
    %2043 = vmatpush.msra.mxu0 %v1982
    %2044 = vmatpush.msra.mxu0 %v1978
    %2045 = vmatpush.msra.mxu0 %v1974
    %2046 = vmatpush.msra.mxu0 %v1970
    %2047 = vmatpush.msra.mxu0 %v1966
    %2048 = vmatpush.msra.mxu0 %v1962
    %2049 = vmatpush.msra.mxu0 %v1958
    %2050 = vmatpush.msra.mxu0 %v1954
    %2051 = vmatpush.msra.mxu0 %v1950
    %2052 = vmatpush.msra.mxu0 %v1946
    %2053 = vmatpush.msra.mxu0 %v1942
    %2054 = vmatpush.msra.mxu0 %v1938
    %2055 = vmatpush.msra.mxu0 %v1934
    %2056 = vmatpush.msra.mxu0 %v1930
    %2057 = vmatpush.msra.mxu0 %v1926
    %2058 = vmatpush.msra.mxu0 %v1922
    %2059 = vmatmul.f32.gmra.mxu0 %v1911
    %v2060 = vpop.f32.mrf.mxu0
    %v2061 = vadd.f32 0.0, %v2060
    %2062 = vdwg.mxu0
    %v2063 = vadd.f32 %v1915, %v2001
    %v2064 = vadd.f32 %v1916, %v2021
    %v2065 = vadd.f32 %v1917, %v2041
    %v2066 = vadd.f32 %v1918, %v2061
    %v2067 = vxor.u32 %v2063, 2147483648
    %v2068 = vmul.f32 %v2067, 1.442695
    %v2069 = vpow.pop %v2068
    %v2070 = vadd.f32 %v2069, 1.0
    %v2071 = vrcp.pop %v2070
    %v2072 = vmul.f32 %v2070, %v2071
    %v2073 = vsub.f32 1.0, %v2072
    %v2074 = vmul.f32 %v2071, %v2073
    %v2075 = vadd.f32 %v2071, %v2074
    %vm2076 = vweird.f32 %v2070
    %vm2077 = vweird.f32 %v2071
    %vm2078 = vmor %vm2076, %vm2077
    %v2079 = vsel %vm2078, %v2071, %v2075
    %v2080 = vand.u32 2147483647, %v2070
    %vm2081 = vcmp.eq.f32.partialorder %v2080, 8.507059e+37
    %v2082 = vand.u32 %v2070, 2147483648
    %v2083 = vor.u32 1.1754944e-38, %v2082
    %v2084 = vsel %vm2081, %v2083, %v2079
    %v2085 = vmul.f32 1.0, %v2084
    %v2086 = vxor.u32 %v2064, 2147483648
    %v2087 = vmul.f32 %v2086, 1.442695
    %v2088 = vpow.pop %v2087
    %v2089 = vadd.f32 %v2088, 1.0
    %v2090 = vrcp.pop %v2089
    %v2091 = vmul.f32 %v2089, %v2090
    %v2092 = vsub.f32 1.0, %v2091
    %v2093 = vmul.f32 %v2090, %v2092
    %v2094 = vadd.f32 %v2090, %v2093
    %vm2095 = vweird.f32 %v2089
    %vm2096 = vweird.f32 %v2090
    %vm2097 = vmor %vm2095, %vm2096
    %v2098 = vsel %vm2097, %v2090, %v2094
    %v2099 = vand.u32 2147483647, %v2089
    %vm2100 = vcmp.eq.f32.partialorder %v2099, 8.507059e+37
    %v2101 = vand.u32 %v2089, 2147483648
    %v2102 = vor.u32 1.1754944e-38, %v2101
    %v2103 = vsel %vm2100, %v2102, %v2098
    %v2104 = vmul.f32 1.0, %v2103
    %v2105 = vtanh.pop %v2065
    %v2106 = vxor.u32 %v2066, 2147483648
    %v2107 = vmul.f32 %v2106, 1.442695
    %v2108 = vpow.pop %v2107
    %v2109 = vadd.f32 %v2108, 1.0
    %v2110 = vrcp.pop %v2109
    %v2111 = vmul.f32 %v2109, %v2110
    %v2112 = vsub.f32 1.0, %v2111
    %v2113 = vmul.f32 %v2110, %v2112
    %v2114 = vadd.f32 %v2110, %v2113
    %vm2115 = vweird.f32 %v2109
    %vm2116 = vweird.f32 %v2110
    %vm2117 = vmor %vm2115, %vm2116
    %v2118 = vsel %vm2117, %v2110, %v2114
    %v2119 = vand.u32 2147483647, %v2109
    %vm2120 = vcmp.eq.f32.partialorder %v2119, 8.507059e+37
    %v2121 = vand.u32 %v2109, 2147483648
    %v2122 = vor.u32 1.1754944e-38, %v2121
    %v2123 = vsel %vm2120, %v2122, %v2118
    %v2124 = vmul.f32 1.0, %v2123
    %v2125 = vmul.f32 %v2104, %v1909
    %v2126 = vmul.f32 %v2085, %v2105
    %v2127 = vadd.f32 %v2125, %v2126
    %v2128 = vtanh.pop %v2127
    %v2129 = vmul.f32 %v2124, %v2128
    %s2130 = scalar_lea.vmem [#allocation3], 56
    %2131 = vst [vmem:[%s2130] sm:$0xff] %v2129
    %2132 = vst [vmem:[#allocation14] sm:$0xff] %v2129
    %2133 = vst [vmem:[#allocation16] sm:$0xff] %v2127
    %v2134 = vld [vmem:[#allocation3] sm:$0x1]
    %v2135 = vld [vmem:[#allocation3 + $0x8] sm:$0x1]
    %v2136 = vld [vmem:[#allocation3 + $0x10] sm:$0x1]
    %v2137 = vld [vmem:[#allocation3 + $0x18] sm:$0x1]
    %v2138 = vld [vmem:[#allocation3 + $0x20] sm:$0x1]
    %v2139 = vld [vmem:[#allocation3 + $0x28] sm:$0x1]
    %v2140 = vld [vmem:[#allocation3 + $0x30] sm:$0x1]
    %v2141 = vld [vmem:[#allocation3 + $0x38] sm:$0x1]
    %v2150 = vrot.slane %v2135, 7
    %vm2151 = vcmask 1041409
    %v2152 = vsel %vm2151, %v2150, %v2134
    %v2153 = vrot.slane %v2136, 6
    %vm2154 = vcmask 1042434
    %v2155 = vsel %vm2154, %v2153, %v2152
    %v2156 = vrot.slane %v2137, 5
    %vm2157 = vcmask 1043459
    %v2158 = vsel %vm2157, %v2156, %v2155
    %v2159 = vrot.slane %v2138, 4
    %vm2160 = vcmask 1044484
    %v2161 = vsel %vm2160, %v2159, %v2158
    %v2162 = vrot.slane %v2139, 3
    %vm2163 = vcmask 1045509
    %v2164 = vsel %vm2163, %v2162, %v2161
    %v2165 = vrot.slane %v2140, 2
    %vm2166 = vcmask 1046534
    %v2167 = vsel %vm2166, %v2165, %v2164
    %v2168 = vrot.slane %v2141, 1
    %vm2169 = vcmask 1047559
    %v2170 = vsel %vm2169, %v2168, %v2167
    %2172 = vst [vmem:[#allocation13] sm:$0xff] %v2170
    %v2173 = vld [vmem:[#allocation3 + $0x1] sm:$0x1]
    %v2174 = vld [vmem:[#allocation3 + $0x9] sm:$0x1]
    %v2175 = vld [vmem:[#allocation3 + $0x11] sm:$0x1]
    %v2176 = vld [vmem:[#allocation3 + $0x19] sm:$0x1]
    %v2177 = vld [vmem:[#allocation3 + $0x21] sm:$0x1]
    %v2178 = vld [vmem:[#allocation3 + $0x29] sm:$0x1]
    %v2179 = vld [vmem:[#allocation3 + $0x31] sm:$0x1]
    %v2180 = vld [vmem:[#allocation3 + $0x39] sm:$0x1]
    %v2189 = vrot.slane %v2174, 7
    %v2190 = vsel %vm2151, %v2189, %v2173
    %v2191 = vrot.slane %v2175, 6
    %v2192 = vsel %vm2154, %v2191, %v2190
    %v2193 = vrot.slane %v2176, 5
    %v2194 = vsel %vm2157, %v2193, %v2192
    %v2195 = vrot.slane %v2177, 4
    %v2196 = vsel %vm2160, %v2195, %v2194
    %v2197 = vrot.slane %v2178, 3
    %v2198 = vsel %vm2163, %v2197, %v2196
    %v2199 = vrot.slane %v2179, 2
    %v2200 = vsel %vm2166, %v2199, %v2198
    %v2201 = vrot.slane %v2180, 1
    %v2202 = vsel %vm2169, %v2201, %v2200
    %s2204 = scalar_lea.vmem [#allocation13], 8
    %2205 = vst [vmem:[%s2204] sm:$0xff] %v2202
    %v2206 = vld [vmem:[#allocation3 + $0x2] sm:$0x1]
    %v2207 = vld [vmem:[#allocation3 + $0xa] sm:$0x1]
    %v2208 = vld [vmem:[#allocation3 + $0x12] sm:$0x1]
    %v2209 = vld [vmem:[#allocation3 + $0x1a] sm:$0x1]
    %v2210 = vld [vmem:[#allocation3 + $0x22] sm:$0x1]
    %v2211 = vld [vmem:[#allocation3 + $0x2a] sm:$0x1]
    %v2212 = vld [vmem:[#allocation3 + $0x32] sm:$0x1]
    %v2213 = vld [vmem:[#allocation3 + $0x3a] sm:$0x1]
    %v2222 = vrot.slane %v2207, 7
    %v2223 = vsel %vm2151, %v2222, %v2206
    %v2224 = vrot.slane %v2208, 6
    %v2225 = vsel %vm2154, %v2224, %v2223
    %v2226 = vrot.slane %v2209, 5
    %v2227 = vsel %vm2157, %v2226, %v2225
    %v2228 = vrot.slane %v2210, 4
    %v2229 = vsel %vm2160, %v2228, %v2227
    %v2230 = vrot.slane %v2211, 3
    %v2231 = vsel %vm2163, %v2230, %v2229
    %v2232 = vrot.slane %v2212, 2
    %v2233 = vsel %vm2166, %v2232, %v2231
    %v2234 = vrot.slane %v2213, 1
    %v2235 = vsel %vm2169, %v2234, %v2233
    %s2237 = scalar_lea.vmem [#allocation13], 16
    %2238 = vst [vmem:[%s2237] sm:$0xff] %v2235
    %v2239 = vld [vmem:[#allocation3 + $0x3] sm:$0x1]
    %v2240 = vld [vmem:[#allocation3 + $0xb] sm:$0x1]
    %v2241 = vld [vmem:[#allocation3 + $0x13] sm:$0x1]
    %v2242 = vld [vmem:[#allocation3 + $0x1b] sm:$0x1]
    %v2243 = vld [vmem:[#allocation3 + $0x23] sm:$0x1]
    %v2244 = vld [vmem:[#allocation3 + $0x2b] sm:$0x1]
    %v2245 = vld [vmem:[#allocation3 + $0x33] sm:$0x1]
    %v2246 = vld [vmem:[#allocation3 + $0x3b] sm:$0x1]
    %v2255 = vrot.slane %v2240, 7
    %v2256 = vsel %vm2151, %v2255, %v2239
    %v2257 = vrot.slane %v2241, 6
    %v2258 = vsel %vm2154, %v2257, %v2256
    %v2259 = vrot.slane %v2242, 5
    %v2260 = vsel %vm2157, %v2259, %v2258
    %v2261 = vrot.slane %v2243, 4
    %v2262 = vsel %vm2160, %v2261, %v2260
    %v2263 = vrot.slane %v2244, 3
    %v2264 = vsel %vm2163, %v2263, %v2262
    %v2265 = vrot.slane %v2245, 2
    %v2266 = vsel %vm2166, %v2265, %v2264
    %v2267 = vrot.slane %v2246, 1
    %v2268 = vsel %vm2169, %v2267, %v2266
    %s2270 = scalar_lea.vmem [#allocation13], 24
    %2271 = vst [vmem:[%s2270] sm:$0xff] %v2268
    %v2272 = vld [vmem:[#allocation3 + $0x4] sm:$0x1]
    %v2273 = vld [vmem:[#allocation3 + $0xc] sm:$0x1]
    %v2274 = vld [vmem:[#allocation3 + $0x14] sm:$0x1]
    %v2275 = vld [vmem:[#allocation3 + $0x1c] sm:$0x1]
    %v2276 = vld [vmem:[#allocation3 + $0x24] sm:$0x1]
    %v2277 = vld [vmem:[#allocation3 + $0x2c] sm:$0x1]
    %v2278 = vld [vmem:[#allocation3 + $0x34] sm:$0x1]
    %v2279 = vld [vmem:[#allocation3 + $0x3c] sm:$0x1]
    %v2288 = vrot.slane %v2273, 7
    %v2289 = vsel %vm2151, %v2288, %v2272
    %v2290 = vrot.slane %v2274, 6
    %v2291 = vsel %vm2154, %v2290, %v2289
    %v2292 = vrot.slane %v2275, 5
    %v2293 = vsel %vm2157, %v2292, %v2291
    %v2294 = vrot.slane %v2276, 4
    %v2295 = vsel %vm2160, %v2294, %v2293
    %v2296 = vrot.slane %v2277, 3
    %v2297 = vsel %vm2163, %v2296, %v2295
    %v2298 = vrot.slane %v2278, 2
    %v2299 = vsel %vm2166, %v2298, %v2297
    %v2300 = vrot.slane %v2279, 1
    %v2301 = vsel %vm2169, %v2300, %v2299
    %s2303 = scalar_lea.vmem [#allocation13], 32
    %2304 = vst [vmem:[%s2303] sm:$0xff] %v2301
    %v2305 = vld [vmem:[#allocation3 + $0x5] sm:$0x1]
    %v2306 = vld [vmem:[#allocation3 + $0xd] sm:$0x1]
    %v2307 = vld [vmem:[#allocation3 + $0x15] sm:$0x1]
    %v2308 = vld [vmem:[#allocation3 + $0x1d] sm:$0x1]
    %v2309 = vld [vmem:[#allocation3 + $0x25] sm:$0x1]
    %v2310 = vld [vmem:[#allocation3 + $0x2d] sm:$0x1]
    %v2311 = vld [vmem:[#allocation3 + $0x35] sm:$0x1]
    %v2312 = vld [vmem:[#allocation3 + $0x3d] sm:$0x1]
    %v2321 = vrot.slane %v2306, 7
    %v2322 = vsel %vm2151, %v2321, %v2305
    %v2323 = vrot.slane %v2307, 6
    %v2324 = vsel %vm2154, %v2323, %v2322
    %v2325 = vrot.slane %v2308, 5
    %v2326 = vsel %vm2157, %v2325, %v2324
    %v2327 = vrot.slane %v2309, 4
    %v2328 = vsel %vm2160, %v2327, %v2326
    %v2329 = vrot.slane %v2310, 3
    %v2330 = vsel %vm2163, %v2329, %v2328
    %v2331 = vrot.slane %v2311, 2
    %v2332 = vsel %vm2166, %v2331, %v2330
    %v2333 = vrot.slane %v2312, 1
    %v2334 = vsel %vm2169, %v2333, %v2332
    %s2336 = scalar_lea.vmem [#allocation13], 40
    %2337 = vst [vmem:[%s2336] sm:$0xff] %v2334
    %v2338 = vld [vmem:[#allocation3 + $0x6] sm:$0x1]
    %v2339 = vld [vmem:[#allocation3 + $0xe] sm:$0x1]
    %v2340 = vld [vmem:[#allocation3 + $0x16] sm:$0x1]
    %v2341 = vld [vmem:[#allocation3 + $0x1e] sm:$0x1]
    %v2342 = vld [vmem:[#allocation3 + $0x26] sm:$0x1]
    %v2343 = vld [vmem:[#allocation3 + $0x2e] sm:$0x1]
    %v2344 = vld [vmem:[#allocation3 + $0x36] sm:$0x1]
    %v2345 = vld [vmem:[#allocation3 + $0x3e] sm:$0x1]
    %v2354 = vrot.slane %v2339, 7
    %v2355 = vsel %vm2151, %v2354, %v2338
    %v2356 = vrot.slane %v2340, 6
    %v2357 = vsel %vm2154, %v2356, %v2355
    %v2358 = vrot.slane %v2341, 5
    %v2359 = vsel %vm2157, %v2358, %v2357
    %v2360 = vrot.slane %v2342, 4
    %v2361 = vsel %vm2160, %v2360, %v2359
    %v2362 = vrot.slane %v2343, 3
    %v2363 = vsel %vm2163, %v2362, %v2361
    %v2364 = vrot.slane %v2344, 2
    %v2365 = vsel %vm2166, %v2364, %v2363
    %v2366 = vrot.slane %v2345, 1
    %v2367 = vsel %vm2169, %v2366, %v2365
    %s2369 = scalar_lea.vmem [#allocation13], 48
    %2370 = vst [vmem:[%s2369] sm:$0xff] %v2367
    %v2371 = vld [vmem:[#allocation3 + $0x7] sm:$0x1]
    %v2372 = vld [vmem:[#allocation3 + $0xf] sm:$0x1]
    %v2373 = vld [vmem:[#allocation3 + $0x17] sm:$0x1]
    %v2374 = vld [vmem:[#allocation3 + $0x1f] sm:$0x1]
    %v2375 = vld [vmem:[#allocation3 + $0x27] sm:$0x1]
    %v2376 = vld [vmem:[#allocation3 + $0x2f] sm:$0x1]
    %v2377 = vld [vmem:[#allocation3 + $0x37] sm:$0x1]
    %v2378 = vld [vmem:[#allocation3 + $0x3f] sm:$0x1]
    %v2387 = vrot.slane %v2372, 7
    %v2388 = vsel %vm2151, %v2387, %v2371
    %v2389 = vrot.slane %v2373, 6
    %v2390 = vsel %vm2154, %v2389, %v2388
    %v2391 = vrot.slane %v2374, 5
    %v2392 = vsel %vm2157, %v2391, %v2390
    %v2393 = vrot.slane %v2375, 4
    %v2394 = vsel %vm2160, %v2393, %v2392
    %v2395 = vrot.slane %v2376, 3
    %v2396 = vsel %vm2163, %v2395, %v2394
    %v2397 = vrot.slane %v2377, 2
    %v2398 = vsel %vm2166, %v2397, %v2396
    %v2399 = vrot.slane %v2378, 1
    %v2400 = vsel %vm2169, %v2399, %v2398
    %s2402 = scalar_lea.vmem [#allocation13], 56
    %2403 = vst [vmem:[%s2402] sm:$0xff] %v2400
    // Predicated region
    $region50: #{tpu_custom_call.1} parent=1 // pred_check
      _
    $region51: #{tpu_custom_call.1} parent=1 // pred_check_branch
      %2405 = sbr.rel (0) target = $region53
    $region52: #{tpu_custom_call.1} parent=1 // pred_region
      %2407 = vsyncadd [#allocation6], 0
      %s2408 = sshll.u32 [#allocation13], 4
      %s2409 = int_to_ptr.vmem [resolvable:$true] %s2408
      %s2410 = sshll.u32 %s6, 4
      %s2411 = int_to_ptr.hbm [resolvable:$true] %s2410
      %2416 = dma.vmem_to_hbm [thread:$0]  %s2409, 1024, %s2411, [#allocation6], 128, 128, 8
    $region53: #{tpu_custom_call.1} parent=1 // pred_fallthru
      _
    // Predicated region
    $region54: #{tpu_custom_call.1} parent=1 // pred_check
      _
    $region55: #{tpu_custom_call.1} parent=1 // pred_check_branch
      %2418 = sbr.rel (0) target = $region57
    $region56: #{tpu_custom_call.1} parent=1 // pred_region
      %2420 = vsyncadd [#allocation15], 0
      %s2422 = sshll.u32 [#allocation14], 4
      %s2423 = int_to_ptr.vmem [resolvable:$true] %s2422
      %s2424 = sshll.u32 %s7, 4
      %s2425 = int_to_ptr.hbm [resolvable:$true] %s2424
      %2427 = dma.vmem_to_hbm [thread:$0]  %s2423, 128, %s2425, [#allocation15]
    $region57: #{tpu_custom_call.1} parent=1 // pred_fallthru
      _
    // Predicated region
    $region58: #{tpu_custom_call.1} parent=1 // pred_check
      _
    $region59: #{tpu_custom_call.1} parent=1 // pred_check_branch
      %2429 = sbr.rel (0) target = $region61
    $region60: #{tpu_custom_call.1} parent=1 // pred_region
      %2431 = vsyncadd [#allocation15], 0
      %s2433 = sshll.u32 [#allocation16], 4
      %s2434 = int_to_ptr.vmem [resolvable:$true] %s2433
      %s2435 = sshll.u32 %s8, 4
      %s2436 = int_to_ptr.hbm [resolvable:$true] %s2435
      %2438 = dma.vmem_to_hbm [thread:$0]  %s2434, 128, %s2436, [#allocation15]
    $region61: #{tpu_custom_call.1} parent=1 // pred_fallthru
      _
    // Predicated region
    $region62: #{tpu_custom_call.1} parent=1 // pred_check
      _
    $region63: #{tpu_custom_call.1} parent=1 // pred_check_branch
      %2440 = sbr.rel (0) target = $region65
    $region64: #{tpu_custom_call.1} parent=1 // pred_region
      %2442 = dma.done [#allocation6], 1024
    $region65: #{tpu_custom_call.1} parent=1 // pred_fallthru
      _
    // Predicated region
    $region66: #{tpu_custom_call.1} parent=1 // pred_check
      _
    $region67: #{tpu_custom_call.1} parent=1 // pred_check_branch
      %2444 = sbr.rel (0) target = $region69
    $region68: #{tpu_custom_call.1} parent=1 // pred_region
      %2446 = dma.done [#allocation15], 128
    $region69: #{tpu_custom_call.1} parent=1 // pred_fallthru
      _
    // Predicated region
    $region70: #{tpu_custom_call.1} parent=1 // pred_check
      _
    $region71: #{tpu_custom_call.1} parent=1 // pred_check_branch
      %2448 = sbr.rel (0) target = $region73
    $region72: #{tpu_custom_call.1} parent=1 // pred_region
      %2450 = dma.done [#allocation15], 128
    $region73: #{tpu_custom_call.1} parent=1 // pred_fallthru
      _
    %2451 = vsyncpa [#allocation5], 1
    %2452 = vsyncpa [#allocation8], 1
    %2453 = vsyncpa [#allocation11], 1
    %2454 = vsyncpa [#allocation6], 1
    %2455 = vsyncpa [#allocation15], 1

</llo_original>
